<compile_context>
chip_gen: v6e
topology: v6e:2x2x1
jax: 0.10.0
libtpu: 0.0.40
codegen_flags: <defaults>
</compile_context>

<pallas_src>
import jax
import jax.numpy as jnp
from jax.experimental import pallas as pl
from jax.experimental.pallas import tpu as pltpu


# ---------------------------------------------------------------------------
# Fused per-sample kernel.
# ---------------------------------------------------------------------------
def _lenet5_kernel(x_ref, s1_ref, b1_ref, ph1_ref, pw1_ref,
                   s2_ref, b2_ref, ph2_ref, pw2_ref,
                   s3_ref, b3_ref, w4_ref, b4_ref, w5_ref, b5_ref,
                   logits_ref, probs_ref):
    f32 = jnp.float32
    x = x_ref[...].astype(f32)                               # (32, 32), one sample

    # ---- conv1 (1->6, 5x5) + tanh: sum of 5 row-shifted banded matmuls ----
    y1 = jnp.zeros((28, 6 * 28), f32)
    for dh in range(5):
        y1 += jnp.dot(x[dh:dh + 28, :], s1_ref[dh], preferred_element_type=f32)
    a1 = jnp.tanh(y1 + b1_ref[...])                          # (28, 168), col = co*28+wo

    # ---- pool1 (2x2 avg) fused in-kernel: Ph1 @ a1 @ PwBlk1 ----
    p1 = jnp.dot(ph1_ref[...],
                 jnp.dot(a1, pw1_ref[...], preferred_element_type=f32),
                 preferred_element_type=f32)                 # (14, 84), col = ci*14+w

    # ---- conv2 (6->16, 5x5) + tanh ----
    y2 = jnp.zeros((10, 16 * 10), f32)
    for dh in range(5):
        y2 += jnp.dot(p1[dh:dh + 10, :], s2_ref[dh], preferred_element_type=f32)
    a2 = jnp.tanh(y2 + b2_ref[...])                          # (10, 160)

    # ---- pool2 ----
    p2 = jnp.dot(ph2_ref[...],
                 jnp.dot(a2, pw2_ref[...], preferred_element_type=f32),
                 preferred_element_type=f32)                 # (5, 80), col = ci*5+w

    # ---- conv3 (16->120, 5x5 on a 5x5 map == FC 400->120) + tanh ----
    y3 = jnp.zeros((1, 120), f32)
    for dh in range(5):
        y3 += jnp.dot(p2[dh:dh + 1, :], s3_ref[dh], preferred_element_type=f32)
    h3 = jnp.tanh(y3 + b3_ref[...])                          # (1, 120)

    # ---- classifier: FC 120->84 + tanh, FC 84->n_classes ----
    h4 = jnp.tanh(jnp.dot(h3, w4_ref[...], preferred_element_type=f32) + b4_ref[...])
    logits = jnp.dot(h4, w5_ref[...], preferred_element_type=f32) + b5_ref[...]
    logits_ref[...] = logits.astype(logits_ref.dtype)

    # ---- softmax (exact lane count, no padded lanes -> no masking) ----
    m = jnp.max(logits, axis=-1, keepdims=True)
    e = jnp.exp(logits - m)
    denom = jnp.sum(e, axis=-1, keepdims=True)
    # TODO(synk): pl.reciprocal(denom, approx=True) moves the divide to the EUP
    # slot; kept exact here to preserve the 5e-3 reference tolerance.
    probs = e * pl.reciprocal(denom, approx=False)
    probs_ref[...] = probs.astype(probs_ref.dtype)


# ---------------------------------------------------------------------------
# One-time weight layout plumbing (would be done at init in real use).
# ---------------------------------------------------------------------------
def _pool_matrix(n: int) -> jax.Array:
    """(n, n//2) matrix averaging adjacent pairs: P[2j, j] = P[2j+1, j] = 0.5."""
    eye = jnp.eye(n, dtype=jnp.float32)
    return 0.5 * (eye[:, 0::2] + eye[:, 1::2])


def _banded_weights(w: jax.Array, w_in: int, w_out: int) -> jax.Array:
    """Banded conv matrices: S[dh, ci*w_in + (wo+dw), co*w_out + wo] = w[co,ci,dh,dw].

    With these,  out[ho, co*w_out + wo] = sum_dh  inp[ho+dh, :] @ S[dh],
    i.e. a VALID kxk conv becomes k row-shifted 2-D matmuls (MXU friendly,
    no im2col, no reshapes inside the kernel).
    """
    c_out, c_in, k, _ = w.shape
    w = w.astype(jnp.float32)
    mats = []
    for dh in range(k):
        acc = jnp.zeros((c_in, w_in, c_out, w_out), jnp.float32)
        for dw in range(k):
            shift = jnp.eye(w_in, w_out, k=-dw, dtype=jnp.float32)  # [wo+dw, wo] = 1
            acc = acc + jnp.einsum("oc,wv->cwov", w[:, :, dh, dw], shift)
        mats.append(acc.reshape(c_in * w_in, c_out * w_out))
    return jnp.stack(mats, axis=0)


# ---------------------------------------------------------------------------
# Full forward pass (single pallas_call).
# ---------------------------------------------------------------------------
def lenet5_forward(x, params, n_classes):
    B = x.shape[0]
    f32 = jnp.float32
    x2d = x[:, 0, :, :].astype(f32)                          # (B, 32, 32); C_in = 1

    s1 = _banded_weights(params["w1"], 32, 28)               # (5, 32, 168)
    b1 = jnp.repeat(params["b1"].astype(f32), 28)[None, :]   # (1, 168)
    ph1 = _pool_matrix(28).T                                 # (14, 28)
    pw1 = jnp.kron(jnp.eye(6, dtype=f32), _pool_matrix(28))  # (168, 84)

    s2 = _banded_weights(params["w2"], 14, 10)               # (5, 84, 160)
    b2 = jnp.repeat(params["b2"].astype(f32), 10)[None, :]   # (1, 160)
    ph2 = _pool_matrix(10).T                                 # (5, 10)
    pw2 = jnp.kron(jnp.eye(16, dtype=f32), _pool_matrix(10)) # (160, 80)

    s3 = _banded_weights(params["w3"], 5, 1)                 # (5, 80, 120)
    b3 = params["b3"].astype(f32)[None, :]                   # (1, 120)
    w4t = params["w4"].astype(f32).T                         # (120, 84)
    b4 = params["b4"].astype(f32)[None, :]                   # (1, 84)
    w5t = params["w5"].astype(f32).T                         # (84, n_classes)
    b5 = params["b5"].astype(f32)[None, :]                   # (1, n_classes)

    operands = (x2d, s1, b1, ph1, pw1, s2, b2, ph2, pw2, s3, b3, w4t, b4, w5t, b5)

    def full_spec(a):
        return pl.BlockSpec(a.shape, lambda b, n=a.ndim: (0,) * n)

    in_specs = [pl.BlockSpec((None, 32, 32), lambda b: (b, 0, 0))]  # one sample/step
    in_specs += [full_spec(a) for a in operands[1:]]                # weights: whole arrays

    out_shape = (jax.ShapeDtypeStruct((B, 1, n_classes), f32),
                 jax.ShapeDtypeStruct((B, 1, n_classes), f32))
    out_specs = (pl.BlockSpec((None, 1, n_classes), lambda b: (b, 0, 0)),
                 pl.BlockSpec((None, 1, n_classes), lambda b: (b, 0, 0)))

    flops_per_sample = 2 * (5 * 28 * 32 * 168 + 28 * 168 * 84 + 14 * 28 * 84
                            + 5 * 10 * 84 * 160 + 10 * 160 * 80 + 5 * 10 * 80
                            + 5 * 80 * 120 + 120 * 84 + 84 * n_classes)
    weight_bytes = sum(int(a.size) * 4 for a in operands[1:])
    cost = pl.CostEstimate(
        flops=B * flops_per_sample,
        transcendentals=B * (28 * 168 + 10 * 160 + 120 + 84 + n_classes),
        bytes_accessed=int(x2d.size) * 4 + weight_bytes + 2 * B * n_classes * 4,
    )

    logits, probs = pl.pallas_call(
        _lenet5_kernel,
        out_shape=out_shape,
        grid=(B,),
        in_specs=in_specs,
        out_specs=out_specs,
        compiler_params=pltpu.CompilerParams(dimension_semantics=("parallel",)),
        cost_estimate=cost,
    )(*operands)
    return logits[:, 0, :], probs[:, 0, :]


# ---------------------------------------------------------------------------
# Pure-JAX reference (independent of the Pallas path).
# ---------------------------------------------------------------------------
def _avgpool2(x):
    B, C, H, W = x.shape
    return x.reshape(B, C, H // 2, 2, W // 2, 2).mean(axis=(3, 5))


def lenet5_reference(x, params):
    hp = jax.lax.Precision.HIGHEST

    def conv(h, w, b):
        y = jax.lax.conv_general_dilated(
            h, w, (1, 1), "VALID",
            dimension_numbers=("NCHW", "OIHW", "NCHW"), precision=hp)
        return y + b.reshape(1, -1, 1, 1)

    h = jnp.tanh(conv(x, params["w1"], params["b1"]))
    h = _avgpool2(h)
    h = jnp.tanh(conv(h, params["w2"], params["b2"]))
    h = _avgpool2(h)
    h = jnp.tanh(conv(h, params["w3"], params["b3"]))
    h = h.reshape(x.shape[0], -1)
    h = jnp.tanh(h @ params["w4"].T + params["b4"])
    logits = h @ params["w5"].T + params["b5"]
    return logits, jax.nn.softmax(logits, axis=-1)


if __name__ == "__main__":
    n_classes = 10
    B = 2

    key = jax.random.PRNGKey(0)
    ks = jax.random.split(key, 11)

    def u(k, shape, fan_in):
        bound = 1.0 / (fan_in ** 0.5)
        return jax.random.uniform(k, shape, minval=-bound, maxval=bound,
                                  dtype=jnp.float32)

    params = {
        "w1": u(ks[0], (6, 1, 5, 5), 25),     "b1": u(ks[1], (6,), 25),
        "w2": u(ks[2], (16, 6, 5, 5), 150),   "b2": u(ks[3], (16,), 150),
        "w3": u(ks[4], (120, 16, 5, 5), 400), "b3": u(ks[5], (120,), 400),
        "w4": u(ks[6], (84, 120), 120),       "b4": u(ks[7], (84,), 120),
        "w5": u(ks[8], (n_classes, 84), 84),  "b5": u(ks[9], (n_classes,), 84),
    }
    x = jax.random.normal(ks[10], (B, 1, 32, 32), dtype=jnp.float32)

    fwd = jax.jit(lambda xx, pp: lenet5_forward(xx, pp, n_classes))
    logits, probs = jax.block_until_ready(fwd(x, params))

    ref_logits, ref_probs = lenet5_reference(x, params)

    assert logits.shape == (B, n_classes) and probs.shape == (B, n_classes)
    assert jnp.allclose(logits, ref_logits, atol=5e-3, rtol=5e-3), "logits mismatch"
    assert jnp.allclose(probs, ref_probs, atol=5e-3, rtol=5e-3), "probs mismatch"
    assert jnp.allclose(probs.sum(axis=1), 1.0, atol=1e-3), "probs not normalized"

    print("KERNEL_OK")
</pallas_src>

<mosaic_0001>
module attributes {stable_mosaic.version = 11 : i64} {
  func.func @_lenet5_kernel(%arg0: i32, %arg1: memref<1x32x32xf32, #tpu.memory_space<vmem>>, %arg2: memref<5x32x168xf32, #tpu.memory_space<vmem>>, %arg3: memref<1x168xf32, #tpu.memory_space<vmem>>, %arg4: memref<14x28xf32, #tpu.memory_space<vmem>>, %arg5: memref<168x84xf32, #tpu.memory_space<vmem>>, %arg6: memref<5x84x160xf32, #tpu.memory_space<vmem>>, %arg7: memref<1x160xf32, #tpu.memory_space<vmem>>, %arg8: memref<5x10xf32, #tpu.memory_space<vmem>>, %arg9: memref<160x80xf32, #tpu.memory_space<vmem>>, %arg10: memref<5x80x120xf32, #tpu.memory_space<vmem>>, %arg11: memref<1x120xf32, #tpu.memory_space<vmem>>, %arg12: memref<120x84xf32, #tpu.memory_space<vmem>>, %arg13: memref<1x84xf32, #tpu.memory_space<vmem>>, %arg14: memref<84x10xf32, #tpu.memory_space<vmem>>, %arg15: memref<1x10xf32, #tpu.memory_space<vmem>>, %arg16: memref<1x1x10xf32, #tpu.memory_space<vmem>>, %arg17: memref<1x1x10xf32, #tpu.memory_space<vmem>>) attributes {dimension_semantics = [#tpu.dimension_semantics<parallel>], iteration_bounds = array<i64: 2>, scalar_prefetch = 0 : i64, scratch_operands = 0 : i64, tpu.core_type = #tpu.core_type<tc>, window_params = [{transform_indices = @transform_0, window_bounds = array<i64: 1, 32, 32>}, {pipeline_mode = #tpu.pipeline_mode<synchronous>, transform_indices = @transform_1, window_bounds = array<i64: 5, 32, 168>}, {pipeline_mode = #tpu.pipeline_mode<synchronous>, transform_indices = @transform_2, window_bounds = array<i64: 1, 168>}, {pipeline_mode = #tpu.pipeline_mode<synchronous>, transform_indices = @transform_3, window_bounds = array<i64: 14, 28>}, {pipeline_mode = #tpu.pipeline_mode<synchronous>, transform_indices = @transform_4, window_bounds = array<i64: 168, 84>}, {pipeline_mode = #tpu.pipeline_mode<synchronous>, transform_indices = @transform_5, window_bounds = array<i64: 5, 84, 160>}, {pipeline_mode = #tpu.pipeline_mode<synchronous>, transform_indices = @transform_6, window_bounds = array<i64: 1, 160>}, {pipeline_mode = #tpu.pipeline_mode<synchronous>, transform_indices = @transform_7, window_bounds = array<i64: 5, 10>}, {pipeline_mode = #tpu.pipeline_mode<synchronous>, transform_indices = @transform_8, window_bounds = array<i64: 160, 80>}, {pipeline_mode = #tpu.pipeline_mode<synchronous>, transform_indices = @transform_9, window_bounds = array<i64: 5, 80, 120>}, {pipeline_mode = #tpu.pipeline_mode<synchronous>, transform_indices = @transform_10, window_bounds = array<i64: 1, 120>}, {pipeline_mode = #tpu.pipeline_mode<synchronous>, transform_indices = @transform_11, window_bounds = array<i64: 120, 84>}, {pipeline_mode = #tpu.pipeline_mode<synchronous>, transform_indices = @transform_12, window_bounds = array<i64: 1, 84>}, {pipeline_mode = #tpu.pipeline_mode<synchronous>, transform_indices = @transform_13, window_bounds = array<i64: 84, 10>}, {pipeline_mode = #tpu.pipeline_mode<synchronous>, transform_indices = @transform_14, window_bounds = array<i64: 1, 10>}, {transform_indices = @transform_15, window_bounds = array<i64: 1, 1, 10>}, {transform_indices = @transform_16, window_bounds = array<i64: 1, 1, 10>}]} {
    %c0 = arith.constant 0 : index
    %c0_0 = arith.constant 0 : index
    %c0_1 = arith.constant 0 : index
    %0 = vector.load %arg1[%c0, %c0_0, %c0_1] : memref<1x32x32xf32, #tpu.memory_space<vmem>>, vector<1x32x32xf32>
    %1 = vector.shape_cast %0 : vector<1x32x32xf32> to vector<32x32xf32>
    %cst = arith.constant 0.000000e+00 : f32
    %2 = vector.broadcast %cst : f32 to vector<28x168xf32>
    %3 = vector.extract_strided_slice %1 {offsets = [0, 0], sizes = [28, 32], strides = [1, 1]} : vector<32x32xf32> to vector<28x32xf32>
    %c0_2 = arith.constant 0 : index
    %c0_3 = arith.constant 0 : index
    %c0_4 = arith.constant 0 : index
    %4 = vector.load %arg2[%c0_2, %c0_3, %c0_4] : memref<5x32x168xf32, #tpu.memory_space<vmem>>, vector<1x32x168xf32>
    %5 = vector.shape_cast %4 : vector<1x32x168xf32> to vector<32x168xf32>
    %cst_5 = arith.constant dense<0.000000e+00> : vector<28x168xf32>
    %6 = tpu.matmul %3, %5, %cst_5 {dimension_numbers = #tpu.dot_dimension_numbers<[1], [0], [0], [1], [0, 0, 1, 1], [], []>} : vector<28x32xf32>, vector<32x168xf32>, vector<28x168xf32> -> vector<28x168xf32>
    %7 = arith.addf %2, %6 : vector<28x168xf32>
    %8 = vector.extract_strided_slice %1 {offsets = [1, 0], sizes = [28, 32], strides = [1, 1]} : vector<32x32xf32> to vector<28x32xf32>
    %c1 = arith.constant 1 : index
    %c0_6 = arith.constant 0 : index
    %c0_7 = arith.constant 0 : index
    %9 = vector.load %arg2[%c1, %c0_6, %c0_7] : memref<5x32x168xf32, #tpu.memory_space<vmem>>, vector<1x32x168xf32>
    %10 = vector.shape_cast %9 : vector<1x32x168xf32> to vector<32x168xf32>
    %cst_8 = arith.constant dense<0.000000e+00> : vector<28x168xf32>
    %11 = tpu.matmul %8, %10, %cst_8 {dimension_numbers = #tpu.dot_dimension_numbers<[1], [0], [0], [1], [0, 0, 1, 1], [], []>} : vector<28x32xf32>, vector<32x168xf32>, vector<28x168xf32> -> vector<28x168xf32>
    %12 = arith.addf %7, %11 : vector<28x168xf32>
    %13 = vector.extract_strided_slice %1 {offsets = [2, 0], sizes = [28, 32], strides = [1, 1]} : vector<32x32xf32> to vector<28x32xf32>
    %c2 = arith.constant 2 : index
    %c0_9 = arith.constant 0 : index
    %c0_10 = arith.constant 0 : index
    %14 = vector.load %arg2[%c2, %c0_9, %c0_10] : memref<5x32x168xf32, #tpu.memory_space<vmem>>, vector<1x32x168xf32>
    %15 = vector.shape_cast %14 : vector<1x32x168xf32> to vector<32x168xf32>
    %cst_11 = arith.constant dense<0.000000e+00> : vector<28x168xf32>
    %16 = tpu.matmul %13, %15, %cst_11 {dimension_numbers = #tpu.dot_dimension_numbers<[1], [0], [0], [1], [0, 0, 1, 1], [], []>} : vector<28x32xf32>, vector<32x168xf32>, vector<28x168xf32> -> vector<28x168xf32>
    %17 = arith.addf %12, %16 : vector<28x168xf32>
    %18 = vector.extract_strided_slice %1 {offsets = [3, 0], sizes = [28, 32], strides = [1, 1]} : vector<32x32xf32> to vector<28x32xf32>
    %c3 = arith.constant 3 : index
    %c0_12 = arith.constant 0 : index
    %c0_13 = arith.constant 0 : index
    %19 = vector.load %arg2[%c3, %c0_12, %c0_13] : memref<5x32x168xf32, #tpu.memory_space<vmem>>, vector<1x32x168xf32>
    %20 = vector.shape_cast %19 : vector<1x32x168xf32> to vector<32x168xf32>
    %cst_14 = arith.constant dense<0.000000e+00> : vector<28x168xf32>
    %21 = tpu.matmul %18, %20, %cst_14 {dimension_numbers = #tpu.dot_dimension_numbers<[1], [0], [0], [1], [0, 0, 1, 1], [], []>} : vector<28x32xf32>, vector<32x168xf32>, vector<28x168xf32> -> vector<28x168xf32>
    %22 = arith.addf %17, %21 : vector<28x168xf32>
    %23 = vector.extract_strided_slice %1 {offsets = [4, 0], sizes = [28, 32], strides = [1, 1]} : vector<32x32xf32> to vector<28x32xf32>
    %c4 = arith.constant 4 : index
    %c0_15 = arith.constant 0 : index
    %c0_16 = arith.constant 0 : index
    %24 = vector.load %arg2[%c4, %c0_15, %c0_16] : memref<5x32x168xf32, #tpu.memory_space<vmem>>, vector<1x32x168xf32>
    %25 = vector.shape_cast %24 : vector<1x32x168xf32> to vector<32x168xf32>
    %cst_17 = arith.constant dense<0.000000e+00> : vector<28x168xf32>
    %26 = tpu.matmul %23, %25, %cst_17 {dimension_numbers = #tpu.dot_dimension_numbers<[1], [0], [0], [1], [0, 0, 1, 1], [], []>} : vector<28x32xf32>, vector<32x168xf32>, vector<28x168xf32> -> vector<28x168xf32>
    %27 = arith.addf %22, %26 : vector<28x168xf32>
    %c0_18 = arith.constant 0 : index
    %c0_19 = arith.constant 0 : index
    %28 = vector.load %arg3[%c0_18, %c0_19] : memref<1x168xf32, #tpu.memory_space<vmem>>, vector<1x168xf32>
    %29 = vector.broadcast %28 : vector<1x168xf32> to vector<28x168xf32>
    %30 = arith.addf %27, %29 : vector<28x168xf32>
    %31 = math.tanh %30 : vector<28x168xf32>
    %c0_20 = arith.constant 0 : index
    %c0_21 = arith.constant 0 : index
    %32 = vector.load %arg4[%c0_20, %c0_21] : memref<14x28xf32, #tpu.memory_space<vmem>>, vector<14x28xf32>
    %c0_22 = arith.constant 0 : index
    %c0_23 = arith.constant 0 : index
    %33 = vector.load %arg5[%c0_22, %c0_23] : memref<168x84xf32, #tpu.memory_space<vmem>>, vector<168x84xf32>
    %cst_24 = arith.constant dense<0.000000e+00> : vector<28x84xf32>
    %34 = tpu.matmul %31, %33, %cst_24 {dimension_numbers = #tpu.dot_dimension_numbers<[1], [0], [0], [1], [0, 0, 1, 1], [], []>} : vector<28x168xf32>, vector<168x84xf32>, vector<28x84xf32> -> vector<28x84xf32>
    %cst_25 = arith.constant dense<0.000000e+00> : vector<14x84xf32>
    %35 = tpu.matmul %32, %34, %cst_25 {dimension_numbers = #tpu.dot_dimension_numbers<[1], [0], [0], [1], [0, 0, 1, 1], [], []>} : vector<14x28xf32>, vector<28x84xf32>, vector<14x84xf32> -> vector<14x84xf32>
    %cst_26 = arith.constant 0.000000e+00 : f32
    %36 = vector.broadcast %cst_26 : f32 to vector<10x160xf32>
    %37 = vector.extract_strided_slice %35 {offsets = [0, 0], sizes = [10, 84], strides = [1, 1]} : vector<14x84xf32> to vector<10x84xf32>
    %c0_27 = arith.constant 0 : index
    %c0_28 = arith.constant 0 : index
    %c0_29 = arith.constant 0 : index
    %38 = vector.load %arg6[%c0_27, %c0_28, %c0_29] : memref<5x84x160xf32, #tpu.memory_space<vmem>>, vector<1x84x160xf32>
    %39 = vector.shape_cast %38 : vector<1x84x160xf32> to vector<84x160xf32>
    %cst_30 = arith.constant dense<0.000000e+00> : vector<10x160xf32>
    %40 = tpu.matmul %37, %39, %cst_30 {dimension_numbers = #tpu.dot_dimension_numbers<[1], [0], [0], [1], [0, 0, 1, 1], [], []>} : vector<10x84xf32>, vector<84x160xf32>, vector<10x160xf32> -> vector<10x160xf32>
    %41 = arith.addf %36, %40 : vector<10x160xf32>
    %42 = vector.extract_strided_slice %35 {offsets = [1, 0], sizes = [10, 84], strides = [1, 1]} : vector<14x84xf32> to vector<10x84xf32>
    %c1_31 = arith.constant 1 : index
    %c0_32 = arith.constant 0 : index
    %c0_33 = arith.constant 0 : index
    %43 = vector.load %arg6[%c1_31, %c0_32, %c0_33] : memref<5x84x160xf32, #tpu.memory_space<vmem>>, vector<1x84x160xf32>
    %44 = vector.shape_cast %43 : vector<1x84x160xf32> to vector<84x160xf32>
    %cst_34 = arith.constant dense<0.000000e+00> : vector<10x160xf32>
    %45 = tpu.matmul %42, %44, %cst_34 {dimension_numbers = #tpu.dot_dimension_numbers<[1], [0], [0], [1], [0, 0, 1, 1], [], []>} : vector<10x84xf32>, vector<84x160xf32>, vector<10x160xf32> -> vector<10x160xf32>
    %46 = arith.addf %41, %45 : vector<10x160xf32>
    %47 = vector.extract_strided_slice %35 {offsets = [2, 0], sizes = [10, 84], strides = [1, 1]} : vector<14x84xf32> to vector<10x84xf32>
    %c2_35 = arith.constant 2 : index
    %c0_36 = arith.constant 0 : index
    %c0_37 = arith.constant 0 : index
    %48 = vector.load %arg6[%c2_35, %c0_36, %c0_37] : memref<5x84x160xf32, #tpu.memory_space<vmem>>, vector<1x84x160xf32>
    %49 = vector.shape_cast %48 : vector<1x84x160xf32> to vector<84x160xf32>
    %cst_38 = arith.constant dense<0.000000e+00> : vector<10x160xf32>
    %50 = tpu.matmul %47, %49, %cst_38 {dimension_numbers = #tpu.dot_dimension_numbers<[1], [0], [0], [1], [0, 0, 1, 1], [], []>} : vector<10x84xf32>, vector<84x160xf32>, vector<10x160xf32> -> vector<10x160xf32>
    %51 = arith.addf %46, %50 : vector<10x160xf32>
    %52 = vector.extract_strided_slice %35 {offsets = [3, 0], sizes = [10, 84], strides = [1, 1]} : vector<14x84xf32> to vector<10x84xf32>
    %c3_39 = arith.constant 3 : index
    %c0_40 = arith.constant 0 : index
    %c0_41 = arith.constant 0 : index
    %53 = vector.load %arg6[%c3_39, %c0_40, %c0_41] : memref<5x84x160xf32, #tpu.memory_space<vmem>>, vector<1x84x160xf32>
    %54 = vector.shape_cast %53 : vector<1x84x160xf32> to vector<84x160xf32>
    %cst_42 = arith.constant dense<0.000000e+00> : vector<10x160xf32>
    %55 = tpu.matmul %52, %54, %cst_42 {dimension_numbers = #tpu.dot_dimension_numbers<[1], [0], [0], [1], [0, 0, 1, 1], [], []>} : vector<10x84xf32>, vector<84x160xf32>, vector<10x160xf32> -> vector<10x160xf32>
    %56 = arith.addf %51, %55 : vector<10x160xf32>
    %57 = vector.extract_strided_slice %35 {offsets = [4, 0], sizes = [10, 84], strides = [1, 1]} : vector<14x84xf32> to vector<10x84xf32>
    %c4_43 = arith.constant 4 : index
    %c0_44 = arith.constant 0 : index
    %c0_45 = arith.constant 0 : index
    %58 = vector.load %arg6[%c4_43, %c0_44, %c0_45] : memref<5x84x160xf32, #tpu.memory_space<vmem>>, vector<1x84x160xf32>
    %59 = vector.shape_cast %58 : vector<1x84x160xf32> to vector<84x160xf32>
    %cst_46 = arith.constant dense<0.000000e+00> : vector<10x160xf32>
    %60 = tpu.matmul %57, %59, %cst_46 {dimension_numbers = #tpu.dot_dimension_numbers<[1], [0], [0], [1], [0, 0, 1, 1], [], []>} : vector<10x84xf32>, vector<84x160xf32>, vector<10x160xf32> -> vector<10x160xf32>
    %61 = arith.addf %56, %60 : vector<10x160xf32>
    %c0_47 = arith.constant 0 : index
    %c0_48 = arith.constant 0 : index
    %62 = vector.load %arg7[%c0_47, %c0_48] : memref<1x160xf32, #tpu.memory_space<vmem>>, vector<1x160xf32>
    %63 = vector.broadcast %62 : vector<1x160xf32> to vector<10x160xf32>
    %64 = arith.addf %61, %63 : vector<10x160xf32>
    %65 = math.tanh %64 : vector<10x160xf32>
    %c0_49 = arith.constant 0 : index
    %c0_50 = arith.constant 0 : index
    %66 = vector.load %arg8[%c0_49, %c0_50] : memref<5x10xf32, #tpu.memory_space<vmem>>, vector<5x10xf32>
    %c0_51 = arith.constant 0 : index
    %c0_52 = arith.constant 0 : index
    %67 = vector.load %arg9[%c0_51, %c0_52] : memref<160x80xf32, #tpu.memory_space<vmem>>, vector<160x80xf32>
    %cst_53 = arith.constant dense<0.000000e+00> : vector<10x80xf32>
    %68 = tpu.matmul %65, %67, %cst_53 {dimension_numbers = #tpu.dot_dimension_numbers<[1], [0], [0], [1], [0, 0, 1, 1], [], []>} : vector<10x160xf32>, vector<160x80xf32>, vector<10x80xf32> -> vector<10x80xf32>
    %cst_54 = arith.constant dense<0.000000e+00> : vector<5x80xf32>
    %69 = tpu.matmul %66, %68, %cst_54 {dimension_numbers = #tpu.dot_dimension_numbers<[1], [0], [0], [1], [0, 0, 1, 1], [], []>} : vector<5x10xf32>, vector<10x80xf32>, vector<5x80xf32> -> vector<5x80xf32>
    %cst_55 = arith.constant 0.000000e+00 : f32
    %70 = vector.broadcast %cst_55 : f32 to vector<1x120xf32>
    %71 = vector.extract_strided_slice %69 {offsets = [0, 0], sizes = [1, 80], strides = [1, 1]} : vector<5x80xf32> to vector<1x80xf32>
    %c0_56 = arith.constant 0 : index
    %c0_57 = arith.constant 0 : index
    %c0_58 = arith.constant 0 : index
    %72 = vector.load %arg10[%c0_56, %c0_57, %c0_58] : memref<5x80x120xf32, #tpu.memory_space<vmem>>, vector<1x80x120xf32>
    %73 = vector.shape_cast %72 : vector<1x80x120xf32> to vector<80x120xf32>
    %cst_59 = arith.constant dense<0.000000e+00> : vector<1x120xf32>
    %74 = tpu.matmul %71, %73, %cst_59 {dimension_numbers = #tpu.dot_dimension_numbers<[1], [0], [0], [1], [0, 0, 1, 1], [], []>} : vector<1x80xf32>, vector<80x120xf32>, vector<1x120xf32> -> vector<1x120xf32>
    %75 = arith.addf %70, %74 : vector<1x120xf32>
    %76 = vector.extract_strided_slice %69 {offsets = [1, 0], sizes = [1, 80], strides = [1, 1]} : vector<5x80xf32> to vector<1x80xf32>
    %c1_60 = arith.constant 1 : index
    %c0_61 = arith.constant 0 : index
    %c0_62 = arith.constant 0 : index
    %77 = vector.load %arg10[%c1_60, %c0_61, %c0_62] : memref<5x80x120xf32, #tpu.memory_space<vmem>>, vector<1x80x120xf32>
    %78 = vector.shape_cast %77 : vector<1x80x120xf32> to vector<80x120xf32>
    %cst_63 = arith.constant dense<0.000000e+00> : vector<1x120xf32>
    %79 = tpu.matmul %76, %78, %cst_63 {dimension_numbers = #tpu.dot_dimension_numbers<[1], [0], [0], [1], [0, 0, 1, 1], [], []>} : vector<1x80xf32>, vector<80x120xf32>, vector<1x120xf32> -> vector<1x120xf32>
    %80 = arith.addf %75, %79 : vector<1x120xf32>
    %81 = vector.extract_strided_slice %69 {offsets = [2, 0], sizes = [1, 80], strides = [1, 1]} : vector<5x80xf32> to vector<1x80xf32>
    %c2_64 = arith.constant 2 : index
    %c0_65 = arith.constant 0 : index
    %c0_66 = arith.constant 0 : index
    %82 = vector.load %arg10[%c2_64, %c0_65, %c0_66] : memref<5x80x120xf32, #tpu.memory_space<vmem>>, vector<1x80x120xf32>
    %83 = vector.shape_cast %82 : vector<1x80x120xf32> to vector<80x120xf32>
    %cst_67 = arith.constant dense<0.000000e+00> : vector<1x120xf32>
    %84 = tpu.matmul %81, %83, %cst_67 {dimension_numbers = #tpu.dot_dimension_numbers<[1], [0], [0], [1], [0, 0, 1, 1], [], []>} : vector<1x80xf32>, vector<80x120xf32>, vector<1x120xf32> -> vector<1x120xf32>
    %85 = arith.addf %80, %84 : vector<1x120xf32>
    %86 = vector.extract_strided_slice %69 {offsets = [3, 0], sizes = [1, 80], strides = [1, 1]} : vector<5x80xf32> to vector<1x80xf32>
    %c3_68 = arith.constant 3 : index
    %c0_69 = arith.constant 0 : index
    %c0_70 = arith.constant 0 : index
    %87 = vector.load %arg10[%c3_68, %c0_69, %c0_70] : memref<5x80x120xf32, #tpu.memory_space<vmem>>, vector<1x80x120xf32>
    %88 = vector.shape_cast %87 : vector<1x80x120xf32> to vector<80x120xf32>
    %cst_71 = arith.constant dense<0.000000e+00> : vector<1x120xf32>
    %89 = tpu.matmul %86, %88, %cst_71 {dimension_numbers = #tpu.dot_dimension_numbers<[1], [0], [0], [1], [0, 0, 1, 1], [], []>} : vector<1x80xf32>, vector<80x120xf32>, vector<1x120xf32> -> vector<1x120xf32>
    %90 = arith.addf %85, %89 : vector<1x120xf32>
    %91 = vector.extract_strided_slice %69 {offsets = [4, 0], sizes = [1, 80], strides = [1, 1]} : vector<5x80xf32> to vector<1x80xf32>
    %c4_72 = arith.constant 4 : index
    %c0_73 = arith.constant 0 : index
    %c0_74 = arith.constant 0 : index
    %92 = vector.load %arg10[%c4_72, %c0_73, %c0_74] : memref<5x80x120xf32, #tpu.memory_space<vmem>>, vector<1x80x120xf32>
    %93 = vector.shape_cast %92 : vector<1x80x120xf32> to vector<80x120xf32>
    %cst_75 = arith.constant dense<0.000000e+00> : vector<1x120xf32>
    %94 = tpu.matmul %91, %93, %cst_75 {dimension_numbers = #tpu.dot_dimension_numbers<[1], [0], [0], [1], [0, 0, 1, 1], [], []>} : vector<1x80xf32>, vector<80x120xf32>, vector<1x120xf32> -> vector<1x120xf32>
    %95 = arith.addf %90, %94 : vector<1x120xf32>
    %c0_76 = arith.constant 0 : index
    %c0_77 = arith.constant 0 : index
    %96 = vector.load %arg11[%c0_76, %c0_77] : memref<1x120xf32, #tpu.memory_space<vmem>>, vector<1x120xf32>
    %97 = arith.addf %95, %96 : vector<1x120xf32>
    %98 = math.tanh %97 : vector<1x120xf32>
    %c0_78 = arith.constant 0 : index
    %c0_79 = arith.constant 0 : index
    %99 = vector.load %arg12[%c0_78, %c0_79] : memref<120x84xf32, #tpu.memory_space<vmem>>, vector<120x84xf32>
    %cst_80 = arith.constant dense<0.000000e+00> : vector<1x84xf32>
    %100 = tpu.matmul %98, %99, %cst_80 {dimension_numbers = #tpu.dot_dimension_numbers<[1], [0], [0], [1], [0, 0, 1, 1], [], []>} : vector<1x120xf32>, vector<120x84xf32>, vector<1x84xf32> -> vector<1x84xf32>
    %c0_81 = arith.constant 0 : index
    %c0_82 = arith.constant 0 : index
    %101 = vector.load %arg13[%c0_81, %c0_82] : memref<1x84xf32, #tpu.memory_space<vmem>>, vector<1x84xf32>
    %102 = arith.addf %100, %101 : vector<1x84xf32>
    %103 = math.tanh %102 : vector<1x84xf32>
    %c0_83 = arith.constant 0 : index
    %c0_84 = arith.constant 0 : index
    %104 = vector.load %arg14[%c0_83, %c0_84] : memref<84x10xf32, #tpu.memory_space<vmem>>, vector<84x10xf32>
    %cst_85 = arith.constant dense<0.000000e+00> : vector<1x10xf32>
    %105 = tpu.matmul %103, %104, %cst_85 {dimension_numbers = #tpu.dot_dimension_numbers<[1], [0], [0], [1], [0, 0, 1, 1], [], []>} : vector<1x84xf32>, vector<84x10xf32>, vector<1x10xf32> -> vector<1x10xf32>
    %c0_86 = arith.constant 0 : index
    %c0_87 = arith.constant 0 : index
    %106 = vector.load %arg15[%c0_86, %c0_87] : memref<1x10xf32, #tpu.memory_space<vmem>>, vector<1x10xf32>
    %107 = arith.addf %105, %106 : vector<1x10xf32>
    %c0_88 = arith.constant 0 : index
    %c0_89 = arith.constant 0 : index
    %c0_90 = arith.constant 0 : index
    %108 = vector.load %arg16[%c0_88, %c0_89, %c0_90] : memref<1x1x10xf32, #tpu.memory_space<vmem>>, vector<1x1x10xf32>
    %109 = vector.shape_cast %108 : vector<1x1x10xf32> to vector<1x10xf32>
    %110 = vector.shape_cast %107 : vector<1x10xf32> to vector<1x1x10xf32>
    tpu.vector_store %arg16[%c0_88, %c0_89, %c0_90], %110 {strides = array<i32>} : memref<1x1x10xf32, #tpu.memory_space<vmem>>, vector<1x1x10xf32>,
    %cst_91 = arith.constant dense<0xFF800000> : vector<1xf32>
    %111 = vector.multi_reduction <maximumf>, %107, %cst_91 [1] : vector<1x10xf32> to vector<1xf32>
    %112 = vector.shape_cast %111 : vector<1xf32> to vector<1x1xf32>
    %113 = vector.broadcast %112 : vector<1x1xf32> to vector<1x10xf32>
    %114 = arith.subf %107, %113 : vector<1x10xf32>
    %115 = math.exp %114 : vector<1x10xf32>
    %cst_92 = arith.constant dense<0.000000e+00> : vector<1xf32>
    %116 = vector.multi_reduction <add>, %115, %cst_92 [1] : vector<1x10xf32> to vector<1xf32>
    %117 = vector.shape_cast %116 : vector<1xf32> to vector<1x1xf32>
    %118 = tpu.reciprocal %117 : vector<1x1xf32> -> vector<1x1xf32>
    %119 = vector.broadcast %118 : vector<1x1xf32> to vector<1x10xf32>
    %120 = arith.mulf %115, %119 : vector<1x10xf32>
    %c0_93 = arith.constant 0 : index
    %c0_94 = arith.constant 0 : index
    %c0_95 = arith.constant 0 : index
    %121 = vector.load %arg17[%c0_93, %c0_94, %c0_95] : memref<1x1x10xf32, #tpu.memory_space<vmem>>, vector<1x1x10xf32>
    %122 = vector.shape_cast %121 : vector<1x1x10xf32> to vector<1x10xf32>
    %123 = vector.shape_cast %120 : vector<1x10xf32> to vector<1x1x10xf32>
    tpu.vector_store %arg17[%c0_93, %c0_94, %c0_95], %123 {strides = array<i32>} : memref<1x1x10xf32, #tpu.memory_space<vmem>>, vector<1x1x10xf32>,
    return
  }
  func.func @transform_0(%arg0: i32) -> (i32, i32, i32) {
    %c0_i32 = arith.constant 0 : i32
    %c0_i32_0 = arith.constant 0 : i32
    %c0_i32_1 = arith.constant 0 : i32
    return %arg0, %c0_i32, %c0_i32_0 : i32, i32, i32
  }
  func.func @transform_1(%arg0: i32) -> (i32, i32, i32) {
    %c0_i32 = arith.constant 0 : i32
    %c0_i32_0 = arith.constant 0 : i32
    %c0_i32_1 = arith.constant 0 : i32
    %c0_i32_2 = arith.constant 0 : i32
    return %c0_i32, %c0_i32_0, %c0_i32_1 : i32, i32, i32
  }
  func.func @transform_2(%arg0: i32) -> (i32, i32) {
    %c0_i32 = arith.constant 0 : i32
    %c0_i32_0 = arith.constant 0 : i32
    %c0_i32_1 = arith.constant 0 : i32
    return %c0_i32, %c0_i32_0 : i32, i32
  }
  func.func @transform_3(%arg0: i32) -> (i32, i32) {
    %c0_i32 = arith.constant 0 : i32
    %c0_i32_0 = arith.constant 0 : i32
    %c0_i32_1 = arith.constant 0 : i32
    return %c0_i32, %c0_i32_0 : i32, i32
  }
  func.func @transform_4(%arg0: i32) -> (i32, i32) {
    %c0_i32 = arith.constant 0 : i32
    %c0_i32_0 = arith.constant 0 : i32
    %c0_i32_1 = arith.constant 0 : i32
    return %c0_i32, %c0_i32_0 : i32, i32
  }
  func.func @transform_5(%arg0: i32) -> (i32, i32, i32) {
    %c0_i32 = arith.constant 0 : i32
    %c0_i32_0 = arith.constant 0 : i32
    %c0_i32_1 = arith.constant 0 : i32
    %c0_i32_2 = arith.constant 0 : i32
    return %c0_i32, %c0_i32_0, %c0_i32_1 : i32, i32, i32
  }
  func.func @transform_6(%arg0: i32) -> (i32, i32) {
    %c0_i32 = arith.constant 0 : i32
    %c0_i32_0 = arith.constant 0 : i32
    %c0_i32_1 = arith.constant 0 : i32
    return %c0_i32, %c0_i32_0 : i32, i32
  }
  func.func @transform_7(%arg0: i32) -> (i32, i32) {
    %c0_i32 = arith.constant 0 : i32
    %c0_i32_0 = arith.constant 0 : i32
    %c0_i32_1 = arith.constant 0 : i32
    return %c0_i32, %c0_i32_0 : i32, i32
  }
  func.func @transform_8(%arg0: i32) -> (i32, i32) {
    %c0_i32 = arith.constant 0 : i32
    %c0_i32_0 = arith.constant 0 : i32
    %c0_i32_1 = arith.constant 0 : i32
    return %c0_i32, %c0_i32_0 : i32, i32
  }
  func.func @transform_9(%arg0: i32) -> (i32, i32, i32) {
    %c0_i32 = arith.constant 0 : i32
    %c0_i32_0 = arith.constant 0 : i32
    %c0_i32_1 = arith.constant 0 : i32
    %c0_i32_2 = arith.constant 0 : i32
    return %c0_i32, %c0_i32_0, %c0_i32_1 : i32, i32, i32
  }
  func.func @transform_10(%arg0: i32) -> (i32, i32) {
    %c0_i32 = arith.constant 0 : i32
    %c0_i32_0 = arith.constant 0 : i32
    %c0_i32_1 = arith.constant 0 : i32
    return %c0_i32, %c0_i32_0 : i32, i32
  }
  func.func @transform_11(%arg0: i32) -> (i32, i32) {
    %c0_i32 = arith.constant 0 : i32
    %c0_i32_0 = arith.constant 0 : i32
    %c0_i32_1 = arith.constant 0 : i32
    return %c0_i32, %c0_i32_0 : i32, i32
  }
  func.func @transform_12(%arg0: i32) -> (i32, i32) {
    %c0_i32 = arith.constant 0 : i32
    %c0_i32_0 = arith.constant 0 : i32
    %c0_i32_1 = arith.constant 0 : i32
    return %c0_i32, %c0_i32_0 : i32, i32
  }
  func.func @transform_13(%arg0: i32) -> (i32, i32) {
    %c0_i32 = arith.constant 0 : i32
    %c0_i32_0 = arith.constant 0 : i32
    %c0_i32_1 = arith.constant 0 : i32
    return %c0_i32, %c0_i32_0 : i32, i32
  }
  func.func @transform_14(%arg0: i32) -> (i32, i32) {
    %c0_i32 = arith.constant 0 : i32
    %c0_i32_0 = arith.constant 0 : i32
    %c0_i32_1 = arith.constant 0 : i32
    return %c0_i32, %c0_i32_0 : i32, i32
  }
  func.func @transform_15(%arg0: i32) -> (i32, i32, i32) {
    %c0_i32 = arith.constant 0 : i32
    %c0_i32_0 = arith.constant 0 : i32
    %c0_i32_1 = arith.constant 0 : i32
    return %arg0, %c0_i32, %c0_i32_0 : i32, i32, i32
  }
  func.func @transform_16(%arg0: i32) -> (i32, i32, i32) {
    %c0_i32 = arith.constant 0 : i32
    %c0_i32_0 = arith.constant 0 : i32
    %c0_i32_1 = arith.constant 0 : i32
    return %arg0, %c0_i32, %c0_i32_0 : i32, i32, i32
  }
}

</mosaic_0001>

<llo_original>
// kernel: _lambda_.1
$region0: #{_lambda_.1}
  #allocation0 [shape = 'u32[]', space=smem, size = 0x4, offset = 0x4, fixed_abs, tag = 'smem constant byte address 0x4 - core index']
  #allocation1 [shape = 'u32[144,128]{1,0:T(1,128)}', space=vmem, size = 0x12000, scoped, tag = 'internal scratch']
  %s0 = inlined_call_operand.vmem [shape: f32[2,32,32], index: 0, kind: input, shape index: {}]
  %s1 = inlined_call_operand.vmem [shape: f32[5,32,168], index: 1, kind: input, shape index: {}]
  %s2 = inlined_call_operand.vmem [shape: f32[1,168], index: 2, kind: input, shape index: {}]
  %s3 = inlined_call_operand.vmem [shape: f32[14,28], index: 3, kind: input, shape index: {}]
  %s4 = inlined_call_operand.vmem [shape: f32[168,84], index: 4, kind: input, shape index: {}]
  %s5 = inlined_call_operand.vmem [shape: f32[5,84,160], index: 5, kind: input, shape index: {}]
  %s6 = inlined_call_operand.vmem [shape: f32[1,160], index: 6, kind: input, shape index: {}]
  %s7 = inlined_call_operand.vmem [shape: f32[5,10], index: 7, kind: input, shape index: {}]
  %s8 = inlined_call_operand.vmem [shape: f32[160,80], index: 8, kind: input, shape index: {}]
  %s9 = inlined_call_operand.vmem [shape: f32[5,80,120], index: 9, kind: input, shape index: {}]
  %s10 = inlined_call_operand.vmem [shape: f32[1,120], index: 10, kind: input, shape index: {}]
  %s11 = inlined_call_operand.vmem [shape: f32[120,84], index: 11, kind: input, shape index: {}]
  %s12 = inlined_call_operand.vmem [shape: f32[1,84], index: 12, kind: input, shape index: {}]
  %s13 = inlined_call_operand.vmem [shape: f32[84,10], index: 13, kind: input, shape index: {}]
  %s14 = inlined_call_operand.vmem [shape: f32[1,10], index: 14, kind: input, shape index: {}]
  %s15 = inlined_call_operand.hbm [shape: f32[2,1,10], index: 15, kind: output, shape index: {0}]
  %s16 = inlined_call_operand.hbm [shape: f32[2,1,10], index: 16, kind: output, shape index: {1}]
  %17 = xla_tuple %s15, %s16
  %s18 = sld [smem:[#allocation0]]
  $region101: #{_lambda_.1} parent=0
    _
  %s20 = ssub.s32 1, %s18
  %s21 = scalar_select 0, %s20, %s18
  $region1: #{_lambda_.1} parent=0
    #allocation2 [shape = 'u8[1024]{0}', space=vmem, size = 0x400, scoped, tag = 'output window, operand 0']
    #allocation3 [shape = 's32[2]{0}', space=sflag, size = 0x8, scoped, tag = 'scoped memory for _lambda_.1']
    #allocation4 [shape = 'u8[1024]{0}', space=vmem, size = 0x400, scoped, tag = 'output window, operand 1']
    #allocation5 [shape = 's32[2]{0}', space=sflag, size = 0x8, scoped, tag = 'scoped memory for _lambda_.1']
    %22 = vsyncpa [#allocation3], 0
    %s23 = scalar_lea.sflag [#allocation3], 1
    %24 = vsyncpa %s23, 0
    %25 = vsyncpa [#allocation5], 0
    %s26 = scalar_lea.sflag [#allocation5], 1
    %27 = vsyncpa %s26, 0
    loop: start=0, step=1, limit=4
    $region2: #{_lambda_.1} parent=1 // loop_pre_header
      _
    $region3: #{_lambda_.1} parent=1 // loop_header
      %s29 = sphi 0, %s33
      %p30 = scmp.ge.s32.totalorder %s29, 4
      %s39 = sphi 0, %s41
      %s42 = sphi 0, %s39
      %s43 = sphi 0, %s42
      %s59 = sphi 0, %s43
      %s63 = sphi 0, %s63
      %s65 = sphi 0, %s63
      %s66 = sphi 0, %s65
      %s80 = sphi 0, %s66
      %s84 = sphi 0, %s84
      %s86 = sphi 0, %s84
      %s87 = sphi 0, %s86
      %s101 = sphi 0, %s87
      %s105 = sphi 0, %s105
      %s107 = sphi 0, %s105
      %s108 = sphi 0, %s107
      %s122 = sphi 0, %s108
      %s126 = sphi 0, %s126
      %s128 = sphi 0, %s126
      %s129 = sphi 0, %s128
      %s143 = sphi 0, %s129
      %s147 = sphi 0, %s147
      %s149 = sphi 0, %s147
      %s150 = sphi 0, %s149
      %s164 = sphi 0, %s150
      %s168 = sphi 0, %s168
      %s170 = sphi 0, %s168
      %s171 = sphi 0, %s170
      %s185 = sphi 0, %s171
      %s189 = sphi 0, %s189
      %s191 = sphi 0, %s189
      %s192 = sphi 0, %s191
      %s206 = sphi 0, %s192
      %s210 = sphi 0, %s210
      %s212 = sphi 0, %s210
      %s213 = sphi 0, %s212
      %s227 = sphi 0, %s213
      %s231 = sphi 0, %s231
      %s233 = sphi 0, %s231
      %s234 = sphi 0, %s233
      %s248 = sphi 0, %s234
      %s252 = sphi 0, %s252
      %s254 = sphi 0, %s252
      %s255 = sphi 0, %s254
      %s269 = sphi 0, %s255
      %s273 = sphi 0, %s273
      %s275 = sphi 0, %s273
      %s276 = sphi 0, %s275
      %s290 = sphi 0, %s276
      %s294 = sphi 0, %s294
      %s296 = sphi 0, %s294
      %s297 = sphi 0, %s296
      %s311 = sphi 0, %s297
      %s315 = sphi 0, %s315
      %s317 = sphi 0, %s315
      %s318 = sphi 0, %s317
      %s332 = sphi 0, %s318
      %s336 = sphi 0, %s336
      %s338 = sphi 0, %s336
      %s339 = sphi 0, %s338
      %s353 = sphi 0, %s339
      %s359 = sphi 0, %s361
      %s362 = sphi 0, %s359
      %s363 = sphi 0, %s362
      %s379 = sphi 0, %s363
      %s385 = sphi 0, %s387
      %s388 = sphi 0, %s385
      %s389 = sphi 0, %s388
      %s405 = sphi 0, %s389
    $region4: #{_lambda_.1} parent=1 // loop_header_branch
      %32 = sbr.rel (%p30) target = $region8
    $region5: #{_lambda_.1} parent=1 // loop_body
      %s34 = ssub.s32 %s29, 1
      %s35 = ssub.s32 %s29, 2
      %s36 = sadd.s32 %s29, 1
      %s37 = ssub.s32 %s29, %s36
      %p38 = scmp.eq.s32.totalorder %s37, 0
      %s40 = sadd.s32 %s39, 1
      %s41 = scalar_select %p38, %s39, %s40
      %p44 = pneg %p38
      %p45 = scmp.eq.s32.totalorder %s29, 1
      %p46 = por %p44, %p45
      %p47 = scmp.ne.s32.totalorder %s39, %s42
      %p48 = scmp.eq.s32.totalorder %s29, 0
      %p49 = por %p47, %p48
      %p50 = scmp.ne.s32.totalorder %s39, %s42
      %p51 = scmp.eq.s32.totalorder %s34, 1
      %p52 = por %p50, %p51
      %p53 = scmp.ne.s32.totalorder %s42, %s43
      %p54 = scmp.eq.s32.totalorder %s34, 0
      %p55 = por %p53, %p54
      %p56 = scmp.ne.s32.totalorder %s42, %s43
      %p57 = scmp.eq.s32.totalorder %s35, 1
      %p58 = por %p56, %p57
      %p60 = scmp.ne.s32.totalorder %s43, %s59
      %p61 = scmp.eq.s32.totalorder %s35, 0
      %p62 = por %p60, %p61
      %s64 = sadd.s32 %s63, 1
      %p67 = scmp.eq.s32.totalorder %s29, 1
      %p68 = scmp.ne.s32.totalorder %s63, %s65
      %p69 = scmp.eq.s32.totalorder %s29, 0
      %p70 = por %p68, %p69
      %p71 = scmp.ne.s32.totalorder %s63, %s65
      %p72 = scmp.eq.s32.totalorder %s34, 1
      %p73 = por %p71, %p72
      %p74 = scmp.ne.s32.totalorder %s65, %s66
      %p75 = scmp.eq.s32.totalorder %s34, 0
      %p76 = por %p74, %p75
      %p77 = scmp.ne.s32.totalorder %s65, %s66
      %p78 = scmp.eq.s32.totalorder %s35, 1
      %p79 = por %p77, %p78
      %p81 = scmp.ne.s32.totalorder %s66, %s80
      %p82 = scmp.eq.s32.totalorder %s35, 0
      %p83 = por %p81, %p82
      %s85 = sadd.s32 %s84, 1
      %p88 = scmp.eq.s32.totalorder %s29, 1
      %p89 = scmp.ne.s32.totalorder %s84, %s86
      %p90 = scmp.eq.s32.totalorder %s29, 0
      %p91 = por %p89, %p90
      %p92 = scmp.ne.s32.totalorder %s84, %s86
      %p93 = scmp.eq.s32.totalorder %s34, 1
      %p94 = por %p92, %p93
      %p95 = scmp.ne.s32.totalorder %s86, %s87
      %p96 = scmp.eq.s32.totalorder %s34, 0
      %p97 = por %p95, %p96
      %p98 = scmp.ne.s32.totalorder %s86, %s87
      %p99 = scmp.eq.s32.totalorder %s35, 1
      %p100 = por %p98, %p99
      %p102 = scmp.ne.s32.totalorder %s87, %s101
      %p103 = scmp.eq.s32.totalorder %s35, 0
      %p104 = por %p102, %p103
      %s106 = sadd.s32 %s105, 1
      %p109 = scmp.eq.s32.totalorder %s29, 1
      %p110 = scmp.ne.s32.totalorder %s105, %s107
      %p111 = scmp.eq.s32.totalorder %s29, 0
      %p112 = por %p110, %p111
      %p113 = scmp.ne.s32.totalorder %s105, %s107
      %p114 = scmp.eq.s32.totalorder %s34, 1
      %p115 = por %p113, %p114
      %p116 = scmp.ne.s32.totalorder %s107, %s108
      %p117 = scmp.eq.s32.totalorder %s34, 0
      %p118 = por %p116, %p117
      %p119 = scmp.ne.s32.totalorder %s107, %s108
      %p120 = scmp.eq.s32.totalorder %s35, 1
      %p121 = por %p119, %p120
      %p123 = scmp.ne.s32.totalorder %s108, %s122
      %p124 = scmp.eq.s32.totalorder %s35, 0
      %p125 = por %p123, %p124
      %s127 = sadd.s32 %s126, 1
      %p130 = scmp.eq.s32.totalorder %s29, 1
      %p131 = scmp.ne.s32.totalorder %s126, %s128
      %p132 = scmp.eq.s32.totalorder %s29, 0
      %p133 = por %p131, %p132
      %p134 = scmp.ne.s32.totalorder %s126, %s128
      %p135 = scmp.eq.s32.totalorder %s34, 1
      %p136 = por %p134, %p135
      %p137 = scmp.ne.s32.totalorder %s128, %s129
      %p138 = scmp.eq.s32.totalorder %s34, 0
      %p139 = por %p137, %p138
      %p140 = scmp.ne.s32.totalorder %s128, %s129
      %p141 = scmp.eq.s32.totalorder %s35, 1
      %p142 = por %p140, %p141
      %p144 = scmp.ne.s32.totalorder %s129, %s143
      %p145 = scmp.eq.s32.totalorder %s35, 0
      %p146 = por %p144, %p145
      %s148 = sadd.s32 %s147, 1
      %p151 = scmp.eq.s32.totalorder %s29, 1
      %p152 = scmp.ne.s32.totalorder %s147, %s149
      %p153 = scmp.eq.s32.totalorder %s29, 0
      %p154 = por %p152, %p153
      %p155 = scmp.ne.s32.totalorder %s147, %s149
      %p156 = scmp.eq.s32.totalorder %s34, 1
      %p157 = por %p155, %p156
      %p158 = scmp.ne.s32.totalorder %s149, %s150
      %p159 = scmp.eq.s32.totalorder %s34, 0
      %p160 = por %p158, %p159
      %p161 = scmp.ne.s32.totalorder %s149, %s150
      %p162 = scmp.eq.s32.totalorder %s35, 1
      %p163 = por %p161, %p162
      %p165 = scmp.ne.s32.totalorder %s150, %s164
      %p166 = scmp.eq.s32.totalorder %s35, 0
      %p167 = por %p165, %p166
      %s169 = sadd.s32 %s168, 1
      %p172 = scmp.eq.s32.totalorder %s29, 1
      %p173 = scmp.ne.s32.totalorder %s168, %s170
      %p174 = scmp.eq.s32.totalorder %s29, 0
      %p175 = por %p173, %p174
      %p176 = scmp.ne.s32.totalorder %s168, %s170
      %p177 = scmp.eq.s32.totalorder %s34, 1
      %p178 = por %p176, %p177
      %p179 = scmp.ne.s32.totalorder %s170, %s171
      %p180 = scmp.eq.s32.totalorder %s34, 0
      %p181 = por %p179, %p180
      %p182 = scmp.ne.s32.totalorder %s170, %s171
      %p183 = scmp.eq.s32.totalorder %s35, 1
      %p184 = por %p182, %p183
      %p186 = scmp.ne.s32.totalorder %s171, %s185
      %p187 = scmp.eq.s32.totalorder %s35, 0
      %p188 = por %p186, %p187
      %s190 = sadd.s32 %s189, 1
      %p193 = scmp.eq.s32.totalorder %s29, 1
      %p194 = scmp.ne.s32.totalorder %s189, %s191
      %p195 = scmp.eq.s32.totalorder %s29, 0
      %p196 = por %p194, %p195
      %p197 = scmp.ne.s32.totalorder %s189, %s191
      %p198 = scmp.eq.s32.totalorder %s34, 1
      %p199 = por %p197, %p198
      %p200 = scmp.ne.s32.totalorder %s191, %s192
      %p201 = scmp.eq.s32.totalorder %s34, 0
      %p202 = por %p200, %p201
      %p203 = scmp.ne.s32.totalorder %s191, %s192
      %p204 = scmp.eq.s32.totalorder %s35, 1
      %p205 = por %p203, %p204
      %p207 = scmp.ne.s32.totalorder %s192, %s206
      %p208 = scmp.eq.s32.totalorder %s35, 0
      %p209 = por %p207, %p208
      %s211 = sadd.s32 %s210, 1
      %p214 = scmp.eq.s32.totalorder %s29, 1
      %p215 = scmp.ne.s32.totalorder %s210, %s212
      %p216 = scmp.eq.s32.totalorder %s29, 0
      %p217 = por %p215, %p216
      %p218 = scmp.ne.s32.totalorder %s210, %s212
      %p219 = scmp.eq.s32.totalorder %s34, 1
      %p220 = por %p218, %p219
      %p221 = scmp.ne.s32.totalorder %s212, %s213
      %p222 = scmp.eq.s32.totalorder %s34, 0
      %p223 = por %p221, %p222
      %p224 = scmp.ne.s32.totalorder %s212, %s213
      %p225 = scmp.eq.s32.totalorder %s35, 1
      %p226 = por %p224, %p225
      %p228 = scmp.ne.s32.totalorder %s213, %s227
      %p229 = scmp.eq.s32.totalorder %s35, 0
      %p230 = por %p228, %p229
      %s232 = sadd.s32 %s231, 1
      %p235 = scmp.eq.s32.totalorder %s29, 1
      %p236 = scmp.ne.s32.totalorder %s231, %s233
      %p237 = scmp.eq.s32.totalorder %s29, 0
      %p238 = por %p236, %p237
      %p239 = scmp.ne.s32.totalorder %s231, %s233
      %p240 = scmp.eq.s32.totalorder %s34, 1
      %p241 = por %p239, %p240
      %p242 = scmp.ne.s32.totalorder %s233, %s234
      %p243 = scmp.eq.s32.totalorder %s34, 0
      %p244 = por %p242, %p243
      %p245 = scmp.ne.s32.totalorder %s233, %s234
      %p246 = scmp.eq.s32.totalorder %s35, 1
      %p247 = por %p245, %p246
      %p249 = scmp.ne.s32.totalorder %s234, %s248
      %p250 = scmp.eq.s32.totalorder %s35, 0
      %p251 = por %p249, %p250
      %s253 = sadd.s32 %s252, 1
      %p256 = scmp.eq.s32.totalorder %s29, 1
      %p257 = scmp.ne.s32.totalorder %s252, %s254
      %p258 = scmp.eq.s32.totalorder %s29, 0
      %p259 = por %p257, %p258
      %p260 = scmp.ne.s32.totalorder %s252, %s254
      %p261 = scmp.eq.s32.totalorder %s34, 1
      %p262 = por %p260, %p261
      %p263 = scmp.ne.s32.totalorder %s254, %s255
      %p264 = scmp.eq.s32.totalorder %s34, 0
      %p265 = por %p263, %p264
      %p266 = scmp.ne.s32.totalorder %s254, %s255
      %p267 = scmp.eq.s32.totalorder %s35, 1
      %p268 = por %p266, %p267
      %p270 = scmp.ne.s32.totalorder %s255, %s269
      %p271 = scmp.eq.s32.totalorder %s35, 0
      %p272 = por %p270, %p271
      %s274 = sadd.s32 %s273, 1
      %p277 = scmp.eq.s32.totalorder %s29, 1
      %p278 = scmp.ne.s32.totalorder %s273, %s275
      %p279 = scmp.eq.s32.totalorder %s29, 0
      %p280 = por %p278, %p279
      %p281 = scmp.ne.s32.totalorder %s273, %s275
      %p282 = scmp.eq.s32.totalorder %s34, 1
      %p283 = por %p281, %p282
      %p284 = scmp.ne.s32.totalorder %s275, %s276
      %p285 = scmp.eq.s32.totalorder %s34, 0
      %p286 = por %p284, %p285
      %p287 = scmp.ne.s32.totalorder %s275, %s276
      %p288 = scmp.eq.s32.totalorder %s35, 1
      %p289 = por %p287, %p288
      %p291 = scmp.ne.s32.totalorder %s276, %s290
      %p292 = scmp.eq.s32.totalorder %s35, 0
      %p293 = por %p291, %p292
      %s295 = sadd.s32 %s294, 1
      %p298 = scmp.eq.s32.totalorder %s29, 1
      %p299 = scmp.ne.s32.totalorder %s294, %s296
      %p300 = scmp.eq.s32.totalorder %s29, 0
      %p301 = por %p299, %p300
      %p302 = scmp.ne.s32.totalorder %s294, %s296
      %p303 = scmp.eq.s32.totalorder %s34, 1
      %p304 = por %p302, %p303
      %p305 = scmp.ne.s32.totalorder %s296, %s297
      %p306 = scmp.eq.s32.totalorder %s34, 0
      %p307 = por %p305, %p306
      %p308 = scmp.ne.s32.totalorder %s296, %s297
      %p309 = scmp.eq.s32.totalorder %s35, 1
      %p310 = por %p308, %p309
      %p312 = scmp.ne.s32.totalorder %s297, %s311
      %p313 = scmp.eq.s32.totalorder %s35, 0
      %p314 = por %p312, %p313
      %s316 = sadd.s32 %s315, 1
      %p319 = scmp.eq.s32.totalorder %s29, 1
      %p320 = scmp.ne.s32.totalorder %s315, %s317
      %p321 = scmp.eq.s32.totalorder %s29, 0
      %p322 = por %p320, %p321
      %p323 = scmp.ne.s32.totalorder %s315, %s317
      %p324 = scmp.eq.s32.totalorder %s34, 1
      %p325 = por %p323, %p324
      %p326 = scmp.ne.s32.totalorder %s317, %s318
      %p327 = scmp.eq.s32.totalorder %s34, 0
      %p328 = por %p326, %p327
      %p329 = scmp.ne.s32.totalorder %s317, %s318
      %p330 = scmp.eq.s32.totalorder %s35, 1
      %p331 = por %p329, %p330
      %p333 = scmp.ne.s32.totalorder %s318, %s332
      %p334 = scmp.eq.s32.totalorder %s35, 0
      %p335 = por %p333, %p334
      %s337 = sadd.s32 %s336, 1
      %p340 = scmp.eq.s32.totalorder %s29, 1
      %p341 = scmp.ne.s32.totalorder %s336, %s338
      %p342 = scmp.eq.s32.totalorder %s29, 0
      %p343 = por %p341, %p342
      %p344 = scmp.ne.s32.totalorder %s336, %s338
      %p345 = scmp.eq.s32.totalorder %s34, 1
      %p346 = por %p344, %p345
      %p347 = scmp.ne.s32.totalorder %s338, %s339
      %p348 = scmp.eq.s32.totalorder %s34, 0
      %p349 = por %p347, %p348
      %p350 = scmp.ne.s32.totalorder %s338, %s339
      %p351 = scmp.eq.s32.totalorder %s35, 1
      %p352 = por %p350, %p351
      %p354 = scmp.ne.s32.totalorder %s339, %s353
      %p355 = scmp.eq.s32.totalorder %s35, 0
      %p356 = por %p354, %p355
      %s357 = ssub.s32 %s29, %s36
      %p358 = scmp.eq.s32.totalorder %s357, 0
      %s360 = sadd.s32 %s359, 1
      %s361 = scalar_select %p358, %s359, %s360
      %p364 = pneg %p358
      %p365 = scmp.eq.s32.totalorder %s29, 1
      %p366 = por %p364, %p365
      %p367 = scmp.ne.s32.totalorder %s359, %s362
      %p368 = scmp.eq.s32.totalorder %s29, 0
      %p369 = por %p367, %p368
      %p370 = scmp.ne.s32.totalorder %s359, %s362
      %p371 = scmp.eq.s32.totalorder %s34, 1
      %p372 = por %p370, %p371
      %p373 = scmp.ne.s32.totalorder %s362, %s363
      %p374 = scmp.eq.s32.totalorder %s34, 0
      %p375 = por %p373, %p374
      %p376 = scmp.ne.s32.totalorder %s362, %s363
      %p377 = scmp.eq.s32.totalorder %s35, 1
      %p378 = por %p376, %p377
      %p380 = scmp.ne.s32.totalorder %s363, %s379
      %p381 = scmp.eq.s32.totalorder %s35, 0
      %p382 = por %p380, %p381
      %s383 = ssub.s32 %s29, %s36
      %p384 = scmp.eq.s32.totalorder %s383, 0
      %s386 = sadd.s32 %s385, 1
      %s387 = scalar_select %p384, %s385, %s386
      %p390 = pneg %p384
      %p391 = scmp.eq.s32.totalorder %s29, 1
      %p392 = por %p390, %p391
      %p393 = scmp.ne.s32.totalorder %s385, %s388
      %p394 = scmp.eq.s32.totalorder %s29, 0
      %p395 = por %p393, %p394
      %p396 = scmp.ne.s32.totalorder %s385, %s388
      %p397 = scmp.eq.s32.totalorder %s34, 1
      %p398 = por %p396, %p397
      %p399 = scmp.ne.s32.totalorder %s388, %s389
      %p400 = scmp.eq.s32.totalorder %s34, 0
      %p401 = por %p399, %p400
      %p402 = scmp.ne.s32.totalorder %s388, %s389
      %p403 = scmp.eq.s32.totalorder %s35, 1
      %p404 = por %p402, %p403
      %p406 = scmp.ne.s32.totalorder %s389, %s405
      %p407 = scmp.eq.s32.totalorder %s35, 0
      %p408 = por %p406, %p407
      %p409 = scmp.le.s32.totalorder 1, %s29
      %p410 = scmp.lt.s32.totalorder %s29, 3
      %p411 = pnand %p409, %p410
      %p412 = pneg %p411
      // Predicated region
      $region9: #{_lambda_.1} parent=5 // pred_check
        _
      $region10: #{_lambda_.1} parent=5 // pred_check_branch
        %414 = sbr.rel (%p411) target = $region12
      $region11: #{_lambda_.1} parent=5 // pred_region
        %s415 = ssub.s32 %s29, 1
        // Predicated region
        $region13: #{_lambda_.1} parent=11 // pred_check
          %p416 = pneg %p76
        $region14: #{_lambda_.1} parent=11 // pred_check_branch
          %418 = sbr.rel (%p416) target = $region16
        $region15: #{_lambda_.1} parent=11 // pred_region
          _
        $region16: #{_lambda_.1} parent=11 // pred_fallthru
          _
        // Predicated region
        $region17: #{_lambda_.1} parent=11 // pred_check
          %p419 = pneg %p97
        $region18: #{_lambda_.1} parent=11 // pred_check_branch
          %421 = sbr.rel (%p419) target = $region20
        $region19: #{_lambda_.1} parent=11 // pred_region
          _
        $region20: #{_lambda_.1} parent=11 // pred_fallthru
          _
        // Predicated region
        $region21: #{_lambda_.1} parent=11 // pred_check
          %p422 = pneg %p118
        $region22: #{_lambda_.1} parent=11 // pred_check_branch
          %424 = sbr.rel (%p422) target = $region24
        $region23: #{_lambda_.1} parent=11 // pred_region
          _
        $region24: #{_lambda_.1} parent=11 // pred_fallthru
          _
        // Predicated region
        $region25: #{_lambda_.1} parent=11 // pred_check
          %p425 = pneg %p139
        $region26: #{_lambda_.1} parent=11 // pred_check_branch
          %427 = sbr.rel (%p425) target = $region28
        $region27: #{_lambda_.1} parent=11 // pred_region
          _
        $region28: #{_lambda_.1} parent=11 // pred_fallthru
          _
        // Predicated region
        $region29: #{_lambda_.1} parent=11 // pred_check
          %p428 = pneg %p160
        $region30: #{_lambda_.1} parent=11 // pred_check_branch
          %430 = sbr.rel (%p428) target = $region32
        $region31: #{_lambda_.1} parent=11 // pred_region
          _
        $region32: #{_lambda_.1} parent=11 // pred_fallthru
          _
        // Predicated region
        $region33: #{_lambda_.1} parent=11 // pred_check
          %p431 = pneg %p181
        $region34: #{_lambda_.1} parent=11 // pred_check_branch
          %433 = sbr.rel (%p431) target = $region36
        $region35: #{_lambda_.1} parent=11 // pred_region
          _
        $region36: #{_lambda_.1} parent=11 // pred_fallthru
          _
        // Predicated region
        $region37: #{_lambda_.1} parent=11 // pred_check
          %p434 = pneg %p202
        $region38: #{_lambda_.1} parent=11 // pred_check_branch
          %436 = sbr.rel (%p434) target = $region40
        $region39: #{_lambda_.1} parent=11 // pred_region
          _
        $region40: #{_lambda_.1} parent=11 // pred_fallthru
          _
        // Predicated region
        $region41: #{_lambda_.1} parent=11 // pred_check
          %p437 = pneg %p223
        $region42: #{_lambda_.1} parent=11 // pred_check_branch
          %439 = sbr.rel (%p437) target = $region44
        $region43: #{_lambda_.1} parent=11 // pred_region
          _
        $region44: #{_lambda_.1} parent=11 // pred_fallthru
          _
        // Predicated region
        $region45: #{_lambda_.1} parent=11 // pred_check
          %p440 = pneg %p244
        $region46: #{_lambda_.1} parent=11 // pred_check_branch
          %442 = sbr.rel (%p440) target = $region48
        $region47: #{_lambda_.1} parent=11 // pred_region
          _
        $region48: #{_lambda_.1} parent=11 // pred_fallthru
          _
        // Predicated region
        $region49: #{_lambda_.1} parent=11 // pred_check
          %p443 = pneg %p265
        $region50: #{_lambda_.1} parent=11 // pred_check_branch
          %445 = sbr.rel (%p443) target = $region52
        $region51: #{_lambda_.1} parent=11 // pred_region
          _
        $region52: #{_lambda_.1} parent=11 // pred_fallthru
          _
        // Predicated region
        $region53: #{_lambda_.1} parent=11 // pred_check
          %p446 = pneg %p286
        $region54: #{_lambda_.1} parent=11 // pred_check_branch
          %448 = sbr.rel (%p446) target = $region56
        $region55: #{_lambda_.1} parent=11 // pred_region
          _
        $region56: #{_lambda_.1} parent=11 // pred_fallthru
          _
        // Predicated region
        $region57: #{_lambda_.1} parent=11 // pred_check
          %p449 = pneg %p307
        $region58: #{_lambda_.1} parent=11 // pred_check_branch
          %451 = sbr.rel (%p449) target = $region60
        $region59: #{_lambda_.1} parent=11 // pred_region
          _
        $region60: #{_lambda_.1} parent=11 // pred_fallthru
          _
        // Predicated region
        $region61: #{_lambda_.1} parent=11 // pred_check
          %p452 = pneg %p328
        $region62: #{_lambda_.1} parent=11 // pred_check_branch
          %454 = sbr.rel (%p452) target = $region64
        $region63: #{_lambda_.1} parent=11 // pred_region
          _
        $region64: #{_lambda_.1} parent=11 // pred_fallthru
          _
        // Predicated region
        $region65: #{_lambda_.1} parent=11 // pred_check
          %p455 = pneg %p349
        $region66: #{_lambda_.1} parent=11 // pred_check_branch
          %457 = sbr.rel (%p455) target = $region68
        $region67: #{_lambda_.1} parent=11 // pred_region
          _
        $region68: #{_lambda_.1} parent=11 // pred_fallthru
          _
      $region12: #{_lambda_.1} parent=5 // pred_fallthru
        _
      %p458 = scmp.lt.s32.totalorder %s29, 2
      // Predicated region
      $region69: #{_lambda_.1} parent=5 // pred_check
        %p459 = pneg %p458
      $region70: #{_lambda_.1} parent=5 // pred_check_branch
        %461 = sbr.rel (%p459) target = $region72
      $region71: #{_lambda_.1} parent=5 // pred_region
        // Predicated region
        $region73: #{_lambda_.1} parent=71 // pred_check
          %p462 = pneg %p49
        $region74: #{_lambda_.1} parent=71 // pred_check_branch
          %464 = sbr.rel (%p462) target = $region76
        $region75: #{_lambda_.1} parent=71 // pred_region
          %p465 = scmp.lt.s32.totalorder %s29, 1
          %s466 = scalar_select %p465, %s29, 1
          %s467 = smul.addr %s466, 4
          %s468 = smul.addr %s467, 8
          %s469 = scalar_lea.vmem %s0, %s468
        $region76: #{_lambda_.1} parent=71 // pred_fallthru
          _
      $region72: #{_lambda_.1} parent=5 // pred_fallthru
        _
      %p470 = scmp.le.s32.totalorder 1, %s29
      %p471 = scmp.lt.s32.totalorder %s29, 3
      %p472 = pnand %p470, %p471
      %p473 = pneg %p472
      // Predicated region
      $region77: #{_lambda_.1} parent=5 // pred_check
        _
      $region78: #{_lambda_.1} parent=5 // pred_check_branch
        %475 = sbr.rel (%p472) target = $region80
      $region79: #{_lambda_.1} parent=5 // pred_region
        %s476 = ssub.s32 %s29, 1
        %p477 = scmp.lt.s32.totalorder %s34, 1
        %s478 = scalar_select %p477, %s34, 1
        %s479 = smul.addr %s478, 4
        %s480 = smul.addr %s479, 8
        %s481 = scalar_lea.vmem %s0, %s480
        %p482 = pneg %p55
        %p483 = pneg %p52
        %p484 = pneg %p76
        %p485 = pneg %p73
        %p486 = pneg %p97
        %p487 = pneg %p94
        %p488 = pneg %p118
        %p489 = pneg %p115
        %p490 = pneg %p139
        %p491 = pneg %p136
        %p492 = pneg %p160
        %p493 = pneg %p157
        %p494 = pneg %p181
        %p495 = pneg %p178
        %p496 = pneg %p202
        %p497 = pneg %p199
        %p498 = pneg %p223
        %p499 = pneg %p220
        %p500 = pneg %p244
        %p501 = pneg %p241
        %p502 = pneg %p265
        %p503 = pneg %p262
        %p504 = pneg %p286
        %p505 = pneg %p283
        %p506 = pneg %p307
        %p507 = pneg %p304
        %p508 = pneg %p328
        %p509 = pneg %p325
        %p510 = pneg %p349
        %p511 = pneg %p346
        %p512 = pneg %p375
        %p513 = pneg %p372
        %s514 = sand.u32 %s362, 1
        %s515 = scalar_lea.sflag [#allocation3], %s514
        %s516 = sand.u32 %s362, 1
        %s517 = scalar_lea.vmem [#allocation2], %s516
        %p518 = pneg %p401
        %p519 = pneg %p398
        %s520 = sand.u32 %s388, 1
        %s521 = scalar_lea.sflag [#allocation5], %s520
        %s522 = sand.u32 %s388, 1
        %s523 = scalar_lea.vmem [#allocation4], %s522
        %p524 = scmp.lt.s32.totalorder %s34, 1
        %s525 = scalar_select %p524, %s34, 1
        %s526 = smul.addr %s525, 4
        %s527 = smul.addr %s526, 8
        %s528 = scalar_lea.vmem %s0, %s527
        %v529 = vld [vmem:[%s528] sm:$0xff]
        %v530 = vld [vmem:[%s528 + $0x8] sm:$0xff]
        %v531 = vld [vmem:[%s528 + $0x10] sm:$0xff]
        %v532 = vld [vmem:[%s528 + $0x18] sm:$0xff]
        %v533 = vld [vmem:[%s1] sm:$0xff]
        %v534 = vld [vmem:[%s1 + $0x8] sm:$0xff]
        %v535 = vld [vmem:[%s1 + $0x10] sm:$0xff]
        %v536 = vld [vmem:[%s1 + $0x18] sm:$0xff]
        %v537 = vld [vmem:[%s1 + $0x20] sm:$0xff]
        %v538 = vld [vmem:[%s1 + $0x28] sm:$0xff]
        %v539 = vld [vmem:[%s1 + $0x30] sm:$0xff]
        %v540 = vld [vmem:[%s1 + $0x38] sm:$0xff]
        %s541 = scalar_lea.vmem %s1, 64
        %v542 = vld [vmem:[%s541] sm:$0xff]
        %v543 = vld [vmem:[%s541 + $0x8] sm:$0xff]
        %v544 = vld [vmem:[%s541 + $0x10] sm:$0xff]
        %v545 = vld [vmem:[%s541 + $0x18] sm:$0xff]
        %v546 = vld [vmem:[%s541 + $0x20] sm:$0xff]
        %v547 = vld [vmem:[%s541 + $0x28] sm:$0xff]
        %v548 = vld [vmem:[%s541 + $0x30] sm:$0xff]
        %v549 = vld [vmem:[%s541 + $0x38] sm:$0xff]
        %vm554 = vcmask 1046528
        %v555 = vrot.slane %v529, 1
        %v556 = vrot.slane %v530, 1
        %v557 = vsel %vm554, %v555, %v556
        %v558 = vrot.slane %v531, 1
        %v559 = vsel %vm554, %v556, %v558
        %v560 = vrot.slane %v532, 1
        %v561 = vsel %vm554, %v558, %v560
        %vm562 = vcmask 261120
        %v563 = vsel %vm562, %v557, 0
        %v565 = vsel %vm562, %v559, 0
        %v567 = vsel %vm562, %v561, 0
        %v569 = vsel %vm562, %v560, 0
        %571 = vmatprep.subr.mxu0 0.0
        %572 = vmatpush1.msra.mxu0 0.0
        %573 = vmatprep.subr.mxu0 0.0
        %574 = vmatpush1.msra.mxu0 0.0
        %575 = vmatprep.subr.mxu0 0.0
        %576 = vmatpush1.msra.mxu0 0.0
        %577 = vmatprep.subr.mxu0 0.0
        %578 = vmatpush1.msra.mxu0 0.0
        %579 = vmatprep.subr.mxu0 0.0
        %580 = vmatpush1.msra.mxu0 0.0
        %581 = vmatprep.subr.mxu0 0.0
        %582 = vmatpush1.msra.mxu0 0.0
        %583 = vmatprep.subr.mxu0 0.0
        %584 = vmatpush1.msra.mxu0 0.0
        %585 = vmatprep.subr.mxu0 0.0
        %586 = vmatpush1.msra.mxu0 0.0
        %587 = vmatprep.subr.mxu0 0.0
        %588 = vmatpush1.msra.mxu0 0.0
        %589 = vmatprep.subr.mxu0 0.0
        %590 = vmatpush1.msra.mxu0 0.0
        %591 = vmatprep.subr.mxu0 0.0
        %592 = vmatpush1.msra.mxu0 0.0
        %593 = vmatprep.subr.mxu0 0.0
        %594 = vmatpush1.msra.mxu0 0.0
        %595 = vmatprep.subr.mxu0 %v549
        %596 = vmatpush1.msra.mxu0 %v548
        %597 = vmatprep.subr.mxu0 %v547
        %598 = vmatpush1.msra.mxu0 %v546
        %599 = vmatprep.subr.mxu0 %v545
        %600 = vmatpush1.msra.mxu0 %v544
        %601 = vmatprep.subr.mxu0 %v543
        %602 = vmatpush1.msra.mxu0 %v542
        %603 = vmatprep.subr.mxu0 0.0
        %604 = vmatpush2.msra.mxu0 0.0
        %605 = vmatprep.subr.mxu0 0.0
        %606 = vmatpush2.msra.mxu0 0.0
        %607 = vmatprep.subr.mxu0 0.0
        %608 = vmatpush2.msra.mxu0 0.0
        %609 = vmatprep.subr.mxu0 0.0
        %610 = vmatpush2.msra.mxu0 0.0
        %611 = vmatprep.subr.mxu0 0.0
        %612 = vmatpush2.msra.mxu0 0.0
        %613 = vmatprep.subr.mxu0 0.0
        %614 = vmatpush2.msra.mxu0 0.0
        %615 = vmatprep.subr.mxu0 0.0
        %616 = vmatpush2.msra.mxu0 0.0
        %617 = vmatprep.subr.mxu0 0.0
        %618 = vmatpush2.msra.mxu0 0.0
        %619 = vmatprep.subr.mxu0 0.0
        %620 = vmatpush2.msra.mxu0 0.0
        %621 = vmatprep.subr.mxu0 0.0
        %622 = vmatpush2.msra.mxu0 0.0
        %623 = vmatprep.subr.mxu0 0.0
        %624 = vmatpush2.msra.mxu0 0.0
        %625 = vmatprep.subr.mxu0 0.0
        %626 = vmatpush2.msra.mxu0 0.0
        %627 = vmatprep.subr.mxu0 0.0
        %628 = vmatpush2.msra.mxu0 0.0
        %629 = vmatprep.subr.mxu0 0.0
        %630 = vmatpush2.msra.mxu0 0.0
        %631 = vmatprep.subr.mxu0 0.0
        %632 = vmatpush2.msra.mxu0 0.0
        %633 = vmatprep.subr.mxu0 0.0
        %634 = vmatpush2.msra.mxu0 0.0
        %635 = vmatprep.mubr.f32.mxu0 0.0
        %636 = vmatmul.mubr.f32.gmra.mxu0 %v563
        %v637 = vpop.f32.mrf.mxu0
        %v638 = vadd.f32 0.0, %v637
        %v639 = vpop.f32.mrf.mxu0
        %v640 = vadd.f32 0.0, %v639
        %641 = vmatprep.mubr.f32.mxu0 0.0
        %642 = vmatmul.mubr.f32.gmra.mxu0 %v565
        %v643 = vpop.f32.mrf.mxu0
        %v644 = vadd.f32 0.0, %v643
        %v645 = vpop.f32.mrf.mxu0
        %v646 = vadd.f32 0.0, %v645
        %647 = vmatprep.mubr.f32.mxu0 0.0
        %648 = vmatmul.mubr.f32.gmra.mxu0 %v567
        %v649 = vpop.f32.mrf.mxu0
        %v650 = vadd.f32 0.0, %v649
        %v651 = vpop.f32.mrf.mxu0
        %v652 = vadd.f32 0.0, %v651
        %653 = vmatprep.mubr.f32.mxu0 0.0
        %654 = vmatmul.mubr.f32.gmra.mxu0 %v569
        %v655 = vpop.f32.mrf.mxu0
        %v656 = vadd.f32 0.0, %v655
        %v657 = vpop.f32.mrf.mxu0
        %v658 = vadd.f32 0.0, %v657
        %659 = vdwg.mxu0
        %v660 = vsel %vm562, %v529, 0
        %v662 = vsel %vm562, %v530, 0
        %v664 = vsel %vm562, %v531, 0
        %v666 = vsel %vm562, %v532, 0
        %668 = vmatprep.subr.mxu0 0.0
        %669 = vmatpush1.msra.mxu0 0.0
        %670 = vmatprep.subr.mxu0 0.0
        %671 = vmatpush1.msra.mxu0 0.0
        %672 = vmatprep.subr.mxu0 0.0
        %673 = vmatpush1.msra.mxu0 0.0
        %674 = vmatprep.subr.mxu0 0.0
        %675 = vmatpush1.msra.mxu0 0.0
        %676 = vmatprep.subr.mxu0 0.0
        %677 = vmatpush1.msra.mxu0 0.0
        %678 = vmatprep.subr.mxu0 0.0
        %679 = vmatpush1.msra.mxu0 0.0
        %680 = vmatprep.subr.mxu0 0.0
        %681 = vmatpush1.msra.mxu0 0.0
        %682 = vmatprep.subr.mxu0 0.0
        %683 = vmatpush1.msra.mxu0 0.0
        %684 = vmatprep.subr.mxu0 0.0
        %685 = vmatpush1.msra.mxu0 0.0
        %686 = vmatprep.subr.mxu0 0.0
        %687 = vmatpush1.msra.mxu0 0.0
        %688 = vmatprep.subr.mxu0 0.0
        %689 = vmatpush1.msra.mxu0 0.0
        %690 = vmatprep.subr.mxu0 0.0
        %691 = vmatpush1.msra.mxu0 0.0
        %692 = vmatprep.subr.mxu0 %v540
        %693 = vmatpush1.msra.mxu0 %v539
        %694 = vmatprep.subr.mxu0 %v538
        %695 = vmatpush1.msra.mxu0 %v537
        %696 = vmatprep.subr.mxu0 %v536
        %697 = vmatpush1.msra.mxu0 %v535
        %698 = vmatprep.subr.mxu0 %v534
        %699 = vmatpush1.msra.mxu0 %v533
        %700 = vmatprep.subr.mxu0 0.0
        %701 = vmatpush2.msra.mxu0 0.0
        %702 = vmatprep.subr.mxu0 0.0
        %703 = vmatpush2.msra.mxu0 0.0
        %704 = vmatprep.subr.mxu0 0.0
        %705 = vmatpush2.msra.mxu0 0.0
        %706 = vmatprep.subr.mxu0 0.0
        %707 = vmatpush2.msra.mxu0 0.0
        %708 = vmatprep.subr.mxu0 0.0
        %709 = vmatpush2.msra.mxu0 0.0
        %710 = vmatprep.subr.mxu0 0.0
        %711 = vmatpush2.msra.mxu0 0.0
        %712 = vmatprep.subr.mxu0 0.0
        %713 = vmatpush2.msra.mxu0 0.0
        %714 = vmatprep.subr.mxu0 0.0
        %715 = vmatpush2.msra.mxu0 0.0
        %716 = vmatprep.subr.mxu0 0.0
        %717 = vmatpush2.msra.mxu0 0.0
        %718 = vmatprep.subr.mxu0 0.0
        %719 = vmatpush2.msra.mxu0 0.0
        %720 = vmatprep.subr.mxu0 0.0
        %721 = vmatpush2.msra.mxu0 0.0
        %722 = vmatprep.subr.mxu0 0.0
        %723 = vmatpush2.msra.mxu0 0.0
        %724 = vmatprep.subr.mxu0 0.0
        %725 = vmatpush2.msra.mxu0 0.0
        %726 = vmatprep.subr.mxu0 0.0
        %727 = vmatpush2.msra.mxu0 0.0
        %728 = vmatprep.subr.mxu0 0.0
        %729 = vmatpush2.msra.mxu0 0.0
        %730 = vmatprep.subr.mxu0 0.0
        %731 = vmatpush2.msra.mxu0 0.0
        %732 = vmatprep.mubr.f32.mxu0 0.0
        %733 = vmatmul.mubr.f32.gmra.mxu0 %v660
        %v734 = vpop.f32.mrf.mxu0
        %v735 = vadd.f32 %v638, %v734
        %v736 = vpop.f32.mrf.mxu0
        %v737 = vadd.f32 %v640, %v736
        %738 = vmatprep.mubr.f32.mxu0 0.0
        %739 = vmatmul.mubr.f32.gmra.mxu0 %v662
        %v740 = vpop.f32.mrf.mxu0
        %v741 = vadd.f32 %v644, %v740
        %v742 = vpop.f32.mrf.mxu0
        %v743 = vadd.f32 %v646, %v742
        %744 = vmatprep.mubr.f32.mxu0 0.0
        %745 = vmatmul.mubr.f32.gmra.mxu0 %v664
        %v746 = vpop.f32.mrf.mxu0
        %v747 = vadd.f32 %v650, %v746
        %v748 = vpop.f32.mrf.mxu0
        %v749 = vadd.f32 %v652, %v748
        %750 = vmatprep.mubr.f32.mxu0 0.0
        %751 = vmatmul.mubr.f32.gmra.mxu0 %v666
        %v752 = vpop.f32.mrf.mxu0
        %v753 = vadd.f32 %v656, %v752
        %v754 = vpop.f32.mrf.mxu0
        %v755 = vadd.f32 %v658, %v754
        %756 = vdwg.mxu0
        %s757 = scalar_lea.vmem %s1, 128
        %v758 = vld [vmem:[%s757] sm:$0xff]
        %v759 = vld [vmem:[%s757 + $0x8] sm:$0xff]
        %v760 = vld [vmem:[%s757 + $0x10] sm:$0xff]
        %v761 = vld [vmem:[%s757 + $0x18] sm:$0xff]
        %v762 = vld [vmem:[%s757 + $0x20] sm:$0xff]
        %v763 = vld [vmem:[%s757 + $0x28] sm:$0xff]
        %v764 = vld [vmem:[%s757 + $0x30] sm:$0xff]
        %v765 = vld [vmem:[%s757 + $0x38] sm:$0xff]
        %vm766 = vcmask 1045504
        %v767 = vrot.slane %v529, 2
        %v768 = vrot.slane %v530, 2
        %v769 = vsel %vm766, %v767, %v768
        %v770 = vrot.slane %v531, 2
        %v771 = vsel %vm766, %v768, %v770
        %v772 = vrot.slane %v532, 2
        %v773 = vsel %vm766, %v770, %v772
        %v774 = vsel %vm562, %v769, 0
        %v776 = vsel %vm562, %v771, 0
        %v778 = vsel %vm562, %v773, 0
        %v780 = vsel %vm562, %v772, 0
        %782 = vmatprep.subr.mxu0 0.0
        %783 = vmatpush1.msra.mxu0 0.0
        %784 = vmatprep.subr.mxu0 0.0
        %785 = vmatpush1.msra.mxu0 0.0
        %786 = vmatprep.subr.mxu0 0.0
        %787 = vmatpush1.msra.mxu0 0.0
        %788 = vmatprep.subr.mxu0 0.0
        %789 = vmatpush1.msra.mxu0 0.0
        %790 = vmatprep.subr.mxu0 0.0
        %791 = vmatpush1.msra.mxu0 0.0
        %792 = vmatprep.subr.mxu0 0.0
        %793 = vmatpush1.msra.mxu0 0.0
        %794 = vmatprep.subr.mxu0 0.0
        %795 = vmatpush1.msra.mxu0 0.0
        %796 = vmatprep.subr.mxu0 0.0
        %797 = vmatpush1.msra.mxu0 0.0
        %798 = vmatprep.subr.mxu0 0.0
        %799 = vmatpush1.msra.mxu0 0.0
        %800 = vmatprep.subr.mxu0 0.0
        %801 = vmatpush1.msra.mxu0 0.0
        %802 = vmatprep.subr.mxu0 0.0
        %803 = vmatpush1.msra.mxu0 0.0
        %804 = vmatprep.subr.mxu0 0.0
        %805 = vmatpush1.msra.mxu0 0.0
        %806 = vmatprep.subr.mxu0 %v765
        %807 = vmatpush1.msra.mxu0 %v764
        %808 = vmatprep.subr.mxu0 %v763
        %809 = vmatpush1.msra.mxu0 %v762
        %810 = vmatprep.subr.mxu0 %v761
        %811 = vmatpush1.msra.mxu0 %v760
        %812 = vmatprep.subr.mxu0 %v759
        %813 = vmatpush1.msra.mxu0 %v758
        %814 = vmatprep.subr.mxu0 0.0
        %815 = vmatpush2.msra.mxu0 0.0
        %816 = vmatprep.subr.mxu0 0.0
        %817 = vmatpush2.msra.mxu0 0.0
        %818 = vmatprep.subr.mxu0 0.0
        %819 = vmatpush2.msra.mxu0 0.0
        %820 = vmatprep.subr.mxu0 0.0
        %821 = vmatpush2.msra.mxu0 0.0
        %822 = vmatprep.subr.mxu0 0.0
        %823 = vmatpush2.msra.mxu0 0.0
        %824 = vmatprep.subr.mxu0 0.0
        %825 = vmatpush2.msra.mxu0 0.0
        %826 = vmatprep.subr.mxu0 0.0
        %827 = vmatpush2.msra.mxu0 0.0
        %828 = vmatprep.subr.mxu0 0.0
        %829 = vmatpush2.msra.mxu0 0.0
        %830 = vmatprep.subr.mxu0 0.0
        %831 = vmatpush2.msra.mxu0 0.0
        %832 = vmatprep.subr.mxu0 0.0
        %833 = vmatpush2.msra.mxu0 0.0
        %834 = vmatprep.subr.mxu0 0.0
        %835 = vmatpush2.msra.mxu0 0.0
        %836 = vmatprep.subr.mxu0 0.0
        %837 = vmatpush2.msra.mxu0 0.0
        %838 = vmatprep.subr.mxu0 0.0
        %839 = vmatpush2.msra.mxu0 0.0
        %840 = vmatprep.subr.mxu0 0.0
        %841 = vmatpush2.msra.mxu0 0.0
        %842 = vmatprep.subr.mxu0 0.0
        %843 = vmatpush2.msra.mxu0 0.0
        %844 = vmatprep.subr.mxu0 0.0
        %845 = vmatpush2.msra.mxu0 0.0
        %846 = vmatprep.mubr.f32.mxu0 0.0
        %847 = vmatmul.mubr.f32.gmra.mxu0 %v774
        %v848 = vpop.f32.mrf.mxu0
        %v849 = vadd.f32 0.0, %v848
        %v850 = vpop.f32.mrf.mxu0
        %v851 = vadd.f32 0.0, %v850
        %852 = vmatprep.mubr.f32.mxu0 0.0
        %853 = vmatmul.mubr.f32.gmra.mxu0 %v776
        %v854 = vpop.f32.mrf.mxu0
        %v855 = vadd.f32 0.0, %v854
        %v856 = vpop.f32.mrf.mxu0
        %v857 = vadd.f32 0.0, %v856
        %858 = vmatprep.mubr.f32.mxu0 0.0
        %859 = vmatmul.mubr.f32.gmra.mxu0 %v778
        %v860 = vpop.f32.mrf.mxu0
        %v861 = vadd.f32 0.0, %v860
        %v862 = vpop.f32.mrf.mxu0
        %v863 = vadd.f32 0.0, %v862
        %864 = vmatprep.mubr.f32.mxu0 0.0
        %865 = vmatmul.mubr.f32.gmra.mxu0 %v780
        %v866 = vpop.f32.mrf.mxu0
        %v867 = vadd.f32 0.0, %v866
        %v868 = vpop.f32.mrf.mxu0
        %v869 = vadd.f32 0.0, %v868
        %870 = vdwg.mxu0
        %v871 = vadd.f32 %v735, %v849
        %v872 = vadd.f32 %v737, %v851
        %v873 = vadd.f32 %v741, %v855
        %v874 = vadd.f32 %v743, %v857
        %v875 = vadd.f32 %v747, %v861
        %v876 = vadd.f32 %v749, %v863
        %v877 = vadd.f32 %v753, %v867
        %v878 = vadd.f32 %v755, %v869
        %s879 = scalar_lea.vmem %s1, 192
        %v880 = vld [vmem:[%s879] sm:$0xff]
        %v881 = vld [vmem:[%s879 + $0x8] sm:$0xff]
        %v882 = vld [vmem:[%s879 + $0x10] sm:$0xff]
        %v883 = vld [vmem:[%s879 + $0x18] sm:$0xff]
        %v884 = vld [vmem:[%s879 + $0x20] sm:$0xff]
        %v885 = vld [vmem:[%s879 + $0x28] sm:$0xff]
        %v886 = vld [vmem:[%s879 + $0x30] sm:$0xff]
        %v887 = vld [vmem:[%s879 + $0x38] sm:$0xff]
        %vm888 = vcmask 1044480
        %v889 = vrot.slane %v529, 3
        %v890 = vrot.slane %v530, 3
        %v891 = vsel %vm888, %v889, %v890
        %v892 = vrot.slane %v531, 3
        %v893 = vsel %vm888, %v890, %v892
        %v894 = vrot.slane %v532, 3
        %v895 = vsel %vm888, %v892, %v894
        %v896 = vsel %vm562, %v891, 0
        %v898 = vsel %vm562, %v893, 0
        %v900 = vsel %vm562, %v895, 0
        %v902 = vsel %vm562, %v894, 0
        %904 = vmatprep.subr.mxu0 0.0
        %905 = vmatpush1.msra.mxu0 0.0
        %906 = vmatprep.subr.mxu0 0.0
        %907 = vmatpush1.msra.mxu0 0.0
        %908 = vmatprep.subr.mxu0 0.0
        %909 = vmatpush1.msra.mxu0 0.0
        %910 = vmatprep.subr.mxu0 0.0
        %911 = vmatpush1.msra.mxu0 0.0
        %912 = vmatprep.subr.mxu0 0.0
        %913 = vmatpush1.msra.mxu0 0.0
        %914 = vmatprep.subr.mxu0 0.0
        %915 = vmatpush1.msra.mxu0 0.0
        %916 = vmatprep.subr.mxu0 0.0
        %917 = vmatpush1.msra.mxu0 0.0
        %918 = vmatprep.subr.mxu0 0.0
        %919 = vmatpush1.msra.mxu0 0.0
        %920 = vmatprep.subr.mxu0 0.0
        %921 = vmatpush1.msra.mxu0 0.0
        %922 = vmatprep.subr.mxu0 0.0
        %923 = vmatpush1.msra.mxu0 0.0
        %924 = vmatprep.subr.mxu0 0.0
        %925 = vmatpush1.msra.mxu0 0.0
        %926 = vmatprep.subr.mxu0 0.0
        %927 = vmatpush1.msra.mxu0 0.0
        %928 = vmatprep.subr.mxu0 %v887
        %929 = vmatpush1.msra.mxu0 %v886
        %930 = vmatprep.subr.mxu0 %v885
        %931 = vmatpush1.msra.mxu0 %v884
        %932 = vmatprep.subr.mxu0 %v883
        %933 = vmatpush1.msra.mxu0 %v882
        %934 = vmatprep.subr.mxu0 %v881
        %935 = vmatpush1.msra.mxu0 %v880
        %936 = vmatprep.subr.mxu0 0.0
        %937 = vmatpush2.msra.mxu0 0.0
        %938 = vmatprep.subr.mxu0 0.0
        %939 = vmatpush2.msra.mxu0 0.0
        %940 = vmatprep.subr.mxu0 0.0
        %941 = vmatpush2.msra.mxu0 0.0
        %942 = vmatprep.subr.mxu0 0.0
        %943 = vmatpush2.msra.mxu0 0.0
        %944 = vmatprep.subr.mxu0 0.0
        %945 = vmatpush2.msra.mxu0 0.0
        %946 = vmatprep.subr.mxu0 0.0
        %947 = vmatpush2.msra.mxu0 0.0
        %948 = vmatprep.subr.mxu0 0.0
        %949 = vmatpush2.msra.mxu0 0.0
        %950 = vmatprep.subr.mxu0 0.0
        %951 = vmatpush2.msra.mxu0 0.0
        %952 = vmatprep.subr.mxu0 0.0
        %953 = vmatpush2.msra.mxu0 0.0
        %954 = vmatprep.subr.mxu0 0.0
        %955 = vmatpush2.msra.mxu0 0.0
        %956 = vmatprep.subr.mxu0 0.0
        %957 = vmatpush2.msra.mxu0 0.0
        %958 = vmatprep.subr.mxu0 0.0
        %959 = vmatpush2.msra.mxu0 0.0
        %960 = vmatprep.subr.mxu0 0.0
        %961 = vmatpush2.msra.mxu0 0.0
        %962 = vmatprep.subr.mxu0 0.0
        %963 = vmatpush2.msra.mxu0 0.0
        %964 = vmatprep.subr.mxu0 0.0
        %965 = vmatpush2.msra.mxu0 0.0
        %966 = vmatprep.subr.mxu0 0.0
        %967 = vmatpush2.msra.mxu0 0.0
        %968 = vmatprep.mubr.f32.mxu0 0.0
        %969 = vmatmul.mubr.f32.gmra.mxu0 %v896
        %v970 = vpop.f32.mrf.mxu0
        %v971 = vadd.f32 0.0, %v970
        %v972 = vpop.f32.mrf.mxu0
        %v973 = vadd.f32 0.0, %v972
        %974 = vmatprep.mubr.f32.mxu0 0.0
        %975 = vmatmul.mubr.f32.gmra.mxu0 %v898
        %v976 = vpop.f32.mrf.mxu0
        %v977 = vadd.f32 0.0, %v976
        %v978 = vpop.f32.mrf.mxu0
        %v979 = vadd.f32 0.0, %v978
        %980 = vmatprep.mubr.f32.mxu0 0.0
        %981 = vmatmul.mubr.f32.gmra.mxu0 %v900
        %v982 = vpop.f32.mrf.mxu0
        %v983 = vadd.f32 0.0, %v982
        %v984 = vpop.f32.mrf.mxu0
        %v985 = vadd.f32 0.0, %v984
        %986 = vmatprep.mubr.f32.mxu0 0.0
        %987 = vmatmul.mubr.f32.gmra.mxu0 %v902
        %v988 = vpop.f32.mrf.mxu0
        %v989 = vadd.f32 0.0, %v988
        %v990 = vpop.f32.mrf.mxu0
        %v991 = vadd.f32 0.0, %v990
        %992 = vdwg.mxu0
        %v993 = vadd.f32 %v871, %v971
        %v994 = vadd.f32 %v872, %v973
        %v995 = vadd.f32 %v873, %v977
        %v996 = vadd.f32 %v874, %v979
        %v997 = vadd.f32 %v875, %v983
        %v998 = vadd.f32 %v876, %v985
        %v999 = vadd.f32 %v877, %v989
        %v1000 = vadd.f32 %v878, %v991
        %s1001 = scalar_lea.vmem %s1, 256
        %v1002 = vld [vmem:[%s1001] sm:$0xff]
        %v1003 = vld [vmem:[%s1001 + $0x8] sm:$0xff]
        %v1004 = vld [vmem:[%s1001 + $0x10] sm:$0xff]
        %v1005 = vld [vmem:[%s1001 + $0x18] sm:$0xff]
        %v1006 = vld [vmem:[%s1001 + $0x20] sm:$0xff]
        %v1007 = vld [vmem:[%s1001 + $0x28] sm:$0xff]
        %v1008 = vld [vmem:[%s1001 + $0x30] sm:$0xff]
        %v1009 = vld [vmem:[%s1001 + $0x38] sm:$0xff]
        %vm1010 = vcmask 1043456
        %v1011 = vrot.slane %v529, 4
        %v1012 = vrot.slane %v530, 4
        %v1013 = vsel %vm1010, %v1011, %v1012
        %v1014 = vrot.slane %v531, 4
        %v1015 = vsel %vm1010, %v1012, %v1014
        %v1016 = vrot.slane %v532, 4
        %v1017 = vsel %vm1010, %v1014, %v1016
        %v1018 = vsel %vm562, %v1013, 0
        %v1020 = vsel %vm562, %v1015, 0
        %v1022 = vsel %vm562, %v1017, 0
        %v1024 = vsel %vm562, %v1016, 0
        %1026 = vmatprep.subr.mxu0 0.0
        %1027 = vmatpush1.msra.mxu0 0.0
        %1028 = vmatprep.subr.mxu0 0.0
        %1029 = vmatpush1.msra.mxu0 0.0
        %1030 = vmatprep.subr.mxu0 0.0
        %1031 = vmatpush1.msra.mxu0 0.0
        %1032 = vmatprep.subr.mxu0 0.0
        %1033 = vmatpush1.msra.mxu0 0.0
        %1034 = vmatprep.subr.mxu0 0.0
        %1035 = vmatpush1.msra.mxu0 0.0
        %1036 = vmatprep.subr.mxu0 0.0
        %1037 = vmatpush1.msra.mxu0 0.0
        %1038 = vmatprep.subr.mxu0 0.0
        %1039 = vmatpush1.msra.mxu0 0.0
        %1040 = vmatprep.subr.mxu0 0.0
        %1041 = vmatpush1.msra.mxu0 0.0
        %1042 = vmatprep.subr.mxu0 0.0
        %1043 = vmatpush1.msra.mxu0 0.0
        %1044 = vmatprep.subr.mxu0 0.0
        %1045 = vmatpush1.msra.mxu0 0.0
        %1046 = vmatprep.subr.mxu0 0.0
        %1047 = vmatpush1.msra.mxu0 0.0
        %1048 = vmatprep.subr.mxu0 0.0
        %1049 = vmatpush1.msra.mxu0 0.0
        %1050 = vmatprep.subr.mxu0 %v1009
        %1051 = vmatpush1.msra.mxu0 %v1008
        %1052 = vmatprep.subr.mxu0 %v1007
        %1053 = vmatpush1.msra.mxu0 %v1006
        %1054 = vmatprep.subr.mxu0 %v1005
        %1055 = vmatpush1.msra.mxu0 %v1004
        %1056 = vmatprep.subr.mxu0 %v1003
        %1057 = vmatpush1.msra.mxu0 %v1002
        %1058 = vmatprep.subr.mxu0 0.0
        %1059 = vmatpush2.msra.mxu0 0.0
        %1060 = vmatprep.subr.mxu0 0.0
        %1061 = vmatpush2.msra.mxu0 0.0
        %1062 = vmatprep.subr.mxu0 0.0
        %1063 = vmatpush2.msra.mxu0 0.0
        %1064 = vmatprep.subr.mxu0 0.0
        %1065 = vmatpush2.msra.mxu0 0.0
        %1066 = vmatprep.subr.mxu0 0.0
        %1067 = vmatpush2.msra.mxu0 0.0
        %1068 = vmatprep.subr.mxu0 0.0
        %1069 = vmatpush2.msra.mxu0 0.0
        %1070 = vmatprep.subr.mxu0 0.0
        %1071 = vmatpush2.msra.mxu0 0.0
        %1072 = vmatprep.subr.mxu0 0.0
        %1073 = vmatpush2.msra.mxu0 0.0
        %1074 = vmatprep.subr.mxu0 0.0
        %1075 = vmatpush2.msra.mxu0 0.0
        %1076 = vmatprep.subr.mxu0 0.0
        %1077 = vmatpush2.msra.mxu0 0.0
        %1078 = vmatprep.subr.mxu0 0.0
        %1079 = vmatpush2.msra.mxu0 0.0
        %1080 = vmatprep.subr.mxu0 0.0
        %1081 = vmatpush2.msra.mxu0 0.0
        %1082 = vmatprep.subr.mxu0 0.0
        %1083 = vmatpush2.msra.mxu0 0.0
        %1084 = vmatprep.subr.mxu0 0.0
        %1085 = vmatpush2.msra.mxu0 0.0
        %1086 = vmatprep.subr.mxu0 0.0
        %1087 = vmatpush2.msra.mxu0 0.0
        %1088 = vmatprep.subr.mxu0 0.0
        %1089 = vmatpush2.msra.mxu0 0.0
        %1090 = vmatprep.mubr.f32.mxu0 0.0
        %1091 = vmatmul.mubr.f32.gmra.mxu0 %v1018
        %v1092 = vpop.f32.mrf.mxu0
        %v1093 = vadd.f32 0.0, %v1092
        %v1094 = vpop.f32.mrf.mxu0
        %v1095 = vadd.f32 0.0, %v1094
        %1096 = vmatprep.mubr.f32.mxu0 0.0
        %1097 = vmatmul.mubr.f32.gmra.mxu0 %v1020
        %v1098 = vpop.f32.mrf.mxu0
        %v1099 = vadd.f32 0.0, %v1098
        %v1100 = vpop.f32.mrf.mxu0
        %v1101 = vadd.f32 0.0, %v1100
        %1102 = vmatprep.mubr.f32.mxu0 0.0
        %1103 = vmatmul.mubr.f32.gmra.mxu0 %v1022
        %v1104 = vpop.f32.mrf.mxu0
        %v1105 = vadd.f32 0.0, %v1104
        %v1106 = vpop.f32.mrf.mxu0
        %v1107 = vadd.f32 0.0, %v1106
        %1108 = vmatprep.mubr.f32.mxu0 0.0
        %1109 = vmatmul.mubr.f32.gmra.mxu0 %v1024
        %v1110 = vpop.f32.mrf.mxu0
        %v1111 = vadd.f32 0.0, %v1110
        %v1112 = vpop.f32.mrf.mxu0
        %v1113 = vadd.f32 0.0, %v1112
        %1114 = vdwg.mxu0
        %v1115 = vadd.f32 %v993, %v1093
        %v1116 = vadd.f32 %v994, %v1095
        %v1117 = vadd.f32 %v995, %v1099
        %v1118 = vadd.f32 %v996, %v1101
        %v1119 = vadd.f32 %v997, %v1105
        %v1120 = vadd.f32 %v998, %v1107
        %v1121 = vadd.f32 %v999, %v1111
        %v1122 = vadd.f32 %v1000, %v1113
        %v1123 = vld [vmem:[%s2] sm:$0x3]
        %v1125 = vlaneseq
        %v1126 = vshrl.u32 %v1125, 7
        %v1127 = vsub.s32 0, %v1126
        %v1128 = vrot.slane %v1123, %v1127
        %v1129 = vlaneseq
        %v1130 = vshrl.u32 %v1129, 7
        %v1131 = vsub.s32 1, %v1130
        %v1132 = vrot.slane %v1123, %v1131
        %v1135 = vadd.f32 %v1115, %v1128
        %v1136 = vadd.f32 %v1116, %v1132
        %v1137 = vadd.f32 %v1117, %v1128
        %v1138 = vadd.f32 %v1118, %v1132
        %v1139 = vadd.f32 %v1119, %v1128
        %v1140 = vadd.f32 %v1120, %v1132
        %v1141 = vadd.f32 %v1121, %v1128
        %v1142 = vadd.f32 %v1122, %v1132
        %v1143 = vtanh.pop %v1135
        %v1144 = vtanh.pop %v1136
        %v1145 = vtanh.pop %v1137
        %v1146 = vtanh.pop %v1138
        %v1147 = vtanh.pop %v1139
        %v1148 = vtanh.pop %v1140
        %v1149 = vtanh.pop %v1141
        %v1150 = vtanh.pop %v1142
        %v1151 = vld [vmem:[%s3] sm:$0xff]
        %v1152 = vld [vmem:[%s3 + $0x8] sm:$0x3f]
        %v1153 = vld [vmem:[%s4] sm:$0xff]
        %v1154 = vld [vmem:[%s4 + $0x8] sm:$0xff]
        %v1155 = vld [vmem:[%s4 + $0x10] sm:$0xff]
        %v1156 = vld [vmem:[%s4 + $0x18] sm:$0xff]
        %v1157 = vld [vmem:[%s4 + $0x20] sm:$0xff]
        %v1158 = vld [vmem:[%s4 + $0x28] sm:$0xff]
        %v1159 = vld [vmem:[%s4 + $0x30] sm:$0xff]
        %v1160 = vld [vmem:[%s4 + $0x38] sm:$0xff]
        %v1161 = vld [vmem:[%s4 + $0x40] sm:$0xff]
        %v1162 = vld [vmem:[%s4 + $0x48] sm:$0xff]
        %v1163 = vld [vmem:[%s4 + $0x50] sm:$0xff]
        %v1164 = vld [vmem:[%s4 + $0x58] sm:$0xff]
        %v1165 = vld [vmem:[%s4 + $0x60] sm:$0xff]
        %v1166 = vld [vmem:[%s4 + $0x68] sm:$0xff]
        %v1167 = vld [vmem:[%s4 + $0x70] sm:$0xff]
        %v1168 = vld [vmem:[%s4 + $0x78] sm:$0xff]
        %v1169 = vld [vmem:[%s4 + $0x80] sm:$0xff]
        %v1170 = vld [vmem:[%s4 + $0x88] sm:$0xff]
        %v1171 = vld [vmem:[%s4 + $0x90] sm:$0xff]
        %v1172 = vld [vmem:[%s4 + $0x98] sm:$0xff]
        %v1173 = vld [vmem:[%s4 + $0xa0] sm:$0xff]
        %vm1174 = vcmask 326656
        %v1176 = vsel %vm1174, %v1144, 0
        %v1179 = vsel %vm1174, %v1146, 0
        %v1182 = vsel %vm1174, %v1148, 0
        %v1185 = vsel %vm1174, %v1150, 0
        %1187 = vmatprep.subr.mxu0 0.0
        %1188 = vmatpush1.msra.mxu0 %v1168
        %1189 = vmatprep.subr.mxu0 0.0
        %1190 = vmatpush1.msra.mxu0 %v1167
        %1191 = vmatprep.subr.mxu0 0.0
        %1192 = vmatpush1.msra.mxu0 %v1166
        %1193 = vmatprep.subr.mxu0 0.0
        %1194 = vmatpush1.msra.mxu0 %v1165
        %1195 = vmatprep.subr.mxu0 0.0
        %1196 = vmatpush1.msra.mxu0 %v1164
        %1197 = vmatprep.subr.mxu0 0.0
        %1198 = vmatpush1.msra.mxu0 %v1163
        %1199 = vmatprep.subr.mxu0 0.0
        %1200 = vmatpush1.msra.mxu0 %v1162
        %1201 = vmatprep.subr.mxu0 0.0
        %1202 = vmatpush1.msra.mxu0 %v1161
        %1203 = vmatprep.subr.mxu0 0.0
        %1204 = vmatpush1.msra.mxu0 %v1160
        %1205 = vmatprep.subr.mxu0 0.0
        %1206 = vmatpush1.msra.mxu0 %v1159
        %1207 = vmatprep.subr.mxu0 0.0
        %1208 = vmatpush1.msra.mxu0 %v1158
        %1209 = vmatprep.subr.mxu0 0.0
        %1210 = vmatpush1.msra.mxu0 %v1157
        %1211 = vmatprep.subr.mxu0 0.0
        %1212 = vmatpush1.msra.mxu0 %v1156
        %1213 = vmatprep.subr.mxu0 0.0
        %1214 = vmatpush1.msra.mxu0 %v1155
        %1215 = vmatprep.subr.mxu0 0.0
        %1216 = vmatpush1.msra.mxu0 %v1154
        %1217 = vmatprep.subr.mxu0 0.0
        %1218 = vmatpush1.msra.mxu0 %v1153
        %1219 = vmatprep.subr.mxu0 0.0
        %1220 = vmatpush2.msra.mxu0 0.0
        %1221 = vmatprep.subr.mxu0 0.0
        %1222 = vmatpush2.msra.mxu0 0.0
        %1223 = vmatprep.subr.mxu0 0.0
        %1224 = vmatpush2.msra.mxu0 0.0
        %1225 = vmatprep.subr.mxu0 0.0
        %1226 = vmatpush2.msra.mxu0 0.0
        %1227 = vmatprep.subr.mxu0 0.0
        %1228 = vmatpush2.msra.mxu0 0.0
        %1229 = vmatprep.subr.mxu0 0.0
        %1230 = vmatpush2.msra.mxu0 0.0
        %1231 = vmatprep.subr.mxu0 0.0
        %1232 = vmatpush2.msra.mxu0 0.0
        %1233 = vmatprep.subr.mxu0 0.0
        %1234 = vmatpush2.msra.mxu0 0.0
        %1235 = vmatprep.subr.mxu0 0.0
        %1236 = vmatpush2.msra.mxu0 0.0
        %1237 = vmatprep.subr.mxu0 0.0
        %1238 = vmatpush2.msra.mxu0 0.0
        %1239 = vmatprep.subr.mxu0 0.0
        %1240 = vmatpush2.msra.mxu0 0.0
        %1241 = vmatprep.subr.mxu0 0.0
        %1242 = vmatpush2.msra.mxu0 %v1173
        %1243 = vmatprep.subr.mxu0 0.0
        %1244 = vmatpush2.msra.mxu0 %v1172
        %1245 = vmatprep.subr.mxu0 0.0
        %1246 = vmatpush2.msra.mxu0 %v1171
        %1247 = vmatprep.subr.mxu0 0.0
        %1248 = vmatpush2.msra.mxu0 %v1170
        %1249 = vmatprep.subr.mxu0 0.0
        %1250 = vmatpush2.msra.mxu0 %v1169
        %1251 = vmatprep.mubr.f32.mxu0 %v1176
        %1252 = vmatmul.mubr.f32.gmra.mxu0 %v1143
        %v1253 = vpop.f32.mrf.mxu0
        %v1254 = vadd.f32 0.0, %v1253
        %v1255 = vpop.f32.mrf.mxu0
        %1256 = vmatprep.mubr.f32.mxu0 %v1179
        %1257 = vmatmul.mubr.f32.gmra.mxu0 %v1145
        %v1258 = vpop.f32.mrf.mxu0
        %v1259 = vadd.f32 0.0, %v1258
        %v1260 = vpop.f32.mrf.mxu0
        %1261 = vmatprep.mubr.f32.mxu0 %v1182
        %1262 = vmatmul.mubr.f32.gmra.mxu0 %v1147
        %v1263 = vpop.f32.mrf.mxu0
        %v1264 = vadd.f32 0.0, %v1263
        %v1265 = vpop.f32.mrf.mxu0
        %1266 = vmatprep.mubr.f32.mxu0 %v1185
        %1267 = vmatmul.mubr.f32.gmra.mxu0 %v1149
        %v1268 = vpop.f32.mrf.mxu0
        %v1269 = vadd.f32 0.0, %v1268
        %v1270 = vpop.f32.mrf.mxu0
        %1271 = vdwg.mxu0
        %vm1272 = vcmask 228352
        %v1274 = vsel %vm1272, %v1151, 0
        %v1277 = vsel %vm1272, %v1152, 0
        %v1280 = vsel %vm1010, %v1269, 0
        %1282 = vmatprep.subr.mxu0 0.0
        %1283 = vmatpush1.msra.mxu0 0.0
        %1284 = vmatprep.subr.mxu0 0.0
        %1285 = vmatpush1.msra.mxu0 0.0
        %1286 = vmatprep.subr.mxu0 0.0
        %1287 = vmatpush1.msra.mxu0 0.0
        %1288 = vmatprep.subr.mxu0 0.0
        %1289 = vmatpush1.msra.mxu0 0.0
        %1290 = vmatprep.subr.mxu0 0.0
        %1291 = vmatpush1.msra.mxu0 0.0
        %1292 = vmatprep.subr.mxu0 0.0
        %1293 = vmatpush1.msra.mxu0 0.0
        %1294 = vmatprep.subr.mxu0 0.0
        %1295 = vmatpush1.msra.mxu0 0.0
        %1296 = vmatprep.subr.mxu0 0.0
        %1297 = vmatpush1.msra.mxu0 0.0
        %1298 = vmatprep.subr.mxu0 0.0
        %1299 = vmatpush1.msra.mxu0 0.0
        %1300 = vmatprep.subr.mxu0 0.0
        %1301 = vmatpush1.msra.mxu0 0.0
        %1302 = vmatprep.subr.mxu0 0.0
        %1303 = vmatpush1.msra.mxu0 0.0
        %1304 = vmatprep.subr.mxu0 0.0
        %1305 = vmatpush1.msra.mxu0 0.0
        %1306 = vmatprep.subr.mxu0 0.0
        %1307 = vmatpush1.msra.mxu0 %v1280
        %1308 = vmatprep.subr.mxu0 0.0
        %1309 = vmatpush1.msra.mxu0 %v1264
        %1310 = vmatprep.subr.mxu0 0.0
        %1311 = vmatpush1.msra.mxu0 %v1259
        %1312 = vmatprep.subr.mxu0 0.0
        %1313 = vmatpush1.msra.mxu0 %v1254
        %1314 = vmatprep.subr.mxu0 0.0
        %1315 = vmatpush2.msra.mxu0 0.0
        %1316 = vmatprep.subr.mxu0 0.0
        %1317 = vmatpush2.msra.mxu0 0.0
        %1318 = vmatprep.subr.mxu0 0.0
        %1319 = vmatpush2.msra.mxu0 0.0
        %1320 = vmatprep.subr.mxu0 0.0
        %1321 = vmatpush2.msra.mxu0 0.0
        %1322 = vmatprep.subr.mxu0 0.0
        %1323 = vmatpush2.msra.mxu0 0.0
        %1324 = vmatprep.subr.mxu0 0.0
        %1325 = vmatpush2.msra.mxu0 0.0
        %1326 = vmatprep.subr.mxu0 0.0
        %1327 = vmatpush2.msra.mxu0 0.0
        %1328 = vmatprep.subr.mxu0 0.0
        %1329 = vmatpush2.msra.mxu0 0.0
        %1330 = vmatprep.subr.mxu0 0.0
        %1331 = vmatpush2.msra.mxu0 0.0
        %1332 = vmatprep.subr.mxu0 0.0
        %1333 = vmatpush2.msra.mxu0 0.0
        %1334 = vmatprep.subr.mxu0 0.0
        %1335 = vmatpush2.msra.mxu0 0.0
        %1336 = vmatprep.subr.mxu0 0.0
        %1337 = vmatpush2.msra.mxu0 0.0
        %1338 = vmatprep.subr.mxu0 0.0
        %1339 = vmatpush2.msra.mxu0 0.0
        %1340 = vmatprep.subr.mxu0 0.0
        %1341 = vmatpush2.msra.mxu0 0.0
        %1342 = vmatprep.subr.mxu0 0.0
        %1343 = vmatpush2.msra.mxu0 0.0
        %1344 = vmatprep.subr.mxu0 0.0
        %1345 = vmatpush2.msra.mxu0 0.0
        %1346 = vmatprep.mubr.f32.mxu0 0.0
        %1347 = vmatmul.mubr.f32.gmra.mxu0 %v1274
        %v1348 = vpop.f32.mrf.mxu0
        %v1349 = vadd.f32 0.0, %v1348
        %v1350 = vpop.f32.mrf.mxu0
        %1351 = vmatprep.mubr.f32.mxu0 0.0
        %1352 = vmatmul.mubr.f32.gmra.mxu0 %v1277
        %v1353 = vpop.f32.mrf.mxu0
        %v1354 = vadd.f32 0.0, %v1353
        %v1355 = vpop.f32.mrf.mxu0
        %1356 = vdwg.mxu0
        %v1357 = vld [vmem:[%s5] sm:$0xff]
        %v1358 = vld [vmem:[%s5 + $0x8] sm:$0xff]
        %v1359 = vld [vmem:[%s5 + $0x10] sm:$0xff]
        %v1360 = vld [vmem:[%s5 + $0x18] sm:$0xff]
        %v1361 = vld [vmem:[%s5 + $0x20] sm:$0xff]
        %v1362 = vld [vmem:[%s5 + $0x28] sm:$0xff]
        %v1363 = vld [vmem:[%s5 + $0x30] sm:$0xff]
        %v1364 = vld [vmem:[%s5 + $0x38] sm:$0xff]
        %v1365 = vld [vmem:[%s5 + $0x40] sm:$0xff]
        %v1366 = vld [vmem:[%s5 + $0x48] sm:$0xff]
        %v1367 = vld [vmem:[%s5 + $0x50] sm:$0xff]
        %v1368 = vld [vmem:[%s5 + $0x58] sm:$0xff]
        %v1369 = vld [vmem:[%s5 + $0x60] sm:$0xff]
        %v1370 = vld [vmem:[%s5 + $0x68] sm:$0xff]
        %v1371 = vld [vmem:[%s5 + $0x70] sm:$0xff]
        %v1372 = vld [vmem:[%s5 + $0x78] sm:$0xff]
        %v1373 = vld [vmem:[%s5 + $0x80] sm:$0xff]
        %v1374 = vld [vmem:[%s5 + $0x88] sm:$0xff]
        %v1375 = vld [vmem:[%s5 + $0x90] sm:$0xff]
        %v1376 = vld [vmem:[%s5 + $0x98] sm:$0xff]
        %v1377 = vld [vmem:[%s5 + $0xa0] sm:$0xf]
        %v1378 = vld [vmem:[%s5 + $0xa8] sm:$0xf]
        %s1379 = scalar_lea.vmem %s5, 176
        %v1380 = vld [vmem:[%s1379] sm:$0xff]
        %v1381 = vld [vmem:[%s1379 + $0x8] sm:$0xff]
        %v1382 = vld [vmem:[%s1379 + $0x10] sm:$0xff]
        %v1383 = vld [vmem:[%s1379 + $0x18] sm:$0xff]
        %v1384 = vld [vmem:[%s1379 + $0x20] sm:$0xff]
        %v1385 = vld [vmem:[%s1379 + $0x28] sm:$0xff]
        %v1386 = vld [vmem:[%s1379 + $0x30] sm:$0xff]
        %v1387 = vld [vmem:[%s1379 + $0x38] sm:$0xff]
        %v1388 = vld [vmem:[%s1379 + $0x40] sm:$0xff]
        %v1389 = vld [vmem:[%s1379 + $0x48] sm:$0xff]
        %v1390 = vld [vmem:[%s1379 + $0x50] sm:$0xff]
        %v1391 = vld [vmem:[%s1379 + $0x58] sm:$0xff]
        %v1392 = vld [vmem:[%s1379 + $0x60] sm:$0xff]
        %v1393 = vld [vmem:[%s1379 + $0x68] sm:$0xff]
        %v1394 = vld [vmem:[%s1379 + $0x70] sm:$0xff]
        %v1395 = vld [vmem:[%s1379 + $0x78] sm:$0xff]
        %v1396 = vld [vmem:[%s1379 + $0x80] sm:$0xff]
        %v1397 = vld [vmem:[%s1379 + $0x88] sm:$0xff]
        %v1398 = vld [vmem:[%s1379 + $0x90] sm:$0xff]
        %v1399 = vld [vmem:[%s1379 + $0x98] sm:$0xff]
        %v1400 = vld [vmem:[%s1379 + $0xa0] sm:$0xf]
        %v1401 = vld [vmem:[%s1379 + $0xa8] sm:$0xf]
        %v1404 = vrot.slane %v1349, 1
        %v1405 = vrot.slane %v1354, 1
        %v1406 = vsel %vm554, %v1404, %v1405
        %vm1407 = vcmask 687104
        %v1408 = vsel %vm1407, %v1406, 0
        %v1410 = vsel %vm1407, %v1405, 0
        %v1413 = vsel %vm1010, %v1400, 0
        %v1416 = vsel %vm1010, %v1401, 0
        %1418 = vmatprep.subr.mxu0 0.0
        %1419 = vmatpush1.msra.mxu0 0.0
        %1420 = vmatprep.subr.mxu0 0.0
        %1421 = vmatpush1.msra.mxu0 0.0
        %1422 = vmatprep.subr.mxu0 0.0
        %1423 = vmatpush1.msra.mxu0 0.0
        %1424 = vmatprep.subr.mxu0 0.0
        %1425 = vmatpush1.msra.mxu0 0.0
        %1426 = vmatprep.subr.mxu0 0.0
        %1427 = vmatpush1.msra.mxu0 0.0
        %1428 = vmatprep.subr.mxu0 %v1416
        %1429 = vmatpush1.msra.mxu0 %v1413
        %1430 = vmatprep.subr.mxu0 %v1399
        %1431 = vmatpush1.msra.mxu0 %v1398
        %1432 = vmatprep.subr.mxu0 %v1397
        %1433 = vmatpush1.msra.mxu0 %v1396
        %1434 = vmatprep.subr.mxu0 %v1395
        %1435 = vmatpush1.msra.mxu0 %v1394
        %1436 = vmatprep.subr.mxu0 %v1393
        %1437 = vmatpush1.msra.mxu0 %v1392
        %1438 = vmatprep.subr.mxu0 %v1391
        %1439 = vmatpush1.msra.mxu0 %v1390
        %1440 = vmatprep.subr.mxu0 %v1389
        %1441 = vmatpush1.msra.mxu0 %v1388
        %1442 = vmatprep.subr.mxu0 %v1387
        %1443 = vmatpush1.msra.mxu0 %v1386
        %1444 = vmatprep.subr.mxu0 %v1385
        %1445 = vmatpush1.msra.mxu0 %v1384
        %1446 = vmatprep.subr.mxu0 %v1383
        %1447 = vmatpush1.msra.mxu0 %v1382
        %1448 = vmatprep.subr.mxu0 %v1381
        %1449 = vmatpush1.msra.mxu0 %v1380
        %1450 = vmatprep.subr.mxu0 0.0
        %1451 = vmatpush2.msra.mxu0 0.0
        %1452 = vmatprep.subr.mxu0 0.0
        %1453 = vmatpush2.msra.mxu0 0.0
        %1454 = vmatprep.subr.mxu0 0.0
        %1455 = vmatpush2.msra.mxu0 0.0
        %1456 = vmatprep.subr.mxu0 0.0
        %1457 = vmatpush2.msra.mxu0 0.0
        %1458 = vmatprep.subr.mxu0 0.0
        %1459 = vmatpush2.msra.mxu0 0.0
        %1460 = vmatprep.subr.mxu0 0.0
        %1461 = vmatpush2.msra.mxu0 0.0
        %1462 = vmatprep.subr.mxu0 0.0
        %1463 = vmatpush2.msra.mxu0 0.0
        %1464 = vmatprep.subr.mxu0 0.0
        %1465 = vmatpush2.msra.mxu0 0.0
        %1466 = vmatprep.subr.mxu0 0.0
        %1467 = vmatpush2.msra.mxu0 0.0
        %1468 = vmatprep.subr.mxu0 0.0
        %1469 = vmatpush2.msra.mxu0 0.0
        %1470 = vmatprep.subr.mxu0 0.0
        %1471 = vmatpush2.msra.mxu0 0.0
        %1472 = vmatprep.subr.mxu0 0.0
        %1473 = vmatpush2.msra.mxu0 0.0
        %1474 = vmatprep.subr.mxu0 0.0
        %1475 = vmatpush2.msra.mxu0 0.0
        %1476 = vmatprep.subr.mxu0 0.0
        %1477 = vmatpush2.msra.mxu0 0.0
        %1478 = vmatprep.subr.mxu0 0.0
        %1479 = vmatpush2.msra.mxu0 0.0
        %1480 = vmatprep.subr.mxu0 0.0
        %1481 = vmatpush2.msra.mxu0 0.0
        %1482 = vmatprep.mubr.f32.mxu0 0.0
        %1483 = vmatmul.mubr.f32.gmra.mxu0 %v1408
        %v1484 = vpop.f32.mrf.mxu0
        %v1485 = vadd.f32 0.0, %v1484
        %v1486 = vpop.f32.mrf.mxu0
        %v1487 = vadd.f32 0.0, %v1486
        %1488 = vmatprep.mubr.f32.mxu0 0.0
        %1489 = vmatmul.mubr.f32.gmra.mxu0 %v1410
        %v1490 = vpop.f32.mrf.mxu0
        %v1491 = vadd.f32 0.0, %v1490
        %v1492 = vpop.f32.mrf.mxu0
        %v1493 = vadd.f32 0.0, %v1492
        %1494 = vdwg.mxu0
        %v1495 = vsel %vm1407, %v1349, 0
        %v1497 = vsel %vm1407, %v1354, 0
        %v1500 = vsel %vm1010, %v1377, 0
        %v1503 = vsel %vm1010, %v1378, 0
        %1505 = vmatprep.subr.mxu0 0.0
        %1506 = vmatpush1.msra.mxu0 0.0
        %1507 = vmatprep.subr.mxu0 0.0
        %1508 = vmatpush1.msra.mxu0 0.0
        %1509 = vmatprep.subr.mxu0 0.0
        %1510 = vmatpush1.msra.mxu0 0.0
        %1511 = vmatprep.subr.mxu0 0.0
        %1512 = vmatpush1.msra.mxu0 0.0
        %1513 = vmatprep.subr.mxu0 0.0
        %1514 = vmatpush1.msra.mxu0 0.0
        %1515 = vmatprep.subr.mxu0 %v1503
        %1516 = vmatpush1.msra.mxu0 %v1500
        %1517 = vmatprep.subr.mxu0 %v1376
        %1518 = vmatpush1.msra.mxu0 %v1375
        %1519 = vmatprep.subr.mxu0 %v1374
        %1520 = vmatpush1.msra.mxu0 %v1373
        %1521 = vmatprep.subr.mxu0 %v1372
        %1522 = vmatpush1.msra.mxu0 %v1371
        %1523 = vmatprep.subr.mxu0 %v1370
        %1524 = vmatpush1.msra.mxu0 %v1369
        %1525 = vmatprep.subr.mxu0 %v1368
        %1526 = vmatpush1.msra.mxu0 %v1367
        %1527 = vmatprep.subr.mxu0 %v1366
        %1528 = vmatpush1.msra.mxu0 %v1365
        %1529 = vmatprep.subr.mxu0 %v1364
        %1530 = vmatpush1.msra.mxu0 %v1363
        %1531 = vmatprep.subr.mxu0 %v1362
        %1532 = vmatpush1.msra.mxu0 %v1361
        %1533 = vmatprep.subr.mxu0 %v1360
        %1534 = vmatpush1.msra.mxu0 %v1359
        %1535 = vmatprep.subr.mxu0 %v1358
        %1536 = vmatpush1.msra.mxu0 %v1357
        %1537 = vmatprep.subr.mxu0 0.0
        %1538 = vmatpush2.msra.mxu0 0.0
        %1539 = vmatprep.subr.mxu0 0.0
        %1540 = vmatpush2.msra.mxu0 0.0
        %1541 = vmatprep.subr.mxu0 0.0
        %1542 = vmatpush2.msra.mxu0 0.0
        %1543 = vmatprep.subr.mxu0 0.0
        %1544 = vmatpush2.msra.mxu0 0.0
        %1545 = vmatprep.subr.mxu0 0.0
        %1546 = vmatpush2.msra.mxu0 0.0
        %1547 = vmatprep.subr.mxu0 0.0
        %1548 = vmatpush2.msra.mxu0 0.0
        %1549 = vmatprep.subr.mxu0 0.0
        %1550 = vmatpush2.msra.mxu0 0.0
        %1551 = vmatprep.subr.mxu0 0.0
        %1552 = vmatpush2.msra.mxu0 0.0
        %1553 = vmatprep.subr.mxu0 0.0
        %1554 = vmatpush2.msra.mxu0 0.0
        %1555 = vmatprep.subr.mxu0 0.0
        %1556 = vmatpush2.msra.mxu0 0.0
        %1557 = vmatprep.subr.mxu0 0.0
        %1558 = vmatpush2.msra.mxu0 0.0
        %1559 = vmatprep.subr.mxu0 0.0
        %1560 = vmatpush2.msra.mxu0 0.0
        %1561 = vmatprep.subr.mxu0 0.0
        %1562 = vmatpush2.msra.mxu0 0.0
        %1563 = vmatprep.subr.mxu0 0.0
        %1564 = vmatpush2.msra.mxu0 0.0
        %1565 = vmatprep.subr.mxu0 0.0
        %1566 = vmatpush2.msra.mxu0 0.0
        %1567 = vmatprep.subr.mxu0 0.0
        %1568 = vmatpush2.msra.mxu0 0.0
        %1569 = vmatprep.mubr.f32.mxu0 0.0
        %1570 = vmatmul.mubr.f32.gmra.mxu0 %v1495
        %v1571 = vpop.f32.mrf.mxu0
        %v1572 = vadd.f32 %v1485, %v1571
        %v1573 = vpop.f32.mrf.mxu0
        %v1574 = vadd.f32 %v1487, %v1573
        %1575 = vmatprep.mubr.f32.mxu0 0.0
        %1576 = vmatmul.mubr.f32.gmra.mxu0 %v1497
        %v1577 = vpop.f32.mrf.mxu0
        %v1578 = vadd.f32 %v1491, %v1577
        %v1579 = vpop.f32.mrf.mxu0
        %v1580 = vadd.f32 %v1493, %v1579
        %1581 = vdwg.mxu0
        %s1582 = scalar_lea.vmem %s5, 352
        %v1583 = vld [vmem:[%s1582] sm:$0xff]
        %v1584 = vld [vmem:[%s1582 + $0x8] sm:$0xff]
        %v1585 = vld [vmem:[%s1582 + $0x10] sm:$0xff]
        %v1586 = vld [vmem:[%s1582 + $0x18] sm:$0xff]
        %v1587 = vld [vmem:[%s1582 + $0x20] sm:$0xff]
        %v1588 = vld [vmem:[%s1582 + $0x28] sm:$0xff]
        %v1589 = vld [vmem:[%s1582 + $0x30] sm:$0xff]
        %v1590 = vld [vmem:[%s1582 + $0x38] sm:$0xff]
        %v1591 = vld [vmem:[%s1582 + $0x40] sm:$0xff]
        %v1592 = vld [vmem:[%s1582 + $0x48] sm:$0xff]
        %v1593 = vld [vmem:[%s1582 + $0x50] sm:$0xff]
        %v1594 = vld [vmem:[%s1582 + $0x58] sm:$0xff]
        %v1595 = vld [vmem:[%s1582 + $0x60] sm:$0xff]
        %v1596 = vld [vmem:[%s1582 + $0x68] sm:$0xff]
        %v1597 = vld [vmem:[%s1582 + $0x70] sm:$0xff]
        %v1598 = vld [vmem:[%s1582 + $0x78] sm:$0xff]
        %v1599 = vld [vmem:[%s1582 + $0x80] sm:$0xff]
        %v1600 = vld [vmem:[%s1582 + $0x88] sm:$0xff]
        %v1601 = vld [vmem:[%s1582 + $0x90] sm:$0xff]
        %v1602 = vld [vmem:[%s1582 + $0x98] sm:$0xff]
        %v1603 = vld [vmem:[%s1582 + $0xa0] sm:$0xf]
        %v1604 = vld [vmem:[%s1582 + $0xa8] sm:$0xf]
        %v1605 = vrot.slane %v1349, 2
        %v1606 = vrot.slane %v1354, 2
        %v1607 = vsel %vm766, %v1605, %v1606
        %v1608 = vsel %vm1407, %v1607, 0
        %v1610 = vsel %vm1407, %v1606, 0
        %v1613 = vsel %vm1010, %v1603, 0
        %v1616 = vsel %vm1010, %v1604, 0
        %1618 = vmatprep.subr.mxu0 0.0
        %1619 = vmatpush1.msra.mxu0 0.0
        %1620 = vmatprep.subr.mxu0 0.0
        %1621 = vmatpush1.msra.mxu0 0.0
        %1622 = vmatprep.subr.mxu0 0.0
        %1623 = vmatpush1.msra.mxu0 0.0
        %1624 = vmatprep.subr.mxu0 0.0
        %1625 = vmatpush1.msra.mxu0 0.0
        %1626 = vmatprep.subr.mxu0 0.0
        %1627 = vmatpush1.msra.mxu0 0.0
        %1628 = vmatprep.subr.mxu0 %v1616
        %1629 = vmatpush1.msra.mxu0 %v1613
        %1630 = vmatprep.subr.mxu0 %v1602
        %1631 = vmatpush1.msra.mxu0 %v1601
        %1632 = vmatprep.subr.mxu0 %v1600
        %1633 = vmatpush1.msra.mxu0 %v1599
        %1634 = vmatprep.subr.mxu0 %v1598
        %1635 = vmatpush1.msra.mxu0 %v1597
        %1636 = vmatprep.subr.mxu0 %v1596
        %1637 = vmatpush1.msra.mxu0 %v1595
        %1638 = vmatprep.subr.mxu0 %v1594
        %1639 = vmatpush1.msra.mxu0 %v1593
        %1640 = vmatprep.subr.mxu0 %v1592
        %1641 = vmatpush1.msra.mxu0 %v1591
        %1642 = vmatprep.subr.mxu0 %v1590
        %1643 = vmatpush1.msra.mxu0 %v1589
        %1644 = vmatprep.subr.mxu0 %v1588
        %1645 = vmatpush1.msra.mxu0 %v1587
        %1646 = vmatprep.subr.mxu0 %v1586
        %1647 = vmatpush1.msra.mxu0 %v1585
        %1648 = vmatprep.subr.mxu0 %v1584
        %1649 = vmatpush1.msra.mxu0 %v1583
        %1650 = vmatprep.subr.mxu0 0.0
        %1651 = vmatpush2.msra.mxu0 0.0
        %1652 = vmatprep.subr.mxu0 0.0
        %1653 = vmatpush2.msra.mxu0 0.0
        %1654 = vmatprep.subr.mxu0 0.0
        %1655 = vmatpush2.msra.mxu0 0.0
        %1656 = vmatprep.subr.mxu0 0.0
        %1657 = vmatpush2.msra.mxu0 0.0
        %1658 = vmatprep.subr.mxu0 0.0
        %1659 = vmatpush2.msra.mxu0 0.0
        %1660 = vmatprep.subr.mxu0 0.0
        %1661 = vmatpush2.msra.mxu0 0.0
        %1662 = vmatprep.subr.mxu0 0.0
        %1663 = vmatpush2.msra.mxu0 0.0
        %1664 = vmatprep.subr.mxu0 0.0
        %1665 = vmatpush2.msra.mxu0 0.0
        %1666 = vmatprep.subr.mxu0 0.0
        %1667 = vmatpush2.msra.mxu0 0.0
        %1668 = vmatprep.subr.mxu0 0.0
        %1669 = vmatpush2.msra.mxu0 0.0
        %1670 = vmatprep.subr.mxu0 0.0
        %1671 = vmatpush2.msra.mxu0 0.0
        %1672 = vmatprep.subr.mxu0 0.0
        %1673 = vmatpush2.msra.mxu0 0.0
        %1674 = vmatprep.subr.mxu0 0.0
        %1675 = vmatpush2.msra.mxu0 0.0
        %1676 = vmatprep.subr.mxu0 0.0
        %1677 = vmatpush2.msra.mxu0 0.0
        %1678 = vmatprep.subr.mxu0 0.0
        %1679 = vmatpush2.msra.mxu0 0.0
        %1680 = vmatprep.subr.mxu0 0.0
        %1681 = vmatpush2.msra.mxu0 0.0
        %1682 = vmatprep.mubr.f32.mxu0 0.0
        %1683 = vmatmul.mubr.f32.gmra.mxu0 %v1608
        %v1684 = vpop.f32.mrf.mxu0
        %v1685 = vadd.f32 0.0, %v1684
        %v1686 = vpop.f32.mrf.mxu0
        %v1687 = vadd.f32 0.0, %v1686
        %1688 = vmatprep.mubr.f32.mxu0 0.0
        %1689 = vmatmul.mubr.f32.gmra.mxu0 %v1610
        %v1690 = vpop.f32.mrf.mxu0
        %v1691 = vadd.f32 0.0, %v1690
        %v1692 = vpop.f32.mrf.mxu0
        %v1693 = vadd.f32 0.0, %v1692
        %1694 = vdwg.mxu0
        %v1695 = vadd.f32 %v1572, %v1685
        %v1696 = vadd.f32 %v1574, %v1687
        %v1697 = vadd.f32 %v1578, %v1691
        %v1698 = vadd.f32 %v1580, %v1693
        %s1699 = scalar_lea.vmem %s5, 528
        %v1700 = vld [vmem:[%s1699] sm:$0xff]
        %v1701 = vld [vmem:[%s1699 + $0x8] sm:$0xff]
        %v1702 = vld [vmem:[%s1699 + $0x10] sm:$0xff]
        %v1703 = vld [vmem:[%s1699 + $0x18] sm:$0xff]
        %v1704 = vld [vmem:[%s1699 + $0x20] sm:$0xff]
        %v1705 = vld [vmem:[%s1699 + $0x28] sm:$0xff]
        %v1706 = vld [vmem:[%s1699 + $0x30] sm:$0xff]
        %v1707 = vld [vmem:[%s1699 + $0x38] sm:$0xff]
        %v1708 = vld [vmem:[%s1699 + $0x40] sm:$0xff]
        %v1709 = vld [vmem:[%s1699 + $0x48] sm:$0xff]
        %v1710 = vld [vmem:[%s1699 + $0x50] sm:$0xff]
        %v1711 = vld [vmem:[%s1699 + $0x58] sm:$0xff]
        %v1712 = vld [vmem:[%s1699 + $0x60] sm:$0xff]
        %v1713 = vld [vmem:[%s1699 + $0x68] sm:$0xff]
        %v1714 = vld [vmem:[%s1699 + $0x70] sm:$0xff]
        %v1715 = vld [vmem:[%s1699 + $0x78] sm:$0xff]
        %v1716 = vld [vmem:[%s1699 + $0x80] sm:$0xff]
        %v1717 = vld [vmem:[%s1699 + $0x88] sm:$0xff]
        %v1718 = vld [vmem:[%s1699 + $0x90] sm:$0xff]
        %v1719 = vld [vmem:[%s1699 + $0x98] sm:$0xff]
        %v1720 = vld [vmem:[%s1699 + $0xa0] sm:$0xf]
        %v1721 = vld [vmem:[%s1699 + $0xa8] sm:$0xf]
        %v1722 = vrot.slane %v1349, 3
        %v1723 = vrot.slane %v1354, 3
        %v1724 = vsel %vm888, %v1722, %v1723
        %v1725 = vsel %vm1407, %v1724, 0
        %v1727 = vsel %vm1407, %v1723, 0
        %v1730 = vsel %vm1010, %v1720, 0
        %v1733 = vsel %vm1010, %v1721, 0
        %1735 = vmatprep.subr.mxu0 0.0
        %1736 = vmatpush1.msra.mxu0 0.0
        %1737 = vmatprep.subr.mxu0 0.0
        %1738 = vmatpush1.msra.mxu0 0.0
        %1739 = vmatprep.subr.mxu0 0.0
        %1740 = vmatpush1.msra.mxu0 0.0
        %1741 = vmatprep.subr.mxu0 0.0
        %1742 = vmatpush1.msra.mxu0 0.0
        %1743 = vmatprep.subr.mxu0 0.0
        %1744 = vmatpush1.msra.mxu0 0.0
        %1745 = vmatprep.subr.mxu0 %v1733
        %1746 = vmatpush1.msra.mxu0 %v1730
        %1747 = vmatprep.subr.mxu0 %v1719
        %1748 = vmatpush1.msra.mxu0 %v1718
        %1749 = vmatprep.subr.mxu0 %v1717
        %1750 = vmatpush1.msra.mxu0 %v1716
        %1751 = vmatprep.subr.mxu0 %v1715
        %1752 = vmatpush1.msra.mxu0 %v1714
        %1753 = vmatprep.subr.mxu0 %v1713
        %1754 = vmatpush1.msra.mxu0 %v1712
        %1755 = vmatprep.subr.mxu0 %v1711
        %1756 = vmatpush1.msra.mxu0 %v1710
        %1757 = vmatprep.subr.mxu0 %v1709
        %1758 = vmatpush1.msra.mxu0 %v1708
        %1759 = vmatprep.subr.mxu0 %v1707
        %1760 = vmatpush1.msra.mxu0 %v1706
        %1761 = vmatprep.subr.mxu0 %v1705
        %1762 = vmatpush1.msra.mxu0 %v1704
        %1763 = vmatprep.subr.mxu0 %v1703
        %1764 = vmatpush1.msra.mxu0 %v1702
        %1765 = vmatprep.subr.mxu0 %v1701
        %1766 = vmatpush1.msra.mxu0 %v1700
        %1767 = vmatprep.subr.mxu0 0.0
        %1768 = vmatpush2.msra.mxu0 0.0
        %1769 = vmatprep.subr.mxu0 0.0
        %1770 = vmatpush2.msra.mxu0 0.0
        %1771 = vmatprep.subr.mxu0 0.0
        %1772 = vmatpush2.msra.mxu0 0.0
        %1773 = vmatprep.subr.mxu0 0.0
        %1774 = vmatpush2.msra.mxu0 0.0
        %1775 = vmatprep.subr.mxu0 0.0
        %1776 = vmatpush2.msra.mxu0 0.0
        %1777 = vmatprep.subr.mxu0 0.0
        %1778 = vmatpush2.msra.mxu0 0.0
        %1779 = vmatprep.subr.mxu0 0.0
        %1780 = vmatpush2.msra.mxu0 0.0
        %1781 = vmatprep.subr.mxu0 0.0
        %1782 = vmatpush2.msra.mxu0 0.0
        %1783 = vmatprep.subr.mxu0 0.0
        %1784 = vmatpush2.msra.mxu0 0.0
        %1785 = vmatprep.subr.mxu0 0.0
        %1786 = vmatpush2.msra.mxu0 0.0
        %1787 = vmatprep.subr.mxu0 0.0
        %1788 = vmatpush2.msra.mxu0 0.0
        %1789 = vmatprep.subr.mxu0 0.0
        %1790 = vmatpush2.msra.mxu0 0.0
        %1791 = vmatprep.subr.mxu0 0.0
        %1792 = vmatpush2.msra.mxu0 0.0
        %1793 = vmatprep.subr.mxu0 0.0
        %1794 = vmatpush2.msra.mxu0 0.0
        %1795 = vmatprep.subr.mxu0 0.0
        %1796 = vmatpush2.msra.mxu0 0.0
        %1797 = vmatprep.subr.mxu0 0.0
        %1798 = vmatpush2.msra.mxu0 0.0
        %1799 = vmatprep.mubr.f32.mxu0 0.0
        %1800 = vmatmul.mubr.f32.gmra.mxu0 %v1725
        %v1801 = vpop.f32.mrf.mxu0
        %v1802 = vadd.f32 0.0, %v1801
        %v1803 = vpop.f32.mrf.mxu0
        %v1804 = vadd.f32 0.0, %v1803
        %1805 = vmatprep.mubr.f32.mxu0 0.0
        %1806 = vmatmul.mubr.f32.gmra.mxu0 %v1727
        %v1807 = vpop.f32.mrf.mxu0
        %v1808 = vadd.f32 0.0, %v1807
        %v1809 = vpop.f32.mrf.mxu0
        %v1810 = vadd.f32 0.0, %v1809
        %1811 = vdwg.mxu0
        %v1812 = vadd.f32 %v1695, %v1802
        %v1813 = vadd.f32 %v1696, %v1804
        %v1814 = vadd.f32 %v1697, %v1808
        %v1815 = vadd.f32 %v1698, %v1810
        %s1816 = scalar_lea.vmem %s5, 704
        %v1817 = vld [vmem:[%s1816] sm:$0xff]
        %v1818 = vld [vmem:[%s1816 + $0x8] sm:$0xff]
        %v1819 = vld [vmem:[%s1816 + $0x10] sm:$0xff]
        %v1820 = vld [vmem:[%s1816 + $0x18] sm:$0xff]
        %v1821 = vld [vmem:[%s1816 + $0x20] sm:$0xff]
        %v1822 = vld [vmem:[%s1816 + $0x28] sm:$0xff]
        %v1823 = vld [vmem:[%s1816 + $0x30] sm:$0xff]
        %v1824 = vld [vmem:[%s1816 + $0x38] sm:$0xff]
        %v1825 = vld [vmem:[%s1816 + $0x40] sm:$0xff]
        %v1826 = vld [vmem:[%s1816 + $0x48] sm:$0xff]
        %v1827 = vld [vmem:[%s1816 + $0x50] sm:$0xff]
        %v1828 = vld [vmem:[%s1816 + $0x58] sm:$0xff]
        %v1829 = vld [vmem:[%s1816 + $0x60] sm:$0xff]
        %v1830 = vld [vmem:[%s1816 + $0x68] sm:$0xff]
        %v1831 = vld [vmem:[%s1816 + $0x70] sm:$0xff]
        %v1832 = vld [vmem:[%s1816 + $0x78] sm:$0xff]
        %v1833 = vld [vmem:[%s1816 + $0x80] sm:$0xff]
        %v1834 = vld [vmem:[%s1816 + $0x88] sm:$0xff]
        %v1835 = vld [vmem:[%s1816 + $0x90] sm:$0xff]
        %v1836 = vld [vmem:[%s1816 + $0x98] sm:$0xff]
        %v1837 = vld [vmem:[%s1816 + $0xa0] sm:$0xf]
        %v1838 = vld [vmem:[%s1816 + $0xa8] sm:$0xf]
        %v1839 = vrot.slane %v1349, 4
        %v1840 = vrot.slane %v1354, 4
        %v1841 = vsel %vm1010, %v1839, %v1840
        %v1842 = vsel %vm1407, %v1841, 0
        %v1844 = vsel %vm1407, %v1840, 0
        %v1847 = vsel %vm1010, %v1837, 0
        %v1850 = vsel %vm1010, %v1838, 0
        %1852 = vmatprep.subr.mxu0 0.0
        %1853 = vmatpush1.msra.mxu0 0.0
        %1854 = vmatprep.subr.mxu0 0.0
        %1855 = vmatpush1.msra.mxu0 0.0
        %1856 = vmatprep.subr.mxu0 0.0
        %1857 = vmatpush1.msra.mxu0 0.0
        %1858 = vmatprep.subr.mxu0 0.0
        %1859 = vmatpush1.msra.mxu0 0.0
        %1860 = vmatprep.subr.mxu0 0.0
        %1861 = vmatpush1.msra.mxu0 0.0
        %1862 = vmatprep.subr.mxu0 %v1850
        %1863 = vmatpush1.msra.mxu0 %v1847
        %1864 = vmatprep.subr.mxu0 %v1836
        %1865 = vmatpush1.msra.mxu0 %v1835
        %1866 = vmatprep.subr.mxu0 %v1834
        %1867 = vmatpush1.msra.mxu0 %v1833
        %1868 = vmatprep.subr.mxu0 %v1832
        %1869 = vmatpush1.msra.mxu0 %v1831
        %1870 = vmatprep.subr.mxu0 %v1830
        %1871 = vmatpush1.msra.mxu0 %v1829
        %1872 = vmatprep.subr.mxu0 %v1828
        %1873 = vmatpush1.msra.mxu0 %v1827
        %1874 = vmatprep.subr.mxu0 %v1826
        %1875 = vmatpush1.msra.mxu0 %v1825
        %1876 = vmatprep.subr.mxu0 %v1824
        %1877 = vmatpush1.msra.mxu0 %v1823
        %1878 = vmatprep.subr.mxu0 %v1822
        %1879 = vmatpush1.msra.mxu0 %v1821
        %1880 = vmatprep.subr.mxu0 %v1820
        %1881 = vmatpush1.msra.mxu0 %v1819
        %1882 = vmatprep.subr.mxu0 %v1818
        %1883 = vmatpush1.msra.mxu0 %v1817
        %1884 = vmatprep.subr.mxu0 0.0
        %1885 = vmatpush2.msra.mxu0 0.0
        %1886 = vmatprep.subr.mxu0 0.0
        %1887 = vmatpush2.msra.mxu0 0.0
        %1888 = vmatprep.subr.mxu0 0.0
        %1889 = vmatpush2.msra.mxu0 0.0
        %1890 = vmatprep.subr.mxu0 0.0
        %1891 = vmatpush2.msra.mxu0 0.0
        %1892 = vmatprep.subr.mxu0 0.0
        %1893 = vmatpush2.msra.mxu0 0.0
        %1894 = vmatprep.subr.mxu0 0.0
        %1895 = vmatpush2.msra.mxu0 0.0
        %1896 = vmatprep.subr.mxu0 0.0
        %1897 = vmatpush2.msra.mxu0 0.0
        %1898 = vmatprep.subr.mxu0 0.0
        %1899 = vmatpush2.msra.mxu0 0.0
        %1900 = vmatprep.subr.mxu0 0.0
        %1901 = vmatpush2.msra.mxu0 0.0
        %1902 = vmatprep.subr.mxu0 0.0
        %1903 = vmatpush2.msra.mxu0 0.0
        %1904 = vmatprep.subr.mxu0 0.0
        %1905 = vmatpush2.msra.mxu0 0.0
        %1906 = vmatprep.subr.mxu0 0.0
        %1907 = vmatpush2.msra.mxu0 0.0
        %1908 = vmatprep.subr.mxu0 0.0
        %1909 = vmatpush2.msra.mxu0 0.0
        %1910 = vmatprep.subr.mxu0 0.0
        %1911 = vmatpush2.msra.mxu0 0.0
        %1912 = vmatprep.subr.mxu0 0.0
        %1913 = vmatpush2.msra.mxu0 0.0
        %1914 = vmatprep.subr.mxu0 0.0
        %1915 = vmatpush2.msra.mxu0 0.0
        %1916 = vmatprep.mubr.f32.mxu0 0.0
        %1917 = vmatmul.mubr.f32.gmra.mxu0 %v1842
        %v1918 = vpop.f32.mrf.mxu0
        %v1919 = vadd.f32 0.0, %v1918
        %v1920 = vpop.f32.mrf.mxu0
        %v1921 = vadd.f32 0.0, %v1920
        %1922 = vmatprep.mubr.f32.mxu0 0.0
        %1923 = vmatmul.mubr.f32.gmra.mxu0 %v1844
        %v1924 = vpop.f32.mrf.mxu0
        %v1925 = vadd.f32 0.0, %v1924
        %v1926 = vpop.f32.mrf.mxu0
        %v1927 = vadd.f32 0.0, %v1926
        %1928 = vdwg.mxu0
        %v1929 = vadd.f32 %v1812, %v1919
        %v1930 = vadd.f32 %v1813, %v1921
        %v1931 = vadd.f32 %v1814, %v1925
        %v1932 = vadd.f32 %v1815, %v1927
        %v1933 = vld [vmem:[%s6] sm:$0x3]
        %v1935 = vlaneseq
        %v1936 = vshrl.u32 %v1935, 7
        %v1937 = vsub.s32 0, %v1936
        %v1938 = vrot.slane %v1933, %v1937
        %v1939 = vlaneseq
        %v1940 = vshrl.u32 %v1939, 7
        %v1941 = vsub.s32 1, %v1940
        %v1942 = vrot.slane %v1933, %v1941
        %v1945 = vadd.f32 %v1929, %v1938
        %v1946 = vadd.f32 %v1930, %v1942
        %v1947 = vadd.f32 %v1931, %v1938
        %v1948 = vadd.f32 %v1932, %v1942
        %v1949 = vtanh.pop %v1945
        %v1950 = vtanh.pop %v1946
        %v1951 = vtanh.pop %v1947
        %v1952 = vtanh.pop %v1948
        %v1953 = vld [vmem:[%s7] sm:$0x1f]
        %v1954 = vld [vmem:[%s8] sm:$0xff]
        %v1955 = vld [vmem:[%s8 + $0x8] sm:$0xff]
        %v1956 = vld [vmem:[%s8 + $0x10] sm:$0xff]
        %v1957 = vld [vmem:[%s8 + $0x18] sm:$0xff]
        %v1958 = vld [vmem:[%s8 + $0x20] sm:$0xff]
        %v1959 = vld [vmem:[%s8 + $0x28] sm:$0xff]
        %v1960 = vld [vmem:[%s8 + $0x30] sm:$0xff]
        %v1961 = vld [vmem:[%s8 + $0x38] sm:$0xff]
        %v1962 = vld [vmem:[%s8 + $0x40] sm:$0xff]
        %v1963 = vld [vmem:[%s8 + $0x48] sm:$0xff]
        %v1964 = vld [vmem:[%s8 + $0x50] sm:$0xff]
        %v1965 = vld [vmem:[%s8 + $0x58] sm:$0xff]
        %v1966 = vld [vmem:[%s8 + $0x60] sm:$0xff]
        %v1967 = vld [vmem:[%s8 + $0x68] sm:$0xff]
        %v1968 = vld [vmem:[%s8 + $0x70] sm:$0xff]
        %v1969 = vld [vmem:[%s8 + $0x78] sm:$0xff]
        %v1970 = vld [vmem:[%s8 + $0x80] sm:$0xff]
        %v1971 = vld [vmem:[%s8 + $0x88] sm:$0xff]
        %v1972 = vld [vmem:[%s8 + $0x90] sm:$0xff]
        %v1973 = vld [vmem:[%s8 + $0x98] sm:$0xff]
        %v1975 = vsel %vm562, %v1950, 0
        %v1978 = vsel %vm562, %v1952, 0
        %1980 = vmatprep.subr.mxu0 0.0
        %1981 = vmatpush1.msra.mxu0 %v1969
        %1982 = vmatprep.subr.mxu0 0.0
        %1983 = vmatpush1.msra.mxu0 %v1968
        %1984 = vmatprep.subr.mxu0 0.0
        %1985 = vmatpush1.msra.mxu0 %v1967
        %1986 = vmatprep.subr.mxu0 0.0
        %1987 = vmatpush1.msra.mxu0 %v1966
        %1988 = vmatprep.subr.mxu0 0.0
        %1989 = vmatpush1.msra.mxu0 %v1965
        %1990 = vmatprep.subr.mxu0 0.0
        %1991 = vmatpush1.msra.mxu0 %v1964
        %1992 = vmatprep.subr.mxu0 0.0
        %1993 = vmatpush1.msra.mxu0 %v1963
        %1994 = vmatprep.subr.mxu0 0.0
        %1995 = vmatpush1.msra.mxu0 %v1962
        %1996 = vmatprep.subr.mxu0 0.0
        %1997 = vmatpush1.msra.mxu0 %v1961
        %1998 = vmatprep.subr.mxu0 0.0
        %1999 = vmatpush1.msra.mxu0 %v1960
        %2000 = vmatprep.subr.mxu0 0.0
        %2001 = vmatpush1.msra.mxu0 %v1959
        %2002 = vmatprep.subr.mxu0 0.0
        %2003 = vmatpush1.msra.mxu0 %v1958
        %2004 = vmatprep.subr.mxu0 0.0
        %2005 = vmatpush1.msra.mxu0 %v1957
        %2006 = vmatprep.subr.mxu0 0.0
        %2007 = vmatpush1.msra.mxu0 %v1956
        %2008 = vmatprep.subr.mxu0 0.0
        %2009 = vmatpush1.msra.mxu0 %v1955
        %2010 = vmatprep.subr.mxu0 0.0
        %2011 = vmatpush1.msra.mxu0 %v1954
        %2012 = vmatprep.subr.mxu0 0.0
        %2013 = vmatpush2.msra.mxu0 0.0
        %2014 = vmatprep.subr.mxu0 0.0
        %2015 = vmatpush2.msra.mxu0 0.0
        %2016 = vmatprep.subr.mxu0 0.0
        %2017 = vmatpush2.msra.mxu0 0.0
        %2018 = vmatprep.subr.mxu0 0.0
        %2019 = vmatpush2.msra.mxu0 0.0
        %2020 = vmatprep.subr.mxu0 0.0
        %2021 = vmatpush2.msra.mxu0 0.0
        %2022 = vmatprep.subr.mxu0 0.0
        %2023 = vmatpush2.msra.mxu0 0.0
        %2024 = vmatprep.subr.mxu0 0.0
        %2025 = vmatpush2.msra.mxu0 0.0
        %2026 = vmatprep.subr.mxu0 0.0
        %2027 = vmatpush2.msra.mxu0 0.0
        %2028 = vmatprep.subr.mxu0 0.0
        %2029 = vmatpush2.msra.mxu0 0.0
        %2030 = vmatprep.subr.mxu0 0.0
        %2031 = vmatpush2.msra.mxu0 0.0
        %2032 = vmatprep.subr.mxu0 0.0
        %2033 = vmatpush2.msra.mxu0 0.0
        %2034 = vmatprep.subr.mxu0 0.0
        %2035 = vmatpush2.msra.mxu0 0.0
        %2036 = vmatprep.subr.mxu0 0.0
        %2037 = vmatpush2.msra.mxu0 %v1973
        %2038 = vmatprep.subr.mxu0 0.0
        %2039 = vmatpush2.msra.mxu0 %v1972
        %2040 = vmatprep.subr.mxu0 0.0
        %2041 = vmatpush2.msra.mxu0 %v1971
        %2042 = vmatprep.subr.mxu0 0.0
        %2043 = vmatpush2.msra.mxu0 %v1970
        %2044 = vmatprep.mubr.f32.mxu0 %v1975
        %2045 = vmatmul.mubr.f32.gmra.mxu0 %v1949
        %v2046 = vpop.f32.mrf.mxu0
        %v2047 = vadd.f32 0.0, %v2046
        %v2048 = vpop.f32.mrf.mxu0
        %2049 = vmatprep.mubr.f32.mxu0 %v1978
        %2050 = vmatmul.mubr.f32.gmra.mxu0 %v1951
        %v2051 = vpop.f32.mrf.mxu0
        %v2052 = vadd.f32 0.0, %v2051
        %v2053 = vpop.f32.mrf.mxu0
        %2054 = vdwg.mxu0
        %vm2055 = vcmask 80896
        %v2057 = vsel %vm2055, %v1953, 0
        %vm2059 = vcmask 1041408
        %v2061 = vsel %vm2059, %v2052, 0
        %2063 = vmatprep.subr.mxu0 0.0
        %2064 = vmatpush1.msra.mxu0 0.0
        %2065 = vmatprep.subr.mxu0 0.0
        %2066 = vmatpush1.msra.mxu0 0.0
        %2067 = vmatprep.subr.mxu0 0.0
        %2068 = vmatpush1.msra.mxu0 0.0
        %2069 = vmatprep.subr.mxu0 0.0
        %2070 = vmatpush1.msra.mxu0 0.0
        %2071 = vmatprep.subr.mxu0 0.0
        %2072 = vmatpush1.msra.mxu0 0.0
        %2073 = vmatprep.subr.mxu0 0.0
        %2074 = vmatpush1.msra.mxu0 0.0
        %2075 = vmatprep.subr.mxu0 0.0
        %2076 = vmatpush1.msra.mxu0 0.0
        %2077 = vmatprep.subr.mxu0 0.0
        %2078 = vmatpush1.msra.mxu0 0.0
        %2079 = vmatprep.subr.mxu0 0.0
        %2080 = vmatpush1.msra.mxu0 0.0
        %2081 = vmatprep.subr.mxu0 0.0
        %2082 = vmatpush1.msra.mxu0 0.0
        %2083 = vmatprep.subr.mxu0 0.0
        %2084 = vmatpush1.msra.mxu0 0.0
        %2085 = vmatprep.subr.mxu0 0.0
        %2086 = vmatpush1.msra.mxu0 0.0
        %2087 = vmatprep.subr.mxu0 0.0
        %2088 = vmatpush1.msra.mxu0 0.0
        %2089 = vmatprep.subr.mxu0 0.0
        %2090 = vmatpush1.msra.mxu0 0.0
        %2091 = vmatprep.subr.mxu0 0.0
        %2092 = vmatpush1.msra.mxu0 %v2061
        %2093 = vmatprep.subr.mxu0 0.0
        %2094 = vmatpush1.msra.mxu0 %v2047
        %2095 = vmatprep.subr.mxu0 0.0
        %2096 = vmatpush2.msra.mxu0 0.0
        %2097 = vmatprep.subr.mxu0 0.0
        %2098 = vmatpush2.msra.mxu0 0.0
        %2099 = vmatprep.subr.mxu0 0.0
        %2100 = vmatpush2.msra.mxu0 0.0
        %2101 = vmatprep.subr.mxu0 0.0
        %2102 = vmatpush2.msra.mxu0 0.0
        %2103 = vmatprep.subr.mxu0 0.0
        %2104 = vmatpush2.msra.mxu0 0.0
        %2105 = vmatprep.subr.mxu0 0.0
        %2106 = vmatpush2.msra.mxu0 0.0
        %2107 = vmatprep.subr.mxu0 0.0
        %2108 = vmatpush2.msra.mxu0 0.0
        %2109 = vmatprep.subr.mxu0 0.0
        %2110 = vmatpush2.msra.mxu0 0.0
        %2111 = vmatprep.subr.mxu0 0.0
        %2112 = vmatpush2.msra.mxu0 0.0
        %2113 = vmatprep.subr.mxu0 0.0
        %2114 = vmatpush2.msra.mxu0 0.0
        %2115 = vmatprep.subr.mxu0 0.0
        %2116 = vmatpush2.msra.mxu0 0.0
        %2117 = vmatprep.subr.mxu0 0.0
        %2118 = vmatpush2.msra.mxu0 0.0
        %2119 = vmatprep.subr.mxu0 0.0
        %2120 = vmatpush2.msra.mxu0 0.0
        %2121 = vmatprep.subr.mxu0 0.0
        %2122 = vmatpush2.msra.mxu0 0.0
        %2123 = vmatprep.subr.mxu0 0.0
        %2124 = vmatpush2.msra.mxu0 0.0
        %2125 = vmatprep.subr.mxu0 0.0
        %2126 = vmatpush2.msra.mxu0 0.0
        %2127 = vmatprep.mubr.f32.mxu0 0.0
        %2128 = vmatmul.mubr.f32.gmra.mxu0 %v2057
        %v2129 = vpop.f32.mrf.mxu0
        %v2130 = vadd.f32 0.0, %v2129
        %v2131 = vpop.f32.mrf.mxu0
        %2132 = vdwg.mxu0
        %v2133 = vld [vmem:[%s9] sm:$0xff]
        %v2134 = vld [vmem:[%s9 + $0x8] sm:$0xff]
        %v2135 = vld [vmem:[%s9 + $0x10] sm:$0xff]
        %v2136 = vld [vmem:[%s9 + $0x18] sm:$0xff]
        %v2137 = vld [vmem:[%s9 + $0x20] sm:$0xff]
        %v2138 = vld [vmem:[%s9 + $0x28] sm:$0xff]
        %v2139 = vld [vmem:[%s9 + $0x30] sm:$0xff]
        %v2140 = vld [vmem:[%s9 + $0x38] sm:$0xff]
        %v2141 = vld [vmem:[%s9 + $0x40] sm:$0xff]
        %v2142 = vld [vmem:[%s9 + $0x48] sm:$0xff]
        %s2143 = scalar_lea.vmem %s9, 80
        %v2144 = vld [vmem:[%s2143] sm:$0xff]
        %v2145 = vld [vmem:[%s2143 + $0x8] sm:$0xff]
        %v2146 = vld [vmem:[%s2143 + $0x10] sm:$0xff]
        %v2147 = vld [vmem:[%s2143 + $0x18] sm:$0xff]
        %v2148 = vld [vmem:[%s2143 + $0x20] sm:$0xff]
        %v2149 = vld [vmem:[%s2143 + $0x28] sm:$0xff]
        %v2150 = vld [vmem:[%s2143 + $0x30] sm:$0xff]
        %v2151 = vld [vmem:[%s2143 + $0x38] sm:$0xff]
        %v2152 = vld [vmem:[%s2143 + $0x40] sm:$0xff]
        %v2153 = vld [vmem:[%s2143 + $0x48] sm:$0xff]
        %v2155 = vrot.slane %v2130, 1
        %vm2156 = vcmask 654336
        %v2157 = vsel %vm2156, %v2155, 0
        %2159 = vmatprep.subr.mxu0 0.0
        %2160 = vmatpush1.msra.mxu0 0.0
        %2161 = vmatprep.subr.mxu0 0.0
        %2162 = vmatpush1.msra.mxu0 0.0
        %2163 = vmatprep.subr.mxu0 0.0
        %2164 = vmatpush1.msra.mxu0 0.0
        %2165 = vmatprep.subr.mxu0 0.0
        %2166 = vmatpush1.msra.mxu0 0.0
        %2167 = vmatprep.subr.mxu0 0.0
        %2168 = vmatpush1.msra.mxu0 0.0
        %2169 = vmatprep.subr.mxu0 0.0
        %2170 = vmatpush1.msra.mxu0 0.0
        %2171 = vmatprep.subr.mxu0 0.0
        %2172 = vmatpush1.msra.mxu0 %v2153
        %2173 = vmatprep.subr.mxu0 0.0
        %2174 = vmatpush1.msra.mxu0 %v2152
        %2175 = vmatprep.subr.mxu0 0.0
        %2176 = vmatpush1.msra.mxu0 %v2151
        %2177 = vmatprep.subr.mxu0 0.0
        %2178 = vmatpush1.msra.mxu0 %v2150
        %2179 = vmatprep.subr.mxu0 0.0
        %2180 = vmatpush1.msra.mxu0 %v2149
        %2181 = vmatprep.subr.mxu0 0.0
        %2182 = vmatpush1.msra.mxu0 %v2148
        %2183 = vmatprep.subr.mxu0 0.0
        %2184 = vmatpush1.msra.mxu0 %v2147
        %2185 = vmatprep.subr.mxu0 0.0
        %2186 = vmatpush1.msra.mxu0 %v2146
        %2187 = vmatprep.subr.mxu0 0.0
        %2188 = vmatpush1.msra.mxu0 %v2145
        %2189 = vmatprep.subr.mxu0 0.0
        %2190 = vmatpush1.msra.mxu0 %v2144
        %2191 = vmatprep.subr.mxu0 0.0
        %2192 = vmatpush2.msra.mxu0 0.0
        %2193 = vmatprep.subr.mxu0 0.0
        %2194 = vmatpush2.msra.mxu0 0.0
        %2195 = vmatprep.subr.mxu0 0.0
        %2196 = vmatpush2.msra.mxu0 0.0
        %2197 = vmatprep.subr.mxu0 0.0
        %2198 = vmatpush2.msra.mxu0 0.0
        %2199 = vmatprep.subr.mxu0 0.0
        %2200 = vmatpush2.msra.mxu0 0.0
        %2201 = vmatprep.subr.mxu0 0.0
        %2202 = vmatpush2.msra.mxu0 0.0
        %2203 = vmatprep.subr.mxu0 0.0
        %2204 = vmatpush2.msra.mxu0 0.0
        %2205 = vmatprep.subr.mxu0 0.0
        %2206 = vmatpush2.msra.mxu0 0.0
        %2207 = vmatprep.subr.mxu0 0.0
        %2208 = vmatpush2.msra.mxu0 0.0
        %2209 = vmatprep.subr.mxu0 0.0
        %2210 = vmatpush2.msra.mxu0 0.0
        %2211 = vmatprep.subr.mxu0 0.0
        %2212 = vmatpush2.msra.mxu0 0.0
        %2213 = vmatprep.subr.mxu0 0.0
        %2214 = vmatpush2.msra.mxu0 0.0
        %2215 = vmatprep.subr.mxu0 0.0
        %2216 = vmatpush2.msra.mxu0 0.0
        %2217 = vmatprep.subr.mxu0 0.0
        %2218 = vmatpush2.msra.mxu0 0.0
        %2219 = vmatprep.subr.mxu0 0.0
        %2220 = vmatpush2.msra.mxu0 0.0
        %2221 = vmatprep.subr.mxu0 0.0
        %2222 = vmatpush2.msra.mxu0 0.0
        %2223 = vmatprep.mubr.f32.mxu0 0.0
        %2224 = vmatmul.mubr.f32.gmra.mxu0 %v2157
        %v2225 = vpop.f32.mrf.mxu0
        %v2226 = vadd.f32 0.0, %v2225
        %v2227 = vpop.f32.mrf.mxu0
        %2228 = vdwg.mxu0
        %v2229 = vsel %vm2156, %v2130, 0
        %2231 = vmatprep.subr.mxu0 0.0
        %2232 = vmatpush1.msra.mxu0 0.0
        %2233 = vmatprep.subr.mxu0 0.0
        %2234 = vmatpush1.msra.mxu0 0.0
        %2235 = vmatprep.subr.mxu0 0.0
        %2236 = vmatpush1.msra.mxu0 0.0
        %2237 = vmatprep.subr.mxu0 0.0
        %2238 = vmatpush1.msra.mxu0 0.0
        %2239 = vmatprep.subr.mxu0 0.0
        %2240 = vmatpush1.msra.mxu0 0.0
        %2241 = vmatprep.subr.mxu0 0.0
        %2242 = vmatpush1.msra.mxu0 0.0
        %2243 = vmatprep.subr.mxu0 0.0
        %2244 = vmatpush1.msra.mxu0 %v2142
        %2245 = vmatprep.subr.mxu0 0.0
        %2246 = vmatpush1.msra.mxu0 %v2141
        %2247 = vmatprep.subr.mxu0 0.0
        %2248 = vmatpush1.msra.mxu0 %v2140
        %2249 = vmatprep.subr.mxu0 0.0
        %2250 = vmatpush1.msra.mxu0 %v2139
        %2251 = vmatprep.subr.mxu0 0.0
        %2252 = vmatpush1.msra.mxu0 %v2138
        %2253 = vmatprep.subr.mxu0 0.0
        %2254 = vmatpush1.msra.mxu0 %v2137
        %2255 = vmatprep.subr.mxu0 0.0
        %2256 = vmatpush1.msra.mxu0 %v2136
        %2257 = vmatprep.subr.mxu0 0.0
        %2258 = vmatpush1.msra.mxu0 %v2135
        %2259 = vmatprep.subr.mxu0 0.0
        %2260 = vmatpush1.msra.mxu0 %v2134
        %2261 = vmatprep.subr.mxu0 0.0
        %2262 = vmatpush1.msra.mxu0 %v2133
        %2263 = vmatprep.subr.mxu0 0.0
        %2264 = vmatpush2.msra.mxu0 0.0
        %2265 = vmatprep.subr.mxu0 0.0
        %2266 = vmatpush2.msra.mxu0 0.0
        %2267 = vmatprep.subr.mxu0 0.0
        %2268 = vmatpush2.msra.mxu0 0.0
        %2269 = vmatprep.subr.mxu0 0.0
        %2270 = vmatpush2.msra.mxu0 0.0
        %2271 = vmatprep.subr.mxu0 0.0
        %2272 = vmatpush2.msra.mxu0 0.0
        %2273 = vmatprep.subr.mxu0 0.0
        %2274 = vmatpush2.msra.mxu0 0.0
        %2275 = vmatprep.subr.mxu0 0.0
        %2276 = vmatpush2.msra.mxu0 0.0
        %2277 = vmatprep.subr.mxu0 0.0
        %2278 = vmatpush2.msra.mxu0 0.0
        %2279 = vmatprep.subr.mxu0 0.0
        %2280 = vmatpush2.msra.mxu0 0.0
        %2281 = vmatprep.subr.mxu0 0.0
        %2282 = vmatpush2.msra.mxu0 0.0
        %2283 = vmatprep.subr.mxu0 0.0
        %2284 = vmatpush2.msra.mxu0 0.0
        %2285 = vmatprep.subr.mxu0 0.0
        %2286 = vmatpush2.msra.mxu0 0.0
        %2287 = vmatprep.subr.mxu0 0.0
        %2288 = vmatpush2.msra.mxu0 0.0
        %2289 = vmatprep.subr.mxu0 0.0
        %2290 = vmatpush2.msra.mxu0 0.0
        %2291 = vmatprep.subr.mxu0 0.0
        %2292 = vmatpush2.msra.mxu0 0.0
        %2293 = vmatprep.subr.mxu0 0.0
        %2294 = vmatpush2.msra.mxu0 0.0
        %2295 = vmatprep.mubr.f32.mxu0 0.0
        %2296 = vmatmul.mubr.f32.gmra.mxu0 %v2229
        %v2297 = vpop.f32.mrf.mxu0
        %v2298 = vadd.f32 %v2226, %v2297
        %v2299 = vpop.f32.mrf.mxu0
        %2300 = vdwg.mxu0
        %s2301 = scalar_lea.vmem %s9, 160
        %v2302 = vld [vmem:[%s2301] sm:$0xff]
        %v2303 = vld [vmem:[%s2301 + $0x8] sm:$0xff]
        %v2304 = vld [vmem:[%s2301 + $0x10] sm:$0xff]
        %v2305 = vld [vmem:[%s2301 + $0x18] sm:$0xff]
        %v2306 = vld [vmem:[%s2301 + $0x20] sm:$0xff]
        %v2307 = vld [vmem:[%s2301 + $0x28] sm:$0xff]
        %v2308 = vld [vmem:[%s2301 + $0x30] sm:$0xff]
        %v2309 = vld [vmem:[%s2301 + $0x38] sm:$0xff]
        %v2310 = vld [vmem:[%s2301 + $0x40] sm:$0xff]
        %v2311 = vld [vmem:[%s2301 + $0x48] sm:$0xff]
        %v2312 = vrot.slane %v2130, 2
        %v2313 = vsel %vm2156, %v2312, 0
        %2315 = vmatprep.subr.mxu0 0.0
        %2316 = vmatpush1.msra.mxu0 0.0
        %2317 = vmatprep.subr.mxu0 0.0
        %2318 = vmatpush1.msra.mxu0 0.0
        %2319 = vmatprep.subr.mxu0 0.0
        %2320 = vmatpush1.msra.mxu0 0.0
        %2321 = vmatprep.subr.mxu0 0.0
        %2322 = vmatpush1.msra.mxu0 0.0
        %2323 = vmatprep.subr.mxu0 0.0
        %2324 = vmatpush1.msra.mxu0 0.0
        %2325 = vmatprep.subr.mxu0 0.0
        %2326 = vmatpush1.msra.mxu0 0.0
        %2327 = vmatprep.subr.mxu0 0.0
        %2328 = vmatpush1.msra.mxu0 %v2311
        %2329 = vmatprep.subr.mxu0 0.0
        %2330 = vmatpush1.msra.mxu0 %v2310
        %2331 = vmatprep.subr.mxu0 0.0
        %2332 = vmatpush1.msra.mxu0 %v2309
        %2333 = vmatprep.subr.mxu0 0.0
        %2334 = vmatpush1.msra.mxu0 %v2308
        %2335 = vmatprep.subr.mxu0 0.0
        %2336 = vmatpush1.msra.mxu0 %v2307
        %2337 = vmatprep.subr.mxu0 0.0
        %2338 = vmatpush1.msra.mxu0 %v2306
        %2339 = vmatprep.subr.mxu0 0.0
        %2340 = vmatpush1.msra.mxu0 %v2305
        %2341 = vmatprep.subr.mxu0 0.0
        %2342 = vmatpush1.msra.mxu0 %v2304
        %2343 = vmatprep.subr.mxu0 0.0
        %2344 = vmatpush1.msra.mxu0 %v2303
        %2345 = vmatprep.subr.mxu0 0.0
        %2346 = vmatpush1.msra.mxu0 %v2302
        %2347 = vmatprep.subr.mxu0 0.0
        %2348 = vmatpush2.msra.mxu0 0.0
        %2349 = vmatprep.subr.mxu0 0.0
        %2350 = vmatpush2.msra.mxu0 0.0
        %2351 = vmatprep.subr.mxu0 0.0
        %2352 = vmatpush2.msra.mxu0 0.0
        %2353 = vmatprep.subr.mxu0 0.0
        %2354 = vmatpush2.msra.mxu0 0.0
        %2355 = vmatprep.subr.mxu0 0.0
        %2356 = vmatpush2.msra.mxu0 0.0
        %2357 = vmatprep.subr.mxu0 0.0
        %2358 = vmatpush2.msra.mxu0 0.0
        %2359 = vmatprep.subr.mxu0 0.0
        %2360 = vmatpush2.msra.mxu0 0.0
        %2361 = vmatprep.subr.mxu0 0.0
        %2362 = vmatpush2.msra.mxu0 0.0
        %2363 = vmatprep.subr.mxu0 0.0
        %2364 = vmatpush2.msra.mxu0 0.0
        %2365 = vmatprep.subr.mxu0 0.0
        %2366 = vmatpush2.msra.mxu0 0.0
        %2367 = vmatprep.subr.mxu0 0.0
        %2368 = vmatpush2.msra.mxu0 0.0
        %2369 = vmatprep.subr.mxu0 0.0
        %2370 = vmatpush2.msra.mxu0 0.0
        %2371 = vmatprep.subr.mxu0 0.0
        %2372 = vmatpush2.msra.mxu0 0.0
        %2373 = vmatprep.subr.mxu0 0.0
        %2374 = vmatpush2.msra.mxu0 0.0
        %2375 = vmatprep.subr.mxu0 0.0
        %2376 = vmatpush2.msra.mxu0 0.0
        %2377 = vmatprep.subr.mxu0 0.0
        %2378 = vmatpush2.msra.mxu0 0.0
        %2379 = vmatprep.mubr.f32.mxu0 0.0
        %2380 = vmatmul.mubr.f32.gmra.mxu0 %v2313
        %v2381 = vpop.f32.mrf.mxu0
        %v2382 = vadd.f32 0.0, %v2381
        %v2383 = vpop.f32.mrf.mxu0
        %2384 = vdwg.mxu0
        %v2385 = vadd.f32 %v2298, %v2382
        %s2386 = scalar_lea.vmem %s9, 240
        %v2387 = vld [vmem:[%s2386] sm:$0xff]
        %v2388 = vld [vmem:[%s2386 + $0x8] sm:$0xff]
        %v2389 = vld [vmem:[%s2386 + $0x10] sm:$0xff]
        %v2390 = vld [vmem:[%s2386 + $0x18] sm:$0xff]
        %v2391 = vld [vmem:[%s2386 + $0x20] sm:$0xff]
        %v2392 = vld [vmem:[%s2386 + $0x28] sm:$0xff]
        %v2393 = vld [vmem:[%s2386 + $0x30] sm:$0xff]
        %v2394 = vld [vmem:[%s2386 + $0x38] sm:$0xff]
        %v2395 = vld [vmem:[%s2386 + $0x40] sm:$0xff]
        %v2396 = vld [vmem:[%s2386 + $0x48] sm:$0xff]
        %v2397 = vrot.slane %v2130, 3
        %v2398 = vsel %vm2156, %v2397, 0
        %2400 = vmatprep.subr.mxu0 0.0
        %2401 = vmatpush1.msra.mxu0 0.0
        %2402 = vmatprep.subr.mxu0 0.0
        %2403 = vmatpush1.msra.mxu0 0.0
        %2404 = vmatprep.subr.mxu0 0.0
        %2405 = vmatpush1.msra.mxu0 0.0
        %2406 = vmatprep.subr.mxu0 0.0
        %2407 = vmatpush1.msra.mxu0 0.0
        %2408 = vmatprep.subr.mxu0 0.0
        %2409 = vmatpush1.msra.mxu0 0.0
        %2410 = vmatprep.subr.mxu0 0.0
        %2411 = vmatpush1.msra.mxu0 0.0
        %2412 = vmatprep.subr.mxu0 0.0
        %2413 = vmatpush1.msra.mxu0 %v2396
        %2414 = vmatprep.subr.mxu0 0.0
        %2415 = vmatpush1.msra.mxu0 %v2395
        %2416 = vmatprep.subr.mxu0 0.0
        %2417 = vmatpush1.msra.mxu0 %v2394
        %2418 = vmatprep.subr.mxu0 0.0
        %2419 = vmatpush1.msra.mxu0 %v2393
        %2420 = vmatprep.subr.mxu0 0.0
        %2421 = vmatpush1.msra.mxu0 %v2392
        %2422 = vmatprep.subr.mxu0 0.0
        %2423 = vmatpush1.msra.mxu0 %v2391
        %2424 = vmatprep.subr.mxu0 0.0
        %2425 = vmatpush1.msra.mxu0 %v2390
        %2426 = vmatprep.subr.mxu0 0.0
        %2427 = vmatpush1.msra.mxu0 %v2389
        %2428 = vmatprep.subr.mxu0 0.0
        %2429 = vmatpush1.msra.mxu0 %v2388
        %2430 = vmatprep.subr.mxu0 0.0
        %2431 = vmatpush1.msra.mxu0 %v2387
        %2432 = vmatprep.subr.mxu0 0.0
        %2433 = vmatpush2.msra.mxu0 0.0
        %2434 = vmatprep.subr.mxu0 0.0
        %2435 = vmatpush2.msra.mxu0 0.0
        %2436 = vmatprep.subr.mxu0 0.0
        %2437 = vmatpush2.msra.mxu0 0.0
        %2438 = vmatprep.subr.mxu0 0.0
        %2439 = vmatpush2.msra.mxu0 0.0
        %2440 = vmatprep.subr.mxu0 0.0
        %2441 = vmatpush2.msra.mxu0 0.0
        %2442 = vmatprep.subr.mxu0 0.0
        %2443 = vmatpush2.msra.mxu0 0.0
        %2444 = vmatprep.subr.mxu0 0.0
        %2445 = vmatpush2.msra.mxu0 0.0
        %2446 = vmatprep.subr.mxu0 0.0
        %2447 = vmatpush2.msra.mxu0 0.0
        %2448 = vmatprep.subr.mxu0 0.0
        %2449 = vmatpush2.msra.mxu0 0.0
        %2450 = vmatprep.subr.mxu0 0.0
        %2451 = vmatpush2.msra.mxu0 0.0
        %2452 = vmatprep.subr.mxu0 0.0
        %2453 = vmatpush2.msra.mxu0 0.0
        %2454 = vmatprep.subr.mxu0 0.0
        %2455 = vmatpush2.msra.mxu0 0.0
        %2456 = vmatprep.subr.mxu0 0.0
        %2457 = vmatpush2.msra.mxu0 0.0
        %2458 = vmatprep.subr.mxu0 0.0
        %2459 = vmatpush2.msra.mxu0 0.0
        %2460 = vmatprep.subr.mxu0 0.0
        %2461 = vmatpush2.msra.mxu0 0.0
        %2462 = vmatprep.subr.mxu0 0.0
        %2463 = vmatpush2.msra.mxu0 0.0
        %2464 = vmatprep.mubr.f32.mxu0 0.0
        %2465 = vmatmul.mubr.f32.gmra.mxu0 %v2398
        %v2466 = vpop.f32.mrf.mxu0
        %v2467 = vadd.f32 0.0, %v2466
        %v2468 = vpop.f32.mrf.mxu0
        %2469 = vdwg.mxu0
        %v2470 = vadd.f32 %v2385, %v2467
        %s2471 = scalar_lea.vmem %s9, 320
        %v2472 = vld [vmem:[%s2471] sm:$0xff]
        %v2473 = vld [vmem:[%s2471 + $0x8] sm:$0xff]
        %v2474 = vld [vmem:[%s2471 + $0x10] sm:$0xff]
        %v2475 = vld [vmem:[%s2471 + $0x18] sm:$0xff]
        %v2476 = vld [vmem:[%s2471 + $0x20] sm:$0xff]
        %v2477 = vld [vmem:[%s2471 + $0x28] sm:$0xff]
        %v2478 = vld [vmem:[%s2471 + $0x30] sm:$0xff]
        %v2479 = vld [vmem:[%s2471 + $0x38] sm:$0xff]
        %v2480 = vld [vmem:[%s2471 + $0x40] sm:$0xff]
        %v2481 = vld [vmem:[%s2471 + $0x48] sm:$0xff]
        %v2482 = vrot.slane %v2130, 4
        %v2483 = vsel %vm2156, %v2482, 0
        %2485 = vmatprep.subr.mxu0 0.0
        %2486 = vmatpush1.msra.mxu0 0.0
        %2487 = vmatprep.subr.mxu0 0.0
        %2488 = vmatpush1.msra.mxu0 0.0
        %2489 = vmatprep.subr.mxu0 0.0
        %2490 = vmatpush1.msra.mxu0 0.0
        %2491 = vmatprep.subr.mxu0 0.0
        %2492 = vmatpush1.msra.mxu0 0.0
        %2493 = vmatprep.subr.mxu0 0.0
        %2494 = vmatpush1.msra.mxu0 0.0
        %2495 = vmatprep.subr.mxu0 0.0
        %2496 = vmatpush1.msra.mxu0 0.0
        %2497 = vmatprep.subr.mxu0 0.0
        %2498 = vmatpush1.msra.mxu0 %v2481
        %2499 = vmatprep.subr.mxu0 0.0
        %2500 = vmatpush1.msra.mxu0 %v2480
        %2501 = vmatprep.subr.mxu0 0.0
        %2502 = vmatpush1.msra.mxu0 %v2479
        %2503 = vmatprep.subr.mxu0 0.0
        %2504 = vmatpush1.msra.mxu0 %v2478
        %2505 = vmatprep.subr.mxu0 0.0
        %2506 = vmatpush1.msra.mxu0 %v2477
        %2507 = vmatprep.subr.mxu0 0.0
        %2508 = vmatpush1.msra.mxu0 %v2476
        %2509 = vmatprep.subr.mxu0 0.0
        %2510 = vmatpush1.msra.mxu0 %v2475
        %2511 = vmatprep.subr.mxu0 0.0
        %2512 = vmatpush1.msra.mxu0 %v2474
        %2513 = vmatprep.subr.mxu0 0.0
        %2514 = vmatpush1.msra.mxu0 %v2473
        %2515 = vmatprep.subr.mxu0 0.0
        %2516 = vmatpush1.msra.mxu0 %v2472
        %2517 = vmatprep.subr.mxu0 0.0
        %2518 = vmatpush2.msra.mxu0 0.0
        %2519 = vmatprep.subr.mxu0 0.0
        %2520 = vmatpush2.msra.mxu0 0.0
        %2521 = vmatprep.subr.mxu0 0.0
        %2522 = vmatpush2.msra.mxu0 0.0
        %2523 = vmatprep.subr.mxu0 0.0
        %2524 = vmatpush2.msra.mxu0 0.0
        %2525 = vmatprep.subr.mxu0 0.0
        %2526 = vmatpush2.msra.mxu0 0.0
        %2527 = vmatprep.subr.mxu0 0.0
        %2528 = vmatpush2.msra.mxu0 0.0
        %2529 = vmatprep.subr.mxu0 0.0
        %2530 = vmatpush2.msra.mxu0 0.0
        %2531 = vmatprep.subr.mxu0 0.0
        %2532 = vmatpush2.msra.mxu0 0.0
        %2533 = vmatprep.subr.mxu0 0.0
        %2534 = vmatpush2.msra.mxu0 0.0
        %2535 = vmatprep.subr.mxu0 0.0
        %2536 = vmatpush2.msra.mxu0 0.0
        %2537 = vmatprep.subr.mxu0 0.0
        %2538 = vmatpush2.msra.mxu0 0.0
        %2539 = vmatprep.subr.mxu0 0.0
        %2540 = vmatpush2.msra.mxu0 0.0
        %2541 = vmatprep.subr.mxu0 0.0
        %2542 = vmatpush2.msra.mxu0 0.0
        %2543 = vmatprep.subr.mxu0 0.0
        %2544 = vmatpush2.msra.mxu0 0.0
        %2545 = vmatprep.subr.mxu0 0.0
        %2546 = vmatpush2.msra.mxu0 0.0
        %2547 = vmatprep.subr.mxu0 0.0
        %2548 = vmatpush2.msra.mxu0 0.0
        %2549 = vmatprep.mubr.f32.mxu0 0.0
        %2550 = vmatmul.mubr.f32.gmra.mxu0 %v2483
        %v2551 = vpop.f32.mrf.mxu0
        %v2552 = vadd.f32 0.0, %v2551
        %v2553 = vpop.f32.mrf.mxu0
        %2554 = vdwg.mxu0
        %v2555 = vadd.f32 %v2470, %v2552
        %v2556 = vld [vmem:[%s10] sm:$0x1]
        %v2557 = vadd.f32 %v2555, %v2556
        %v2558 = vtanh.pop %v2557
        %v2559 = vld [vmem:[%s11] sm:$0xff]
        %v2560 = vld [vmem:[%s11 + $0x8] sm:$0xff]
        %v2561 = vld [vmem:[%s11 + $0x10] sm:$0xff]
        %v2562 = vld [vmem:[%s11 + $0x18] sm:$0xff]
        %v2563 = vld [vmem:[%s11 + $0x20] sm:$0xff]
        %v2564 = vld [vmem:[%s11 + $0x28] sm:$0xff]
        %v2565 = vld [vmem:[%s11 + $0x30] sm:$0xff]
        %v2566 = vld [vmem:[%s11 + $0x38] sm:$0xff]
        %v2567 = vld [vmem:[%s11 + $0x40] sm:$0xff]
        %v2568 = vld [vmem:[%s11 + $0x48] sm:$0xff]
        %v2569 = vld [vmem:[%s11 + $0x50] sm:$0xff]
        %v2570 = vld [vmem:[%s11 + $0x58] sm:$0xff]
        %v2571 = vld [vmem:[%s11 + $0x60] sm:$0xff]
        %v2572 = vld [vmem:[%s11 + $0x68] sm:$0xff]
        %v2573 = vld [vmem:[%s11 + $0x70] sm:$0xff]
        %v2574 = vld [vmem:[%s12] sm:$0x1]
        %vm2575 = vcmask 982016
        %v2577 = vsel %vm2575, %v2558, 0
        %2579 = vmatprep.subr.mxu0 0.0
        %2580 = vmatpush1.msra.mxu0 0.0
        %2581 = vmatprep.subr.mxu0 0.0
        %2582 = vmatpush1.msra.mxu0 %v2573
        %2583 = vmatprep.subr.mxu0 0.0
        %2584 = vmatpush1.msra.mxu0 %v2572
        %2585 = vmatprep.subr.mxu0 0.0
        %2586 = vmatpush1.msra.mxu0 %v2571
        %2587 = vmatprep.subr.mxu0 0.0
        %2588 = vmatpush1.msra.mxu0 %v2570
        %2589 = vmatprep.subr.mxu0 0.0
        %2590 = vmatpush1.msra.mxu0 %v2569
        %2591 = vmatprep.subr.mxu0 0.0
        %2592 = vmatpush1.msra.mxu0 %v2568
        %2593 = vmatprep.subr.mxu0 0.0
        %2594 = vmatpush1.msra.mxu0 %v2567
        %2595 = vmatprep.subr.mxu0 0.0
        %2596 = vmatpush1.msra.mxu0 %v2566
        %2597 = vmatprep.subr.mxu0 0.0
        %2598 = vmatpush1.msra.mxu0 %v2565
        %2599 = vmatprep.subr.mxu0 0.0
        %2600 = vmatpush1.msra.mxu0 %v2564
        %2601 = vmatprep.subr.mxu0 0.0
        %2602 = vmatpush1.msra.mxu0 %v2563
        %2603 = vmatprep.subr.mxu0 0.0
        %2604 = vmatpush1.msra.mxu0 %v2562
        %2605 = vmatprep.subr.mxu0 0.0
        %2606 = vmatpush1.msra.mxu0 %v2561
        %2607 = vmatprep.subr.mxu0 0.0
        %2608 = vmatpush1.msra.mxu0 %v2560
        %2609 = vmatprep.subr.mxu0 0.0
        %2610 = vmatpush1.msra.mxu0 %v2559
        %2611 = vmatprep.subr.mxu0 0.0
        %2612 = vmatpush2.msra.mxu0 0.0
        %2613 = vmatprep.subr.mxu0 0.0
        %2614 = vmatpush2.msra.mxu0 0.0
        %2615 = vmatprep.subr.mxu0 0.0
        %2616 = vmatpush2.msra.mxu0 0.0
        %2617 = vmatprep.subr.mxu0 0.0
        %2618 = vmatpush2.msra.mxu0 0.0
        %2619 = vmatprep.subr.mxu0 0.0
        %2620 = vmatpush2.msra.mxu0 0.0
        %2621 = vmatprep.subr.mxu0 0.0
        %2622 = vmatpush2.msra.mxu0 0.0
        %2623 = vmatprep.subr.mxu0 0.0
        %2624 = vmatpush2.msra.mxu0 0.0
        %2625 = vmatprep.subr.mxu0 0.0
        %2626 = vmatpush2.msra.mxu0 0.0
        %2627 = vmatprep.subr.mxu0 0.0
        %2628 = vmatpush2.msra.mxu0 0.0
        %2629 = vmatprep.subr.mxu0 0.0
        %2630 = vmatpush2.msra.mxu0 0.0
        %2631 = vmatprep.subr.mxu0 0.0
        %2632 = vmatpush2.msra.mxu0 0.0
        %2633 = vmatprep.subr.mxu0 0.0
        %2634 = vmatpush2.msra.mxu0 0.0
        %2635 = vmatprep.subr.mxu0 0.0
        %2636 = vmatpush2.msra.mxu0 0.0
        %2637 = vmatprep.subr.mxu0 0.0
        %2638 = vmatpush2.msra.mxu0 0.0
        %2639 = vmatprep.subr.mxu0 0.0
        %2640 = vmatpush2.msra.mxu0 0.0
        %2641 = vmatprep.subr.mxu0 0.0
        %2642 = vmatpush2.msra.mxu0 0.0
        %2643 = vmatprep.mubr.f32.mxu0 0.0
        %2644 = vmatmul.mubr.f32.gmra.mxu0 %v2577
        %v2645 = vpop.f32.mrf.mxu0
        %v2646 = vadd.f32 %v2574, %v2645
        %v2647 = vpop.f32.mrf.mxu0
        %2648 = vdwg.mxu0
        %v2649 = vtanh.pop %v2646
        %v2650 = vld [vmem:[%s13] sm:$0xff]
        %v2651 = vld [vmem:[%s13 + $0x8] sm:$0xff]
        %v2652 = vld [vmem:[%s13 + $0x10] sm:$0xff]
        %v2653 = vld [vmem:[%s13 + $0x18] sm:$0xff]
        %v2654 = vld [vmem:[%s13 + $0x20] sm:$0xff]
        %v2655 = vld [vmem:[%s13 + $0x28] sm:$0xff]
        %v2656 = vld [vmem:[%s13 + $0x30] sm:$0xff]
        %v2657 = vld [vmem:[%s13 + $0x38] sm:$0xff]
        %v2658 = vld [vmem:[%s13 + $0x40] sm:$0xff]
        %v2659 = vld [vmem:[%s13 + $0x48] sm:$0xff]
        %v2660 = vld [vmem:[%s13 + $0x50] sm:$0xf]
        %v2661 = vld [vmem:[%s14] sm:$0x1]
        %v2663 = vsel %vm1407, %v2649, 0
        %v2666 = vsel %vm1010, %v2660, 0
        %2668 = vmatprep.subr.mxu0 0.0
        %2669 = vmatpush1.msra.mxu0 0.0
        %2670 = vmatprep.subr.mxu0 0.0
        %2671 = vmatpush1.msra.mxu0 0.0
        %2672 = vmatprep.subr.mxu0 0.0
        %2673 = vmatpush1.msra.mxu0 0.0
        %2674 = vmatprep.subr.mxu0 0.0
        %2675 = vmatpush1.msra.mxu0 0.0
        %2676 = vmatprep.subr.mxu0 0.0
        %2677 = vmatpush1.msra.mxu0 0.0
        %2678 = vmatprep.subr.mxu0 0.0
        %2679 = vmatpush1.msra.mxu0 %v2666
        %2680 = vmatprep.subr.mxu0 0.0
        %2681 = vmatpush1.msra.mxu0 %v2659
        %2682 = vmatprep.subr.mxu0 0.0
        %2683 = vmatpush1.msra.mxu0 %v2658
        %2684 = vmatprep.subr.mxu0 0.0
        %2685 = vmatpush1.msra.mxu0 %v2657
        %2686 = vmatprep.subr.mxu0 0.0
        %2687 = vmatpush1.msra.mxu0 %v2656
        %2688 = vmatprep.subr.mxu0 0.0
        %2689 = vmatpush1.msra.mxu0 %v2655
        %2690 = vmatprep.subr.mxu0 0.0
        %2691 = vmatpush1.msra.mxu0 %v2654
        %2692 = vmatprep.subr.mxu0 0.0
        %2693 = vmatpush1.msra.mxu0 %v2653
        %2694 = vmatprep.subr.mxu0 0.0
        %2695 = vmatpush1.msra.mxu0 %v2652
        %2696 = vmatprep.subr.mxu0 0.0
        %2697 = vmatpush1.msra.mxu0 %v2651
        %2698 = vmatprep.subr.mxu0 0.0
        %2699 = vmatpush1.msra.mxu0 %v2650
        %2700 = vmatprep.subr.mxu0 0.0
        %2701 = vmatpush2.msra.mxu0 0.0
        %2702 = vmatprep.subr.mxu0 0.0
        %2703 = vmatpush2.msra.mxu0 0.0
        %2704 = vmatprep.subr.mxu0 0.0
        %2705 = vmatpush2.msra.mxu0 0.0
        %2706 = vmatprep.subr.mxu0 0.0
        %2707 = vmatpush2.msra.mxu0 0.0
        %2708 = vmatprep.subr.mxu0 0.0
        %2709 = vmatpush2.msra.mxu0 0.0
        %2710 = vmatprep.subr.mxu0 0.0
        %2711 = vmatpush2.msra.mxu0 0.0
        %2712 = vmatprep.subr.mxu0 0.0
        %2713 = vmatpush2.msra.mxu0 0.0
        %2714 = vmatprep.subr.mxu0 0.0
        %2715 = vmatpush2.msra.mxu0 0.0
        %2716 = vmatprep.subr.mxu0 0.0
        %2717 = vmatpush2.msra.mxu0 0.0
        %2718 = vmatprep.subr.mxu0 0.0
        %2719 = vmatpush2.msra.mxu0 0.0
        %2720 = vmatprep.subr.mxu0 0.0
        %2721 = vmatpush2.msra.mxu0 0.0
        %2722 = vmatprep.subr.mxu0 0.0
        %2723 = vmatpush2.msra.mxu0 0.0
        %2724 = vmatprep.subr.mxu0 0.0
        %2725 = vmatpush2.msra.mxu0 0.0
        %2726 = vmatprep.subr.mxu0 0.0
        %2727 = vmatpush2.msra.mxu0 0.0
        %2728 = vmatprep.subr.mxu0 0.0
        %2729 = vmatpush2.msra.mxu0 0.0
        %2730 = vmatprep.subr.mxu0 0.0
        %2731 = vmatpush2.msra.mxu0 0.0
        %2732 = vmatprep.mubr.f32.mxu0 0.0
        %2733 = vmatmul.mubr.f32.gmra.mxu0 %v2663
        %v2734 = vpop.f32.mrf.mxu0
        %v2735 = vadd.f32 %v2661, %v2734
        %v2736 = vpop.f32.mrf.mxu0
        %2737 = vdwg.mxu0
        %vm2738 = vcmask 73728
        %2739 = vst.msk [vmem:[%s517] sm:$0x1] %vm2738, %v2735
        %v2740 = vsel %vm2738, %v2735, -inf
        %2741 = vmax.xlane.f32.xlu0 %v2740
        %v2742 = vpop.xlane.xlu0 %2741
        %v2743 = vsub.f32 %v2735, %v2742
        %v2744 = vmul.f32 %v2743, 1.442695
        %v2745 = vpow.pop %v2744
        %v2746 = vsel %vm2738, %v2745, 0.0
        %2747 = vadd.xlane.f32.xlu0 %v2746
        %v2748 = vpop.xlane.xlu0 %2747
        %v2749 = vrcp.pop %v2748
        %v2750 = vmul.f32 %v2745, %v2749
        %2751 = vst.msk [vmem:[%s523] sm:$0x1] %vm2738, %v2750
        %s2752 = sand.u32 %s362, 1
        %s2753 = scalar_lea.sflag [#allocation3], %s2752
        %s2754 = sand.u32 %s362, 1
        %s2755 = scalar_lea.vmem [#allocation2], %s2754
        %s2756 = sand.u32 %s388, 1
        %s2757 = scalar_lea.sflag [#allocation5], %s2756
        %s2758 = sand.u32 %s388, 1
        %s2759 = scalar_lea.vmem [#allocation4], %s2758
        // Predicated region
        $region81: #{_lambda_.1} parent=79 // pred_check
          %p2760 = pneg %p372
        $region82: #{_lambda_.1} parent=79 // pred_check_branch
          %2762 = sbr.rel (%p2760) target = $region84
        $region83: #{_lambda_.1} parent=79 // pred_region
          %s2764 = ssub.s32 16, 16
          %2765 = vsyncadd %s2753, %s2764
          %s2766 = smul.addr %s34, 16
          %s2767 = scalar_lea.hbm %s15, %s2766
          %s2769 = sshll.u32 %s2755, 4
          %s2770 = int_to_ptr.vmem [resolvable:$true] %s2769
          %2772 = dma.vmem_to_hbm [thread:$0]  %s2770, 16, %s2767, %s2753
        $region84: #{_lambda_.1} parent=79 // pred_fallthru
          _
        // Predicated region
        $region85: #{_lambda_.1} parent=79 // pred_check
          %p2773 = pneg %p398
        $region86: #{_lambda_.1} parent=79 // pred_check_branch
          %2775 = sbr.rel (%p2773) target = $region88
        $region87: #{_lambda_.1} parent=79 // pred_region
          %s2777 = ssub.s32 16, 16
          %2778 = vsyncadd %s2757, %s2777
          %s2779 = smul.addr %s34, 16
          %s2780 = scalar_lea.hbm %s16, %s2779
          %s2782 = sshll.u32 %s2759, 4
          %s2783 = int_to_ptr.vmem [resolvable:$true] %s2782
          %2785 = dma.vmem_to_hbm [thread:$0]  %s2783, 16, %s2780, %s2757
        $region88: #{_lambda_.1} parent=79 // pred_fallthru
          _
      $region80: #{_lambda_.1} parent=5 // pred_fallthru
        _
      %p2786 = scmp.le.s32.totalorder 2, %s29
      // Predicated region
      $region89: #{_lambda_.1} parent=5 // pred_check
        %p2787 = pneg %p2786
      $region90: #{_lambda_.1} parent=5 // pred_check_branch
        %2789 = sbr.rel (%p2787) target = $region92
      $region91: #{_lambda_.1} parent=5 // pred_region
        %s2790 = ssub.s32 %s29, 2
        // Predicated region
        $region93: #{_lambda_.1} parent=91 // pred_check
          %p2791 = pneg %p378
        $region94: #{_lambda_.1} parent=91 // pred_check_branch
          %2793 = sbr.rel (%p2791) target = $region96
        $region95: #{_lambda_.1} parent=91 // pred_region
          %s2794 = sand.u32 %s363, 1
          %s2795 = scalar_lea.sflag [#allocation3], %s2794
          %s2796 = sand.u32 %s363, 1
          %s2797 = scalar_lea.vmem [#allocation2], %s2796
          %2798 = dma.done %s2795, 16
        $region96: #{_lambda_.1} parent=91 // pred_fallthru
          _
        // Predicated region
        $region97: #{_lambda_.1} parent=91 // pred_check
          %p2799 = pneg %p404
        $region98: #{_lambda_.1} parent=91 // pred_check_branch
          %2801 = sbr.rel (%p2799) target = $region100
        $region99: #{_lambda_.1} parent=91 // pred_region
          %s2802 = sand.u32 %s389, 1
          %s2803 = scalar_lea.sflag [#allocation5], %s2802
          %s2804 = sand.u32 %s389, 1
          %s2805 = scalar_lea.vmem [#allocation4], %s2804
          %2806 = dma.done %s2803, 16
        $region100: #{_lambda_.1} parent=91 // pred_fallthru
          _
      $region92: #{_lambda_.1} parent=5 // pred_fallthru
        _
    $region6: #{_lambda_.1} parent=1 // loop_footer
      %s33 = sadd.s32 1, %s29
    $region7: #{_lambda_.1} parent=1 // loop_footer_branch
      %28 = sbr.rel target = $region3
    $region8: #{_lambda_.1} parent=1 // loop_exit
      _
    %2807 = vsyncpa [#allocation3], 1
    %s2808 = scalar_lea.sflag [#allocation3], 1
    %2809 = vsyncpa %s2808, 1
    %2810 = vsyncpa [#allocation5], 1
    %s2811 = scalar_lea.sflag [#allocation5], 1
    %2812 = vsyncpa %s2811, 1

</llo_original>
